<compile_context>
chip_gen: v6e
topology: v6e:2x2x1
jax: 0.10.0
libtpu: 0.0.40
codegen_flags: <defaults>
</compile_context>

<pallas_src>
import functools

import jax
import jax.numpy as jnp
import numpy as np
from jax.experimental import pallas as pl
from jax.experimental.pallas import tpu as pltpu

HIDDEN = 256
NUM_LAYERS = 6
LN_EPS = 1e-5
HEAD_W2_COLS = 128                        # lane-padded width of 2nd-layer head weights
HEAD_W_COLS = 8 * HIDDEN + HEAD_W2_COLS   # [wg | wmx wsx wti wtj | wmg wsg wtg | w2slab]


# ---------------------------------------------------------------------------
# One kernel, grid over the 6 layers; heads computed on the last grid step.
# ---------------------------------------------------------------------------
def fused_gnn_kernel(
    # resident data (constant block index across the layer grid)
    x0_ref, ef_ref, g_ref, s_ref,
    # per-layer streamed weight blocks (leading dim 1 of the stacked [L, ...])
    wn_ref, we_ref, wm1_ref, wm2_ref, wu1_ref, wu2_ref, bias_ref,
    # head weights (raw HBM ref, manually DMA'd) + head-bias slab (resident)
    headw_hbm, headb_ref,
    # outputs
    emb_ref, heads_ref,
    # scratch
    x_scr, headw_buf, head_sem,
    *, first_layer_residual,
):
    H = HIDDEN
    l = pl.program_id(0)

    # Step 0: seed the persistent activation scratch with the (padded) node
    # features and kick off the head-weight DMA so it overlaps all 6 layers.
    @pl.when(l == 0)
    def _():
        x_scr[...] = x0_ref[...]
        pltpu.make_async_copy(headw_hbm, headw_buf, head_sem).start()

    def mx(a, w):
        # f32 activation x bf16 weight on the MXU, f32 accumulation.
        return jnp.dot(a.astype(jnp.bfloat16), w, preferred_element_type=jnp.float32)

    x = x_scr[...]                         # [N, H] f32
    ef = ef_ref[...]                       # [E, edge_dim] f32
    bias = bias_ref[0]                     # [8, H] f32 slab for this layer
    bn, be, bm1, bm2 = bias[0:1], bias[1:2], bias[2:3], bias[3:4]
    bu1, bu2, gamma, beta = bias[4:5], bias[5:6], bias[6:7], bias[7:8]

    # ---------------- GraphConv layer l ----------------
    h = mx(x, wn_ref[0]) + bn                                              # node_lin  [N, H]
    e = mx(ef, we_ref[0]) + be                                             # edge_lin  [E, H]
    # gather h[src] and scatter-add by dst as EXACT f32 one-hot matmuls
    h_src = jnp.dot(g_ref[...], h, preferred_element_type=jnp.float32)    # [E, H]
    m1 = jnp.maximum(mx(jnp.concatenate([h_src, e], axis=-1), wm1_ref[0]) + bm1, 0.0)
    m = mx(m1, wm2_ref[0]) + bm2                                           # [E, H]
    agg = jnp.dot(s_ref[...], m, preferred_element_type=jnp.float32)      # [N, H] f32 accum
    u1 = jnp.maximum(mx(jnp.concatenate([x, agg], axis=-1), wu1_ref[0]) + bu1, 0.0)
    u = mx(u1, wu2_ref[0]) + bu2                                           # [N, H]
    # LayerNorm over the feature dim
    mean = jnp.mean(u, axis=-1, keepdims=True)
    var = jnp.mean((u - mean) ** 2, axis=-1, keepdims=True)
    y = (u - mean) * jax.lax.rsqrt(var + LN_EPS) * gamma + beta
    # residual only when the layer's input width == HIDDEN (layer 0 gated off
    # at runtime when node_dim != HIDDEN)
    if first_layer_residual:
        res = x
    else:
        res = jnp.where(l > 0, x, jnp.zeros_like(x))
    x_new = jnp.maximum(y + res, 0.0)
    x_scr[...] = x_new

    # ---------------- last step: all heads ----------------
    @pl.when(l == NUM_LAYERS - 1)
    def _():
        emb_ref[...] = x_new
        pltpu.make_async_copy(headw_hbm, headw_buf, head_sem).wait()

        xf = x_new
        n = xf.shape[0]
        wg = headw_buf[:, 0:H]                               # global_lin
        Wx = headw_buf[:, H:5 * H]                           # [wmx | wsx | wti | wtj]
        Wg = headw_buf[:, 5 * H:8 * H]                       # [wmg | wsg | wtg]
        w2 = headw_buf[:, 8 * H:8 * H + HEAD_W2_COLS]        # cols 0:4 wmh2, 4 wsh2, 5 wth2
        hb = headb_ref[...]                                  # [8, H]
        bg, bmh1, bsh1, bth1 = hb[0:1], hb[1:2], hb[2:3], hb[3:4]
        bmh2, bsh2, bth2 = hb[4:5, 0:4], hb[5:6, 0:1], hb[6:7, 0:1]

        # global context: sublane mean (XLU) instead of an M=1 MXU matmul
        x_mean = jnp.mean(xf, axis=0, keepdims=True)         # [1, H]
        gc = mx(x_mean, wg) + bg                             # [1, H]

        xh = mx(xf, Wx)                                      # [N, 4H] -- one matmul for all heads
        gch = mx(gc, Wg)                                     # [1, 3H]

        # move head
        mh = jnp.maximum(xh[:, 0:H] + gch[:, 0:H] + bmh1, 0.0)
        mv = mx(mh, w2)[:, 0:4] + bmh2                       # [N, 4]
        mmax = jnp.max(mv, axis=-1, keepdims=True)
        ex = jnp.exp(mv - mmax)
        probs = ex / jnp.sum(ex, axis=-1, keepdims=True)

        # shooter head
        sh = jnp.maximum(xh[:, H:2 * H] + gch[:, H:2 * H] + bsh1, 0.0)
        sv = jnp.clip(mx(sh, w2)[:, 4:5] + bsh2, -10.0, 10.0)   # [N, 1]

        # target head: relu(Wti x[i] + Wtj x[j] + Wtg gc + b) per ordered pair,
        # built as a broadcast add on the VPU (no Pi/Pj one-hot matmuls).
        a_i = xh[:, 2 * H:3 * H] + gch[:, 2 * H:3 * H] + bth1   # [N, H]
        t_j = xh[:, 3 * H:4 * H]                                 # [N, H]
        hp = jnp.maximum(a_i[:, None, :] + t_j[None, :, :], 0.0)  # [N, N, H]
        ts = mx(hp.reshape(n * n, H), w2)[:, 5:6] + bth2          # [N*N, 1]
        ts_mat = jnp.clip(ts.reshape(n, n), -10.0, 10.0)          # [N, N]

        # one lane-dense [N, out_w] store: [mv(4) | probs(4) | sv(1) | ts(n) | pad]
        pieces = [mv, probs, sv, ts_mat]
        pad_w = heads_ref.shape[1] - (4 + 4 + 1 + n)
        if pad_w > 0:
            pieces.append(jnp.zeros((n, pad_w), jnp.float32))
        heads_ref[...] = jnp.concatenate(pieces, axis=-1)


# ---------------------------------------------------------------------------
# Deterministic synthetic parameters following the PyTorch module's shapes.
# Weight matrices -> bf16; biases / LayerNorm affine -> f32.  Layer-0 matrices
# whose input dim is node_dim are zero-padded to HIDDEN so all layers stack.
# ---------------------------------------------------------------------------
def init_params(key, node_dim, edge_dim):
    H = HIDDEN
    assert node_dim <= H

    def lin(k, din, dout, pad_rows_to=None):
        w = 0.05 * jax.random.normal(k, (din, dout), jnp.float32)
        if pad_rows_to is not None and pad_rows_to > din:
            w = jnp.concatenate([w, jnp.zeros((pad_rows_to - din, dout), jnp.float32)], axis=0)
        return w

    dims = [node_dim] + [H] * NUM_LAYERS
    wn_l, we_l, wm1_l, wm2_l, wu1_l, wu2_l, b_l = [], [], [], [], [], [], []
    for i in range(NUM_LAYERS):
        din = dims[i]
        ks = jax.random.split(jax.random.fold_in(key, i), 8)
        wn_l.append(lin(ks[0], din, H, pad_rows_to=H))
        we_l.append(lin(ks[1], edge_dim, H))
        # msg_mlp[0] on cat([h[src], e]): concat rows [h-half | e-half]
        wm1_l.append(jnp.concatenate([lin(ks[2], H, H), lin(ks[3], H, H)], axis=0))
        wm2_l.append(lin(ks[4], H, H))
        # update_mlp[0] on cat([x, agg]): concat rows [x-half (padded) | agg-half]
        wu1_l.append(jnp.concatenate([lin(ks[5], din, H, pad_rows_to=H), lin(ks[6], H, H)], axis=0))
        wu2_l.append(lin(ks[7], H, H))
        # bias slab rows: bn, be, bm1, bm2, bu1, bu2, gamma(=1), beta
        b_l.append(jnp.zeros((8, H), jnp.float32).at[6].set(1.0))

    bf = jnp.bfloat16
    stacked = (
        jnp.stack(wn_l).astype(bf), jnp.stack(we_l).astype(bf),
        jnp.stack(wm1_l).astype(bf), jnp.stack(wm2_l).astype(bf),
        jnp.stack(wu1_l).astype(bf), jnp.stack(wu2_l).astype(bf),
        jnp.stack(b_l),
    )

    hk = jax.random.split(jax.random.fold_in(key, 1000), 11)
    wg = lin(hk[0], H, H)
    wmx, wmg, wmh2 = lin(hk[1], H, H), lin(hk[2], H, H), lin(hk[3], H, 4)
    wsx, wsg, wsh2 = lin(hk[4], H, H), lin(hk[5], H, H), lin(hk[6], H, 1)
    wti, wtj, wtg, wth2 = lin(hk[7], H, H), lin(hk[8], H, H), lin(hk[9], H, H), lin(hk[10], H, 1)
    w2slab = (jnp.zeros((H, HEAD_W2_COLS), jnp.float32)
              .at[:, 0:4].set(wmh2).at[:, 4:5].set(wsh2).at[:, 5:6].set(wth2))
    headw = jnp.concatenate([wg, wmx, wsx, wti, wtj, wmg, wsg, wtg, w2slab], axis=1).astype(bf)
    headb = jnp.zeros((8, H), jnp.float32)  # rows: bg, bmh1, bsh1, bth1, bmh2, bsh2, bth2, unused
    return stacked, headw, headb


# ---------------------------------------------------------------------------
# Full forward: one pallas_call, grid over layers.
# ---------------------------------------------------------------------------
def tactical_gnn_forward(node_feats, edge_idx, edge_feats, params):
    stacked, headw, headb = params
    wn, we, wm1, wm2, wu1, wu2, bias = stacked
    n, node_dim = node_feats.shape
    e, edge_dim = edge_feats.shape
    assert headw.shape == (HIDDEN, HEAD_W_COLS)

    # One-hot gather / scatter matrices (f32 -> exact f32 aggregation).
    G = jax.nn.one_hot(edge_idx[0], n, dtype=jnp.float32)        # [E, N]
    S = jax.nn.one_hot(edge_idx[1], n, dtype=jnp.float32).T      # [N, E]

    # Zero-pad node features to HIDDEN so layer-0 weights stack with layers 1..5.
    x0 = jnp.pad(node_feats, ((0, 0), (0, HIDDEN - node_dim)))
    first_layer_residual = (node_dim == HIDDEN)

    out_w = ((4 + 4 + 1 + n + 127) // 128) * 128                 # lane-dense packed head output
    out_shapes = (
        jax.ShapeDtypeStruct((n, HIDDEN), jnp.float32),          # node embeddings
        jax.ShapeDtypeStruct((n, out_w), jnp.float32),           # packed head outputs
    )

    def resident(shape):
        return pl.BlockSpec(shape, lambda l: (0, 0))

    def per_layer(shape):
        return pl.BlockSpec((1,) + shape, lambda l: (l, 0, 0))

    grid_spec = pltpu.PrefetchScalarGridSpec(
        num_scalar_prefetch=0,
        grid=(NUM_LAYERS,),
        in_specs=[
            resident((n, HIDDEN)),                 # x0 (padded node features)
            resident((e, edge_dim)),               # edge features
            resident((e, n)),                      # G  (gather one-hot)
            resident((n, e)),                      # S  (scatter one-hot)
            per_layer((HIDDEN, HIDDEN)),           # wn      (streamed per layer)
            per_layer((edge_dim, HIDDEN)),         # we
            per_layer((2 * HIDDEN, HIDDEN)),       # wm1 = [wm1a; wm1b]
            per_layer((HIDDEN, HIDDEN)),           # wm2
            per_layer((2 * HIDDEN, HIDDEN)),       # wu1 = [wu1a(pad); wu1b]
            per_layer((HIDDEN, HIDDEN)),           # wu2
            per_layer((8, HIDDEN)),                # per-layer bias/LN slab
            pl.BlockSpec(memory_space=pl.ANY),     # packed head weights (manual DMA)
            resident((8, HIDDEN)),                 # head-bias slab
        ],
        out_specs=[
            pl.BlockSpec((n, HIDDEN), lambda l: (0, 0)),
            pl.BlockSpec((n, out_w), lambda l: (0, 0)),
        ],
        scratch_shapes=[
            pltpu.VMEM((n, HIDDEN), jnp.float32),             # persistent activations x
            pltpu.VMEM((HIDDEN, HEAD_W_COLS), jnp.bfloat16),  # head-weight landing buffer
            pltpu.SemaphoreType.DMA(()),                      # head-weight DMA semaphore
        ],
    )

    emb, heads = pl.pallas_call(
        functools.partial(fused_gnn_kernel, first_layer_residual=first_layer_residual),
        out_shape=out_shapes,
        grid_spec=grid_spec,
        compiler_params=pltpu.CompilerParams(
            dimension_semantics=("arbitrary",),   # layer axis carries the activation state
            vmem_limit_bytes=32 * 1024 * 1024,    # ~3 MiB live; cap well below v7x's 64 MiB
        ),
    )(x0, edge_feats, G, S, wn, we, wm1, wm2, wu1, wu2, bias, headw, headb)

    mv = heads[:, 0:4]
    probs = heads[:, 4:8]
    sv = heads[:, 8]
    tmat = heads[:, 9:9 + n]
    # row-major ordered pairs with i != j, matching the reference double loop
    off_diag = np.arange(n * n).reshape(n, n)[~np.eye(n, dtype=bool)]
    ts = tmat.reshape(-1)[off_diag]

    return {
        "move_logits": mv,
        "move_probs": probs,
        "shooter_logits": sv,
        "target_scores": ts,
        "node_embeddings": emb,
    }


# ---------------------------------------------------------------------------
if __name__ == "__main__":
    # TODO(synk): nn.Dropout(0.2) layers are treated as identity (eval mode).
    # TODO(synk): single-graph forward (matches the module API); batching graphs
    # to raise the MXU M-dim and shard across v7x's two TensorCores would change
    # the interface, so it is not applied here.
    N, E = 8, 16
    NODE_DIM, EDGE_DIM = 32, 16

    key = jax.random.PRNGKey(0)
    k_nf, k_ef, k_src, k_dst, k_param = jax.random.split(key, 5)

    node_features = jax.random.normal(k_nf, (N, NODE_DIM), jnp.float32)
    edge_features = jax.random.normal(k_ef, (E, EDGE_DIM), jnp.float32)
    src = jax.random.randint(k_src, (E,), 0, N, jnp.int32)
    dst = jax.random.randint(k_dst, (E,), 0, N, jnp.int32)
    edge_indices = jnp.stack([src, dst], axis=0)

    params = init_params(k_param, NODE_DIM, EDGE_DIM)

    out = tactical_gnn_forward(node_features, edge_indices, edge_features, params)
    jax.block_until_ready(out)

    assert out["move_logits"].shape == (N, 4)
    assert out["move_probs"].shape == (N, 4)
    assert out["shooter_logits"].shape == (N,)
    assert out["target_scores"].shape == (N * (N - 1),)
    assert out["node_embeddings"].shape == (N, HIDDEN)
    print("KERNEL_OK")
</pallas_src>

<mosaic_0001>
module attributes {stable_mosaic.version = 11 : i64} {
  func.func @fused_gnn_kernel(%arg0: i32, %arg1: memref<8x256xf32, #tpu.memory_space<vmem>>, %arg2: memref<16x16xf32, #tpu.memory_space<vmem>>, %arg3: memref<16x8xf32, #tpu.memory_space<vmem>>, %arg4: memref<8x16xf32, #tpu.memory_space<vmem>>, %arg5: memref<1x256x256xbf16, #tpu.memory_space<vmem>>, %arg6: memref<1x16x256xbf16, #tpu.memory_space<vmem>>, %arg7: memref<1x512x256xbf16, #tpu.memory_space<vmem>>, %arg8: memref<1x256x256xbf16, #tpu.memory_space<vmem>>, %arg9: memref<1x512x256xbf16, #tpu.memory_space<vmem>>, %arg10: memref<1x256x256xbf16, #tpu.memory_space<vmem>>, %arg11: memref<1x8x256xf32, #tpu.memory_space<vmem>>, %arg12: memref<256x2176xbf16, #tpu.memory_space<any>>, %arg13: memref<8x256xf32, #tpu.memory_space<vmem>>, %arg14: memref<8x256xf32, #tpu.memory_space<vmem>>, %arg15: memref<8x128xf32, #tpu.memory_space<vmem>>, %arg16: memref<8x256xf32, #tpu.memory_space<vmem>>, %arg17: memref<256x2176xbf16, #tpu.memory_space<vmem>>, %arg18: memref<!tpu.dma_semaphore, #tpu.memory_space<semaphore_mem>>) attributes {dimension_semantics = [#tpu.dimension_semantics<arbitrary>], iteration_bounds = array<i64: 6>, scalar_prefetch = 0 : i64, scratch_operands = 3 : i64, tpu.core_type = #tpu.core_type<tc>, window_params = [{pipeline_mode = #tpu.pipeline_mode<synchronous>, transform_indices = @transform_0, window_bounds = array<i64: 8, 256>}, {pipeline_mode = #tpu.pipeline_mode<synchronous>, transform_indices = @transform_1, window_bounds = array<i64: 16, 16>}, {pipeline_mode = #tpu.pipeline_mode<synchronous>, transform_indices = @transform_2, window_bounds = array<i64: 16, 8>}, {pipeline_mode = #tpu.pipeline_mode<synchronous>, transform_indices = @transform_3, window_bounds = array<i64: 8, 16>}, {transform_indices = @transform_4, window_bounds = array<i64: 1, 256, 256>}, {transform_indices = @transform_5, window_bounds = array<i64: 1, 16, 256>}, {transform_indices = @transform_6, window_bounds = array<i64: 1, 512, 256>}, {transform_indices = @transform_7, window_bounds = array<i64: 1, 256, 256>}, {transform_indices = @transform_8, window_bounds = array<i64: 1, 512, 256>}, {transform_indices = @transform_9, window_bounds = array<i64: 1, 256, 256>}, {transform_indices = @transform_10, window_bounds = array<i64: 1, 8, 256>}, {}, {pipeline_mode = #tpu.pipeline_mode<synchronous>, transform_indices = @transform_12, window_bounds = array<i64: 8, 256>}, {pipeline_mode = #tpu.pipeline_mode<synchronous>, transform_indices = @transform_13, window_bounds = array<i64: 8, 256>}, {pipeline_mode = #tpu.pipeline_mode<synchronous>, transform_indices = @transform_14, window_bounds = array<i64: 8, 128>}]} {
    %c0_i32 = arith.constant 0 : i32
    %0 = arith.cmpi eq, %arg0, %c0_i32 : i32
    %1 = arith.extui %0 : i1 to i32
    %c0_i32_0 = arith.constant 0 : i32
    %2 = arith.cmpi ne, %1, %c0_i32_0 : i32
    scf.if %2 {
      %c0_49 = arith.constant 0 : index
      %c0_50 = arith.constant 0 : index
      %93 = vector.load %arg1[%c0_49, %c0_50] : memref<8x256xf32, #tpu.memory_space<vmem>>, vector<8x256xf32>
      %c0_51 = arith.constant 0 : index
      %c0_52 = arith.constant 0 : index
      %94 = vector.load %arg16[%c0_51, %c0_52] : memref<8x256xf32, #tpu.memory_space<vmem>>, vector<8x256xf32>
      tpu.vector_store %arg16[%c0_51, %c0_52], %93 {strides = array<i32>} : memref<8x256xf32, #tpu.memory_space<vmem>>, vector<8x256xf32>,
      tpu.enqueue_dma source(%arg12 : memref<256x2176xbf16, #tpu.memory_space<any>>) target(%arg17 : memref<256x2176xbf16, #tpu.memory_space<vmem>>) target_semaphore(%arg18 : memref<!tpu.dma_semaphore, #tpu.memory_space<semaphore_mem>>)
    } else {
    }
    %c0 = arith.constant 0 : index
    %c0_1 = arith.constant 0 : index
    %3 = vector.load %arg16[%c0, %c0_1] : memref<8x256xf32, #tpu.memory_space<vmem>>, vector<8x256xf32>
    %c0_2 = arith.constant 0 : index
    %c0_3 = arith.constant 0 : index
    %4 = vector.load %arg2[%c0_2, %c0_3] : memref<16x16xf32, #tpu.memory_space<vmem>>, vector<16x16xf32>
    %c0_4 = arith.constant 0 : index
    %c0_5 = arith.constant 0 : index
    %c0_6 = arith.constant 0 : index
    %5 = vector.load %arg11[%c0_4, %c0_5, %c0_6] : memref<1x8x256xf32, #tpu.memory_space<vmem>>, vector<1x8x256xf32>
    %6 = vector.shape_cast %5 : vector<1x8x256xf32> to vector<8x256xf32>
    %7 = vector.extract_strided_slice %6 {offsets = [0, 0], sizes = [1, 256], strides = [1, 1]} : vector<8x256xf32> to vector<1x256xf32>
    %8 = vector.extract_strided_slice %6 {offsets = [1, 0], sizes = [1, 256], strides = [1, 1]} : vector<8x256xf32> to vector<1x256xf32>
    %9 = vector.extract_strided_slice %6 {offsets = [2, 0], sizes = [1, 256], strides = [1, 1]} : vector<8x256xf32> to vector<1x256xf32>
    %10 = vector.extract_strided_slice %6 {offsets = [3, 0], sizes = [1, 256], strides = [1, 1]} : vector<8x256xf32> to vector<1x256xf32>
    %11 = vector.extract_strided_slice %6 {offsets = [4, 0], sizes = [1, 256], strides = [1, 1]} : vector<8x256xf32> to vector<1x256xf32>
    %12 = vector.extract_strided_slice %6 {offsets = [5, 0], sizes = [1, 256], strides = [1, 1]} : vector<8x256xf32> to vector<1x256xf32>
    %13 = vector.extract_strided_slice %6 {offsets = [6, 0], sizes = [1, 256], strides = [1, 1]} : vector<8x256xf32> to vector<1x256xf32>
    %14 = vector.extract_strided_slice %6 {offsets = [7, 0], sizes = [1, 256], strides = [1, 1]} : vector<8x256xf32> to vector<1x256xf32>
    %c0_7 = arith.constant 0 : index
    %c0_8 = arith.constant 0 : index
    %c0_9 = arith.constant 0 : index
    %15 = vector.load %arg5[%c0_7, %c0_8, %c0_9] : memref<1x256x256xbf16, #tpu.memory_space<vmem>>, vector<1x256x256xbf16>
    %16 = vector.shape_cast %15 : vector<1x256x256xbf16> to vector<256x256xbf16>
    %17 = arith.truncf %3 : vector<8x256xf32> to vector<8x256xbf16>
    %cst = arith.constant dense<0.000000e+00> : vector<8x256xf32>
    %18 = tpu.matmul %17, %16, %cst {dimension_numbers = #tpu.dot_dimension_numbers<[1], [0], [0], [1], [0, 0, 1, 1], [], []>} : vector<8x256xbf16>, vector<256x256xbf16>, vector<8x256xf32> -> vector<8x256xf32>
    %19 = vector.broadcast %7 : vector<1x256xf32> to vector<8x256xf32>
    %20 = arith.addf %18, %19 : vector<8x256xf32>
    %c0_10 = arith.constant 0 : index
    %c0_11 = arith.constant 0 : index
    %c0_12 = arith.constant 0 : index
    %21 = vector.load %arg6[%c0_10, %c0_11, %c0_12] : memref<1x16x256xbf16, #tpu.memory_space<vmem>>, vector<1x16x256xbf16>
    %22 = vector.shape_cast %21 : vector<1x16x256xbf16> to vector<16x256xbf16>
    %23 = arith.truncf %4 : vector<16x16xf32> to vector<16x16xbf16>
    %cst_13 = arith.constant dense<0.000000e+00> : vector<16x256xf32>
    %24 = tpu.matmul %23, %22, %cst_13 {dimension_numbers = #tpu.dot_dimension_numbers<[1], [0], [0], [1], [0, 0, 1, 1], [], []>} : vector<16x16xbf16>, vector<16x256xbf16>, vector<16x256xf32> -> vector<16x256xf32>
    %25 = vector.broadcast %8 : vector<1x256xf32> to vector<16x256xf32>
    %26 = arith.addf %24, %25 : vector<16x256xf32>
    %c0_14 = arith.constant 0 : index
    %c0_15 = arith.constant 0 : index
    %27 = vector.load %arg3[%c0_14, %c0_15] : memref<16x8xf32, #tpu.memory_space<vmem>>, vector<16x8xf32>
    %cst_16 = arith.constant dense<0.000000e+00> : vector<16x256xf32>
    %28 = tpu.matmul %27, %20, %cst_16 {dimension_numbers = #tpu.dot_dimension_numbers<[1], [0], [0], [1], [0, 0, 1, 1], [], []>} : vector<16x8xf32>, vector<8x256xf32>, vector<16x256xf32> -> vector<16x256xf32>
    %29 = tpu.concatenate %28, %26 in 1 : vector<16x256xf32>, vector<16x256xf32> -> vector<16x512xf32>
    %c0_17 = arith.constant 0 : index
    %c0_18 = arith.constant 0 : index
    %c0_19 = arith.constant 0 : index
    %30 = vector.load %arg7[%c0_17, %c0_18, %c0_19] : memref<1x512x256xbf16, #tpu.memory_space<vmem>>, vector<1x512x256xbf16>
    %31 = vector.shape_cast %30 : vector<1x512x256xbf16> to vector<512x256xbf16>
    %32 = arith.truncf %29 : vector<16x512xf32> to vector<16x512xbf16>
    %cst_20 = arith.constant dense<0.000000e+00> : vector<16x256xf32>
    %33 = tpu.matmul %32, %31, %cst_20 {dimension_numbers = #tpu.dot_dimension_numbers<[1], [0], [0], [1], [0, 0, 1, 1], [], []>} : vector<16x512xbf16>, vector<512x256xbf16>, vector<16x256xf32> -> vector<16x256xf32>
    %34 = vector.broadcast %9 : vector<1x256xf32> to vector<16x256xf32>
    %35 = arith.addf %33, %34 : vector<16x256xf32>
    %cst_21 = arith.constant 0.000000e+00 : f32
    %36 = vector.broadcast %cst_21 : f32 to vector<16x256xf32>
    %37 = arith.maximumf %35, %36 : vector<16x256xf32>
    %c0_22 = arith.constant 0 : index
    %c0_23 = arith.constant 0 : index
    %c0_24 = arith.constant 0 : index
    %38 = vector.load %arg8[%c0_22, %c0_23, %c0_24] : memref<1x256x256xbf16, #tpu.memory_space<vmem>>, vector<1x256x256xbf16>
    %39 = vector.shape_cast %38 : vector<1x256x256xbf16> to vector<256x256xbf16>
    %40 = arith.truncf %37 : vector<16x256xf32> to vector<16x256xbf16>
    %cst_25 = arith.constant dense<0.000000e+00> : vector<16x256xf32>
    %41 = tpu.matmul %40, %39, %cst_25 {dimension_numbers = #tpu.dot_dimension_numbers<[1], [0], [0], [1], [0, 0, 1, 1], [], []>} : vector<16x256xbf16>, vector<256x256xbf16>, vector<16x256xf32> -> vector<16x256xf32>
    %42 = vector.broadcast %10 : vector<1x256xf32> to vector<16x256xf32>
    %43 = arith.addf %41, %42 : vector<16x256xf32>
    %c0_26 = arith.constant 0 : index
    %c0_27 = arith.constant 0 : index
    %44 = vector.load %arg4[%c0_26, %c0_27] : memref<8x16xf32, #tpu.memory_space<vmem>>, vector<8x16xf32>
    %cst_28 = arith.constant dense<0.000000e+00> : vector<8x256xf32>
    %45 = tpu.matmul %44, %43, %cst_28 {dimension_numbers = #tpu.dot_dimension_numbers<[1], [0], [0], [1], [0, 0, 1, 1], [], []>} : vector<8x16xf32>, vector<16x256xf32>, vector<8x256xf32> -> vector<8x256xf32>
    %46 = tpu.concatenate %3, %45 in 1 : vector<8x256xf32>, vector<8x256xf32> -> vector<8x512xf32>
    %c0_29 = arith.constant 0 : index
    %c0_30 = arith.constant 0 : index
    %c0_31 = arith.constant 0 : index
    %47 = vector.load %arg9[%c0_29, %c0_30, %c0_31] : memref<1x512x256xbf16, #tpu.memory_space<vmem>>, vector<1x512x256xbf16>
    %48 = vector.shape_cast %47 : vector<1x512x256xbf16> to vector<512x256xbf16>
    %49 = arith.truncf %46 : vector<8x512xf32> to vector<8x512xbf16>
    %cst_32 = arith.constant dense<0.000000e+00> : vector<8x256xf32>
    %50 = tpu.matmul %49, %48, %cst_32 {dimension_numbers = #tpu.dot_dimension_numbers<[1], [0], [0], [1], [0, 0, 1, 1], [], []>} : vector<8x512xbf16>, vector<512x256xbf16>, vector<8x256xf32> -> vector<8x256xf32>
    %51 = vector.broadcast %11 : vector<1x256xf32> to vector<8x256xf32>
    %52 = arith.addf %50, %51 : vector<8x256xf32>
    %cst_33 = arith.constant 0.000000e+00 : f32
    %53 = vector.broadcast %cst_33 : f32 to vector<8x256xf32>
    %54 = arith.maximumf %52, %53 : vector<8x256xf32>
    %c0_34 = arith.constant 0 : index
    %c0_35 = arith.constant 0 : index
    %c0_36 = arith.constant 0 : index
    %55 = vector.load %arg10[%c0_34, %c0_35, %c0_36] : memref<1x256x256xbf16, #tpu.memory_space<vmem>>, vector<1x256x256xbf16>
    %56 = vector.shape_cast %55 : vector<1x256x256xbf16> to vector<256x256xbf16>
    %57 = arith.truncf %54 : vector<8x256xf32> to vector<8x256xbf16>
    %cst_37 = arith.constant dense<0.000000e+00> : vector<8x256xf32>
    %58 = tpu.matmul %57, %56, %cst_37 {dimension_numbers = #tpu.dot_dimension_numbers<[1], [0], [0], [1], [0, 0, 1, 1], [], []>} : vector<8x256xbf16>, vector<256x256xbf16>, vector<8x256xf32> -> vector<8x256xf32>
    %59 = vector.broadcast %12 : vector<1x256xf32> to vector<8x256xf32>
    %60 = arith.addf %58, %59 : vector<8x256xf32>
    %cst_38 = arith.constant dense<0.000000e+00> : vector<8xf32>
    %61 = vector.multi_reduction <add>, %60, %cst_38 [1] : vector<8x256xf32> to vector<8xf32>
    %62 = vector.shape_cast %61 : vector<8xf32> to vector<8x1xf32>
    %cst_39 = arith.constant 2.560000e+02 : f32
    %63 = vector.broadcast %cst_39 : f32 to vector<8x1xf32>
    %64 = arith.divf %62, %63 : vector<8x1xf32>
    %65 = vector.broadcast %64 : vector<8x1xf32> to vector<8x256xf32>
    %66 = arith.subf %60, %65 : vector<8x256xf32>
    %67 = arith.mulf %66, %66 : vector<8x256xf32>
    %cst_40 = arith.constant dense<0.000000e+00> : vector<8xf32>
    %68 = vector.multi_reduction <add>, %67, %cst_40 [1] : vector<8x256xf32> to vector<8xf32>
    %69 = vector.shape_cast %68 : vector<8xf32> to vector<8x1xf32>
    %cst_41 = arith.constant 2.560000e+02 : f32
    %70 = vector.broadcast %cst_41 : f32 to vector<8x1xf32>
    %71 = arith.divf %69, %70 : vector<8x1xf32>
    %72 = vector.broadcast %64 : vector<8x1xf32> to vector<8x256xf32>
    %73 = arith.subf %60, %72 : vector<8x256xf32>
    %cst_42 = arith.constant 9.99999974E-6 : f32
    %74 = vector.broadcast %cst_42 : f32 to vector<8x1xf32>
    %75 = arith.addf %71, %74 : vector<8x1xf32>
    %76 = math.rsqrt %75 : vector<8x1xf32>
    %77 = vector.broadcast %76 : vector<8x1xf32> to vector<8x256xf32>
    %78 = arith.mulf %73, %77 : vector<8x256xf32>
    %79 = vector.broadcast %13 : vector<1x256xf32> to vector<8x256xf32>
    %80 = arith.mulf %78, %79 : vector<8x256xf32>
    %81 = vector.broadcast %14 : vector<1x256xf32> to vector<8x256xf32>
    %82 = arith.addf %80, %81 : vector<8x256xf32>
    %c0_i32_43 = arith.constant 0 : i32
    %83 = arith.cmpi sgt, %arg0, %c0_i32_43 : i32
    %cst_44 = arith.constant 0.000000e+00 : f32
    %84 = vector.broadcast %cst_44 : f32 to vector<8x256xf32>
    %85 = arith.select %83, %3, %84 : vector<8x256xf32>
    %86 = arith.addf %82, %85 : vector<8x256xf32>
    %cst_45 = arith.constant 0.000000e+00 : f32
    %87 = vector.broadcast %cst_45 : f32 to vector<8x256xf32>
    %88 = arith.maximumf %86, %87 : vector<8x256xf32>
    %c0_46 = arith.constant 0 : index
    %c0_47 = arith.constant 0 : index
    %89 = vector.load %arg16[%c0_46, %c0_47] : memref<8x256xf32, #tpu.memory_space<vmem>>, vector<8x256xf32>
    tpu.vector_store %arg16[%c0_46, %c0_47], %88 {strides = array<i32>} : memref<8x256xf32, #tpu.memory_space<vmem>>, vector<8x256xf32>,
    %c5_i32 = arith.constant 5 : i32
    %90 = arith.cmpi eq, %arg0, %c5_i32 : i32
    %91 = arith.extui %90 : i1 to i32
    %c0_i32_48 = arith.constant 0 : i32
    %92 = arith.cmpi ne, %91, %c0_i32_48 : i32
    scf.if %92 {
      %c0_49 = arith.constant 0 : index
      %c0_50 = arith.constant 0 : index
      %93 = vector.load %arg14[%c0_49, %c0_50] : memref<8x256xf32, #tpu.memory_space<vmem>>, vector<8x256xf32>
      tpu.vector_store %arg14[%c0_49, %c0_50], %88 {strides = array<i32>} : memref<8x256xf32, #tpu.memory_space<vmem>>, vector<8x256xf32>,
      tpu.wait_dma2 semaphore(%arg18 : memref<!tpu.dma_semaphore, #tpu.memory_space<semaphore_mem>>) src(%arg12 : memref<256x2176xbf16, #tpu.memory_space<any>>) dst(%arg17 : memref<256x2176xbf16, #tpu.memory_space<vmem>>)
      %c0_51 = arith.constant 0 : index
      %c0_52 = arith.constant 0 : index
      %94 = vector.load %arg17[%c0_51, %c0_52] : memref<256x2176xbf16, #tpu.memory_space<vmem>>, vector<256x256xbf16>
      %c0_53 = arith.constant 0 : index
      %c256 = arith.constant 256 : index
      %95 = vector.load %arg17[%c0_53, %c256] : memref<256x2176xbf16, #tpu.memory_space<vmem>>, vector<256x1024xbf16>
      %c0_54 = arith.constant 0 : index
      %c1280 = arith.constant 1280 : index
      %96 = vector.load %arg17[%c0_54, %c1280] : memref<256x2176xbf16, #tpu.memory_space<vmem>>, vector<256x768xbf16>
      %c0_55 = arith.constant 0 : index
      %c2048 = arith.constant 2048 : index
      %97 = vector.load %arg17[%c0_55, %c2048] : memref<256x2176xbf16, #tpu.memory_space<vmem>>, vector<256x128xbf16>
      %c0_56 = arith.constant 0 : index
      %c0_57 = arith.constant 0 : index
      %98 = vector.load %arg13[%c0_56, %c0_57] : memref<8x256xf32, #tpu.memory_space<vmem>>, vector<8x256xf32>
      %99 = vector.extract_strided_slice %98 {offsets = [0, 0], sizes = [1, 256], strides = [1, 1]} : vector<8x256xf32> to vector<1x256xf32>
      %100 = vector.extract_strided_slice %98 {offsets = [1, 0], sizes = [1, 256], strides = [1, 1]} : vector<8x256xf32> to vector<1x256xf32>
      %101 = vector.extract_strided_slice %98 {offsets = [2, 0], sizes = [1, 256], strides = [1, 1]} : vector<8x256xf32> to vector<1x256xf32>
      %102 = vector.extract_strided_slice %98 {offsets = [3, 0], sizes = [1, 256], strides = [1, 1]} : vector<8x256xf32> to vector<1x256xf32>
      %103 = vector.extract_strided_slice %98 {offsets = [4, 0], sizes = [1, 4], strides = [1, 1]} : vector<8x256xf32> to vector<1x4xf32>
      %104 = vector.extract_strided_slice %98 {offsets = [5, 0], sizes = [1, 1], strides = [1, 1]} : vector<8x256xf32> to vector<1x1xf32>
      %105 = vector.extract_strided_slice %98 {offsets = [6, 0], sizes = [1, 1], strides = [1, 1]} : vector<8x256xf32> to vector<1x1xf32>
      %cst_58 = arith.constant dense<0.000000e+00> : vector<256xf32>
      %106 = vector.multi_reduction <add>, %88, %cst_58 [0] : vector<8x256xf32> to vector<256xf32>
      %107 = vector.shape_cast %106 : vector<256xf32> to vector<1x256xf32>
      %cst_59 = arith.constant 8.000000e+00 : f32
      %108 = vector.broadcast %cst_59 : f32 to vector<1x256xf32>
      %109 = arith.divf %107, %108 : vector<1x256xf32>
      %110 = arith.truncf %109 : vector<1x256xf32> to vector<1x256xbf16>
      %cst_60 = arith.constant dense<0.000000e+00> : vector<1x256xf32>
      %111 = tpu.matmul %110, %94, %cst_60 {dimension_numbers = #tpu.dot_dimension_numbers<[1], [0], [0], [1], [0, 0, 1, 1], [], []>} : vector<1x256xbf16>, vector<256x256xbf16>, vector<1x256xf32> -> vector<1x256xf32>
      %112 = arith.addf %111, %99 : vector<1x256xf32>
      %113 = arith.truncf %88 : vector<8x256xf32> to vector<8x256xbf16>
      %cst_61 = arith.constant dense<0.000000e+00> : vector<8x1024xf32>
      %114 = tpu.matmul %113, %95, %cst_61 {dimension_numbers = #tpu.dot_dimension_numbers<[1], [0], [0], [1], [0, 0, 1, 1], [], []>} : vector<8x256xbf16>, vector<256x1024xbf16>, vector<8x1024xf32> -> vector<8x1024xf32>
      %115 = arith.truncf %112 : vector<1x256xf32> to vector<1x256xbf16>
      %cst_62 = arith.constant dense<0.000000e+00> : vector<1x768xf32>
      %116 = tpu.matmul %115, %96, %cst_62 {dimension_numbers = #tpu.dot_dimension_numbers<[1], [0], [0], [1], [0, 0, 1, 1], [], []>} : vector<1x256xbf16>, vector<256x768xbf16>, vector<1x768xf32> -> vector<1x768xf32>
      %117 = vector.extract_strided_slice %114 {offsets = [0, 0], sizes = [8, 256], strides = [1, 1]} : vector<8x1024xf32> to vector<8x256xf32>
      %118 = vector.extract_strided_slice %116 {offsets = [0, 0], sizes = [1, 256], strides = [1, 1]} : vector<1x768xf32> to vector<1x256xf32>
      %119 = vector.broadcast %118 : vector<1x256xf32> to vector<8x256xf32>
      %120 = arith.addf %117, %119 : vector<8x256xf32>
      %121 = vector.broadcast %100 : vector<1x256xf32> to vector<8x256xf32>
      %122 = arith.addf %120, %121 : vector<8x256xf32>
      %cst_63 = arith.constant 0.000000e+00 : f32
      %123 = vector.broadcast %cst_63 : f32 to vector<8x256xf32>
      %124 = arith.maximumf %122, %123 : vector<8x256xf32>
      %125 = arith.truncf %124 : vector<8x256xf32> to vector<8x256xbf16>
      %cst_64 = arith.constant dense<0.000000e+00> : vector<8x128xf32>
      %126 = tpu.matmul %125, %97, %cst_64 {dimension_numbers = #tpu.dot_dimension_numbers<[1], [0], [0], [1], [0, 0, 1, 1], [], []>} : vector<8x256xbf16>, vector<256x128xbf16>, vector<8x128xf32> -> vector<8x128xf32>
      %127 = vector.extract_strided_slice %126 {offsets = [0, 0], sizes = [8, 4], strides = [1, 1]} : vector<8x128xf32> to vector<8x4xf32>
      %128 = vector.broadcast %103 : vector<1x4xf32> to vector<8x4xf32>
      %129 = arith.addf %127, %128 : vector<8x4xf32>
      %cst_65 = arith.constant dense<0xFF800000> : vector<8xf32>
      %130 = vector.multi_reduction <maximumf>, %129, %cst_65 [1] : vector<8x4xf32> to vector<8xf32>
      %131 = vector.shape_cast %130 : vector<8xf32> to vector<8x1xf32>
      %132 = vector.broadcast %131 : vector<8x1xf32> to vector<8x4xf32>
      %133 = arith.subf %129, %132 : vector<8x4xf32>
      %134 = math.exp %133 : vector<8x4xf32>
      %cst_66 = arith.constant dense<0.000000e+00> : vector<8xf32>
      %135 = vector.multi_reduction <add>, %134, %cst_66 [1] : vector<8x4xf32> to vector<8xf32>
      %136 = vector.shape_cast %135 : vector<8xf32> to vector<8x1xf32>
      %137 = vector.broadcast %136 : vector<8x1xf32> to vector<8x4xf32>
      %138 = arith.divf %134, %137 : vector<8x4xf32>
      %139 = vector.extract_strided_slice %114 {offsets = [0, 256], sizes = [8, 256], strides = [1, 1]} : vector<8x1024xf32> to vector<8x256xf32>
      %140 = vector.extract_strided_slice %116 {offsets = [0, 256], sizes = [1, 256], strides = [1, 1]} : vector<1x768xf32> to vector<1x256xf32>
      %141 = vector.broadcast %140 : vector<1x256xf32> to vector<8x256xf32>
      %142 = arith.addf %139, %141 : vector<8x256xf32>
      %143 = vector.broadcast %101 : vector<1x256xf32> to vector<8x256xf32>
      %144 = arith.addf %142, %143 : vector<8x256xf32>
      %cst_67 = arith.constant 0.000000e+00 : f32
      %145 = vector.broadcast %cst_67 : f32 to vector<8x256xf32>
      %146 = arith.maximumf %144, %145 : vector<8x256xf32>
      %147 = arith.truncf %146 : vector<8x256xf32> to vector<8x256xbf16>
      %cst_68 = arith.constant dense<0.000000e+00> : vector<8x128xf32>
      %148 = tpu.matmul %147, %97, %cst_68 {dimension_numbers = #tpu.dot_dimension_numbers<[1], [0], [0], [1], [0, 0, 1, 1], [], []>} : vector<8x256xbf16>, vector<256x128xbf16>, vector<8x128xf32> -> vector<8x128xf32>
      %149 = vector.extract_strided_slice %148 {offsets = [0, 4], sizes = [8, 1], strides = [1, 1]} : vector<8x128xf32> to vector<8x1xf32>
      %150 = vector.broadcast %104 : vector<1x1xf32> to vector<8x1xf32>
      %151 = arith.addf %149, %150 : vector<8x1xf32>
      %cst_69 = arith.constant -1.000000e+01 : f32
      %cst_70 = arith.constant 1.000000e+01 : f32
      %152 = vector.broadcast %cst_69 : f32 to vector<8x1xf32>
      %153 = arith.maximumf %152, %151 : vector<8x1xf32>
      %154 = vector.broadcast %cst_70 : f32 to vector<8x1xf32>
      %155 = arith.minimumf %154, %153 : vector<8x1xf32>
      %156 = vector.extract_strided_slice %114 {offsets = [0, 512], sizes = [8, 256], strides = [1, 1]} : vector<8x1024xf32> to vector<8x256xf32>
      %157 = vector.extract_strided_slice %116 {offsets = [0, 512], sizes = [1, 256], strides = [1, 1]} : vector<1x768xf32> to vector<1x256xf32>
      %158 = vector.broadcast %157 : vector<1x256xf32> to vector<8x256xf32>
      %159 = arith.addf %156, %158 : vector<8x256xf32>
      %160 = vector.broadcast %102 : vector<1x256xf32> to vector<8x256xf32>
      %161 = arith.addf %159, %160 : vector<8x256xf32>
      %162 = vector.extract_strided_slice %114 {offsets = [0, 768], sizes = [8, 256], strides = [1, 1]} : vector<8x1024xf32> to vector<8x256xf32>
      %163 = vector.shape_cast %161 : vector<8x256xf32> to vector<8x1x256xf32>
      %164 = vector.shape_cast %162 : vector<8x256xf32> to vector<1x8x256xf32>
      %165 = vector.broadcast %163 : vector<8x1x256xf32> to vector<8x8x256xf32>
      %166 = vector.broadcast %164 : vector<1x8x256xf32> to vector<8x8x256xf32>
      %167 = arith.addf %165, %166 : vector<8x8x256xf32>
      %cst_71 = arith.constant 0.000000e+00 : f32
      %168 = vector.broadcast %cst_71 : f32 to vector<8x8x256xf32>
      %169 = arith.maximumf %167, %168 : vector<8x8x256xf32>
      %170 = vector.shape_cast %169 : vector<8x8x256xf32> to vector<64x256xf32>
      %171 = arith.truncf %170 : vector<64x256xf32> to vector<64x256xbf16>
      %cst_72 = arith.constant dense<0.000000e+00> : vector<64x128xf32>
      %172 = tpu.matmul %171, %97, %cst_72 {dimension_numbers = #tpu.dot_dimension_numbers<[1], [0], [0], [1], [0, 0, 1, 1], [], []>} : vector<64x256xbf16>, vector<256x128xbf16>, vector<64x128xf32> -> vector<64x128xf32>
      %173 = vector.extract_strided_slice %172 {offsets = [0, 5], sizes = [64, 1], strides = [1, 1]} : vector<64x128xf32> to vector<64x1xf32>
      %174 = vector.broadcast %105 : vector<1x1xf32> to vector<64x1xf32>
      %175 = arith.addf %173, %174 : vector<64x1xf32>
      %176 = vector.shape_cast %175 : vector<64x1xf32> to vector<8x8xf32>
      %cst_73 = arith.constant -1.000000e+01 : f32
      %cst_74 = arith.constant 1.000000e+01 : f32
      %177 = vector.broadcast %cst_73 : f32 to vector<8x8xf32>
      %178 = arith.maximumf %177, %176 : vector<8x8xf32>
      %179 = vector.broadcast %cst_74 : f32 to vector<8x8xf32>
      %180 = arith.minimumf %179, %178 : vector<8x8xf32>
      %cst_75 = arith.constant 0.000000e+00 : f32
      %181 = vector.broadcast %cst_75 : f32 to vector<8x111xf32>
      %182 = tpu.concatenate %129, %138, %155, %180, %181 in 1 : vector<8x4xf32>, vector<8x4xf32>, vector<8x1xf32>, vector<8x8xf32>, vector<8x111xf32> -> vector<8x128xf32>
      %c0_76 = arith.constant 0 : index
      %c0_77 = arith.constant 0 : index
      %183 = vector.load %arg15[%c0_76, %c0_77] : memref<8x128xf32, #tpu.memory_space<vmem>>, vector<8x128xf32>
      tpu.vector_store %arg15[%c0_76, %c0_77], %182 {strides = array<i32>} : memref<8x128xf32, #tpu.memory_space<vmem>>, vector<8x128xf32>,
    } else {
    }
    return
  }
  func.func @transform_0(%arg0: i32) -> (i32, i32) {
    %c0_i32 = arith.constant 0 : i32
    %c0_i32_0 = arith.constant 0 : i32
    %c0_i32_1 = arith.constant 0 : i32
    return %c0_i32, %c0_i32_0 : i32, i32
  }
  func.func @transform_1(%arg0: i32) -> (i32, i32) {
    %c0_i32 = arith.constant 0 : i32
    %c0_i32_0 = arith.constant 0 : i32
    %c0_i32_1 = arith.constant 0 : i32
    return %c0_i32, %c0_i32_0 : i32, i32
  }
  func.func @transform_2(%arg0: i32) -> (i32, i32) {
    %c0_i32 = arith.constant 0 : i32
    %c0_i32_0 = arith.constant 0 : i32
    %c0_i32_1 = arith.constant 0 : i32
    return %c0_i32, %c0_i32_0 : i32, i32
  }
  func.func @transform_3(%arg0: i32) -> (i32, i32) {
    %c0_i32 = arith.constant 0 : i32
    %c0_i32_0 = arith.constant 0 : i32
    %c0_i32_1 = arith.constant 0 : i32
    return %c0_i32, %c0_i32_0 : i32, i32
  }
  func.func @transform_4(%arg0: i32) -> (i32, i32, i32) {
    %c0_i32 = arith.constant 0 : i32
    %c0_i32_0 = arith.constant 0 : i32
    %c0_i32_1 = arith.constant 0 : i32
    return %arg0, %c0_i32, %c0_i32_0 : i32, i32, i32
  }
  func.func @transform_5(%arg0: i32) -> (i32, i32, i32) {
    %c0_i32 = arith.constant 0 : i32
    %c0_i32_0 = arith.constant 0 : i32
    %c0_i32_1 = arith.constant 0 : i32
    return %arg0, %c0_i32, %c0_i32_0 : i32, i32, i32
  }
  func.func @transform_6(%arg0: i32) -> (i32, i32, i32) {
    %c0_i32 = arith.constant 0 : i32
    %c0_i32_0 = arith.constant 0 : i32
    %c0_i32_1 = arith.constant 0 : i32
    return %arg0, %c0_i32, %c0_i32_0 : i32, i32, i32
  }
  func.func @transform_7(%arg0: i32) -> (i32, i32, i32) {
    %c0_i32 = arith.constant 0 : i32
    %c0_i32_0 = arith.constant 0 : i32
    %c0_i32_1 = arith.constant 0 : i32
    return %arg0, %c0_i32, %c0_i32_0 : i32, i32, i32
  }
  func.func @transform_8(%arg0: i32) -> (i32, i32, i32) {
    %c0_i32 = arith.constant 0 : i32
    %c0_i32_0 = arith.constant 0 : i32
    %c0_i32_1 = arith.constant 0 : i32
    return %arg0, %c0_i32, %c0_i32_0 : i32, i32, i32
  }
  func.func @transform_9(%arg0: i32) -> (i32, i32, i32) {
    %c0_i32 = arith.constant 0 : i32
    %c0_i32_0 = arith.constant 0 : i32
    %c0_i32_1 = arith.constant 0 : i32
    return %arg0, %c0_i32, %c0_i32_0 : i32, i32, i32
  }
  func.func @transform_10(%arg0: i32) -> (i32, i32, i32) {
    %c0_i32 = arith.constant 0 : i32
    %c0_i32_0 = arith.constant 0 : i32
    %c0_i32_1 = arith.constant 0 : i32
    return %arg0, %c0_i32, %c0_i32_0 : i32, i32, i32
  }
  func.func @transform_12(%arg0: i32) -> (i32, i32) {
    %c0_i32 = arith.constant 0 : i32
    %c0_i32_0 = arith.constant 0 : i32
    %c0_i32_1 = arith.constant 0 : i32
    return %c0_i32, %c0_i32_0 : i32, i32
  }
  func.func @transform_13(%arg0: i32) -> (i32, i32) {
    %c0_i32 = arith.constant 0 : i32
    %c0_i32_0 = arith.constant 0 : i32
    %c0_i32_1 = arith.constant 0 : i32
    return %c0_i32, %c0_i32_0 : i32, i32
  }
  func.func @transform_14(%arg0: i32) -> (i32, i32) {
    %c0_i32 = arith.constant 0 : i32
    %c0_i32_0 = arith.constant 0 : i32
    %c0_i32_1 = arith.constant 0 : i32
    return %c0_i32, %c0_i32_0 : i32, i32
  }
}

</mosaic_0001>

<llo_original>
// kernel: tpu_custom_call.1
$region0: #{tpu_custom_call.1}
  #allocation0 [shape = 'u32[]', space=smem, size = 0x4, offset = 0x4, fixed_abs, tag = 'smem constant byte address 0x4 - core index']
  #allocation1 [shape = 'u32[144,128]{1,0:T(1,128)}', space=vmem, size = 0x12000, scoped, tag = 'internal scratch']
  #allocation2 [shape = 'f32[8,256]{1,0:T(8,128)}', space=vmem, size = 0x2000, scoped, tag = 'scratch operand']
  #allocation3 [shape = 'bf16[256,2176]{1,0:T(8,128)(2,1)}', space=vmem, size = 0x110000, scoped, tag = 'scratch operand']
  #allocation4 [shape = 's32[1]{0}', space=sflag, size = 0x4, scoped, tag = 'scratch operand']
  #allocation26 [shape = 's32[]', space=sflag, size = 0x4, offset = 0, fixed_abs, tag = 'sflag constant byte address 0x0 - dummy sync flag']
  #allocation27 [shape = 's32[]', space=sflag, size = 0x4, offset = 0, fixed_abs, tag = 'sflag constant byte address 0x0 - dummy sync flag']
  #allocation28 [shape = 'u32[]', space=smem, size = 0x4, offset = 0x44, fixed_abs, tag = 'smem constant byte address 0x44 - assertion arg 0']
  #allocation29 [shape = 'u32[]', space=smem, size = 0x4, offset = 0x48, fixed_abs, tag = 'smem constant byte address 0x48 - assertion arg 1']
  %s0 = inlined_call_operand.hbm [shape: f32[8,256], index: 0, kind: input, shape index: {}]
  %s1 = inlined_call_operand.hbm [shape: f32[16,16], index: 1, kind: input, shape index: {}]
  %s2 = inlined_call_operand.vmem [shape: f32[16,8], index: 2, kind: input, shape index: {}]
  %s3 = inlined_call_operand.hbm [shape: f32[8,16], index: 3, kind: input, shape index: {}]
  %s4 = inlined_call_operand.hbm [shape: bf16[6,256,256], index: 4, kind: input, shape index: {}]
  %s5 = inlined_call_operand.hbm [shape: bf16[6,16,256], index: 5, kind: input, shape index: {}]
  %s6 = inlined_call_operand.hbm [shape: bf16[6,512,256], index: 6, kind: input, shape index: {}]
  %s7 = inlined_call_operand.hbm [shape: bf16[6,256,256], index: 7, kind: input, shape index: {}]
  %s8 = inlined_call_operand.hbm [shape: bf16[6,512,256], index: 8, kind: input, shape index: {}]
  %s9 = inlined_call_operand.hbm [shape: bf16[6,256,256], index: 9, kind: input, shape index: {}]
  %s10 = inlined_call_operand.hbm [shape: f32[6,8,256], index: 10, kind: input, shape index: {}]
  %s11 = inlined_call_operand.hbm [shape: bf16[256,2176], index: 11, kind: input, shape index: {}]
  %s12 = inlined_call_operand.hbm [shape: f32[8,256], index: 12, kind: input, shape index: {}]
  %s13 = inlined_call_operand.hbm [shape: f32[8,256], index: 13, kind: output, shape index: {0}]
  %s14 = inlined_call_operand.hbm [shape: f32[8,128], index: 14, kind: output, shape index: {1}]
  %15 = xla_tuple %s13, %s14
  %s16 = sld [smem:[#allocation0]]
  $region145: #{tpu_custom_call.1} parent=0
    _
  %s18 = ssub.s32 1, %s16
  %s19 = scalar_select 0, %s18, %s16
  $region1: #{tpu_custom_call.1} parent=0
    #allocation5 [shape = 'u8[8192]{0}', space=vmem, size = 0x2000, scoped, tag = 'input window, operand 0, single buffered']
    #allocation6 [shape = 's32[2]{0}', space=sflag, size = 0x8, scoped, tag = 'scoped memory for tpu_custom_call.1']
    #allocation7 [shape = 's32[2]{0}', space=sflag, size = 0x8, scoped, tag = 'scoped memory for tpu_custom_call.1']
    #allocation8 [shape = 'u8[8192]{0}', space=vmem, size = 0x2000, scoped, tag = 'input window, operand 1, single buffered']
    #allocation9 [shape = 's32[1]{0}', space=sflag, size = 0x4, scoped, tag = 'scoped memory for tpu_custom_call.1']
    #allocation10 [shape = 'u8[4096]{0}', space=vmem, size = 0x1000, scoped, tag = 'input window, operand 3, single buffered']
    #allocation11 [shape = 'u8[262144]{0}', space=vmem, size = 0x40000, scoped, tag = 'input window, operand 4']
    #allocation12 [shape = 's32[2]{0}', space=sflag, size = 0x8, scoped, tag = 'scoped memory for tpu_custom_call.1']
    #allocation13 [shape = 'u8[16384]{0}', space=vmem, size = 0x4000, scoped, tag = 'input window, operand 5']
    #allocation14 [shape = 'u8[524288]{0}', space=vmem, size = 0x80000, scoped, tag = 'input window, operand 6']
    #allocation15 [shape = 's32[2]{0}', space=sflag, size = 0x8, scoped, tag = 'scoped memory for tpu_custom_call.1']
    #allocation16 [shape = 'u8[262144]{0}', space=vmem, size = 0x40000, scoped, tag = 'input window, operand 7']
    #allocation17 [shape = 'u8[524288]{0}', space=vmem, size = 0x80000, scoped, tag = 'input window, operand 8']
    #allocation18 [shape = 's32[2]{0}', space=sflag, size = 0x8, scoped, tag = 'scoped memory for tpu_custom_call.1']
    #allocation19 [shape = 'u8[262144]{0}', space=vmem, size = 0x40000, scoped, tag = 'input window, operand 9']
    #allocation20 [shape = 'u8[16384]{0}', space=vmem, size = 0x4000, scoped, tag = 'input window, operand 10']
    #allocation21 [shape = 's32[2]{0}', space=sflag, size = 0x8, scoped, tag = 'scoped memory for tpu_custom_call.1']
    #allocation22 [shape = 'u8[8192]{0}', space=vmem, size = 0x2000, scoped, tag = 'input window, operand 12, single buffered']
    #allocation23 [shape = 'u8[8192]{0}', space=vmem, size = 0x2000, scoped, tag = 'output window, operand 0, single buffered']
    #allocation24 [shape = 'u8[4096]{0}', space=vmem, size = 0x1000, scoped, tag = 'output window, operand 1, single buffered']
    #allocation25 [shape = 's32[1]{0}', space=sflag, size = 0x4, scoped, tag = 'scoped memory for tpu_custom_call.1']
    %20 = vsyncpa [#allocation6], 0
    %21 = vsyncpa [#allocation9], 0
    %22 = vsyncpa [#allocation12], 0
    %s23 = scalar_lea.sflag [#allocation12], 1
    %24 = vsyncpa %s23, 0
    %25 = vsyncpa [#allocation15], 0
    %s26 = scalar_lea.sflag [#allocation15], 1
    %27 = vsyncpa %s26, 0
    %28 = vsyncpa [#allocation18], 0
    %s29 = scalar_lea.sflag [#allocation18], 1
    %30 = vsyncpa %s29, 0
    %31 = vsyncpa [#allocation21], 0
    %s32 = scalar_lea.sflag [#allocation21], 1
    %33 = vsyncpa %s32, 0
    %34 = vsyncpa [#allocation7], 0
    %35 = vsyncpa [#allocation25], 0
    loop: start=0, step=1, limit=8
    $region2: #{tpu_custom_call.1} parent=1 // loop_pre_header
      _
    $region3: #{tpu_custom_call.1} parent=1 // loop_header
      %s37 = sphi 0, %s41
      %p38 = scmp.ge.s32.totalorder %s37, 8
      %s45 = sphi 0, %s45
      %s47 = sphi 0, %s45
      %s48 = sphi 0, %s47
      %s62 = sphi 0, %s48
      %s66 = sphi 0, %s66
      %s68 = sphi 0, %s66
      %s69 = sphi 0, %s68
      %s83 = sphi 0, %s69
      %s87 = sphi 0, %s87
      %s89 = sphi 0, %s87
      %s90 = sphi 0, %s89
      %s104 = sphi 0, %s90
      %s108 = sphi 0, %s108
      %s110 = sphi 0, %s108
      %s111 = sphi 0, %s110
      %s125 = sphi 0, %s111
      %s131 = sphi 0, %s133
      %s134 = sphi 0, %s131
      %s135 = sphi 0, %s134
      %s151 = sphi 0, %s135
      %s157 = sphi 0, %s159
      %s160 = sphi 0, %s157
      %s161 = sphi 0, %s160
      %s177 = sphi 0, %s161
      %s183 = sphi 0, %s185
      %s186 = sphi 0, %s183
      %s187 = sphi 0, %s186
      %s203 = sphi 0, %s187
      %s209 = sphi 0, %s211
      %s212 = sphi 0, %s209
      %s213 = sphi 0, %s212
      %s229 = sphi 0, %s213
      %s235 = sphi 0, %s237
      %s238 = sphi 0, %s235
      %s239 = sphi 0, %s238
      %s255 = sphi 0, %s239
      %s261 = sphi 0, %s263
      %s264 = sphi 0, %s261
      %s265 = sphi 0, %s264
      %s281 = sphi 0, %s265
      %s287 = sphi 0, %s289
      %s290 = sphi 0, %s287
      %s291 = sphi 0, %s290
      %s307 = sphi 0, %s291
      %s311 = sphi 0, %s311
      %s313 = sphi 0, %s311
      %s314 = sphi 0, %s313
      %s328 = sphi 0, %s314
      %s332 = sphi 0, %s332
      %s334 = sphi 0, %s332
      %s335 = sphi 0, %s334
      %s349 = sphi 0, %s335
      %s353 = sphi 0, %s353
      %s355 = sphi 0, %s353
      %s356 = sphi 0, %s355
      %s370 = sphi 0, %s356
    $region4: #{tpu_custom_call.1} parent=1 // loop_header_branch
      %40 = sbr.rel (%p38) target = $region8
    $region5: #{tpu_custom_call.1} parent=1 // loop_body
      %s42 = ssub.s32 %s37, 1
      %s43 = ssub.s32 %s37, 2
      %s44 = sadd.s32 %s37, 1
      %s46 = sadd.s32 %s45, 1
      %p49 = scmp.eq.s32.totalorder %s37, 5
      %p50 = scmp.ne.s32.totalorder %s45, %s47
      %p51 = scmp.eq.s32.totalorder %s37, 0
      %p52 = por %p50, %p51
      %p53 = scmp.ne.s32.totalorder %s45, %s47
      %p54 = scmp.eq.s32.totalorder %s42, 5
      %p55 = por %p53, %p54
      %p56 = scmp.ne.s32.totalorder %s47, %s48
      %p57 = scmp.eq.s32.totalorder %s42, 0
      %p58 = por %p56, %p57
      %p59 = scmp.ne.s32.totalorder %s47, %s48
      %p60 = scmp.eq.s32.totalorder %s43, 5
      %p61 = por %p59, %p60
      %p63 = scmp.ne.s32.totalorder %s48, %s62
      %p64 = scmp.eq.s32.totalorder %s43, 0
      %p65 = por %p63, %p64
      %s67 = sadd.s32 %s66, 1
      %p70 = scmp.eq.s32.totalorder %s37, 5
      %p71 = scmp.ne.s32.totalorder %s66, %s68
      %p72 = scmp.eq.s32.totalorder %s37, 0
      %p73 = por %p71, %p72
      %p74 = scmp.ne.s32.totalorder %s66, %s68
      %p75 = scmp.eq.s32.totalorder %s42, 5
      %p76 = por %p74, %p75
      %p77 = scmp.ne.s32.totalorder %s68, %s69
      %p78 = scmp.eq.s32.totalorder %s42, 0
      %p79 = por %p77, %p78
      %p80 = scmp.ne.s32.totalorder %s68, %s69
      %p81 = scmp.eq.s32.totalorder %s43, 5
      %p82 = por %p80, %p81
      %p84 = scmp.ne.s32.totalorder %s69, %s83
      %p85 = scmp.eq.s32.totalorder %s43, 0
      %p86 = por %p84, %p85
      %s88 = sadd.s32 %s87, 1
      %p91 = scmp.eq.s32.totalorder %s37, 5
      %p92 = scmp.ne.s32.totalorder %s87, %s89
      %p93 = scmp.eq.s32.totalorder %s37, 0
      %p94 = por %p92, %p93
      %p95 = scmp.ne.s32.totalorder %s87, %s89
      %p96 = scmp.eq.s32.totalorder %s42, 5
      %p97 = por %p95, %p96
      %p98 = scmp.ne.s32.totalorder %s89, %s90
      %p99 = scmp.eq.s32.totalorder %s42, 0
      %p100 = por %p98, %p99
      %p101 = scmp.ne.s32.totalorder %s89, %s90
      %p102 = scmp.eq.s32.totalorder %s43, 5
      %p103 = por %p101, %p102
      %p105 = scmp.ne.s32.totalorder %s90, %s104
      %p106 = scmp.eq.s32.totalorder %s43, 0
      %p107 = por %p105, %p106
      %s109 = sadd.s32 %s108, 1
      %p112 = scmp.eq.s32.totalorder %s37, 5
      %p113 = scmp.ne.s32.totalorder %s108, %s110
      %p114 = scmp.eq.s32.totalorder %s37, 0
      %p115 = por %p113, %p114
      %p116 = scmp.ne.s32.totalorder %s108, %s110
      %p117 = scmp.eq.s32.totalorder %s42, 5
      %p118 = por %p116, %p117
      %p119 = scmp.ne.s32.totalorder %s110, %s111
      %p120 = scmp.eq.s32.totalorder %s42, 0
      %p121 = por %p119, %p120
      %p122 = scmp.ne.s32.totalorder %s110, %s111
      %p123 = scmp.eq.s32.totalorder %s43, 5
      %p124 = por %p122, %p123
      %p126 = scmp.ne.s32.totalorder %s111, %s125
      %p127 = scmp.eq.s32.totalorder %s43, 0
      %p128 = por %p126, %p127
      %s129 = ssub.s32 %s37, %s44
      %p130 = scmp.eq.s32.totalorder %s129, 0
      %s132 = sadd.s32 %s131, 1
      %s133 = scalar_select %p130, %s131, %s132
      %p136 = pneg %p130
      %p137 = scmp.eq.s32.totalorder %s37, 5
      %p138 = por %p136, %p137
      %p139 = scmp.ne.s32.totalorder %s131, %s134
      %p140 = scmp.eq.s32.totalorder %s37, 0
      %p141 = por %p139, %p140
      %p142 = scmp.ne.s32.totalorder %s131, %s134
      %p143 = scmp.eq.s32.totalorder %s42, 5
      %p144 = por %p142, %p143
      %p145 = scmp.ne.s32.totalorder %s134, %s135
      %p146 = scmp.eq.s32.totalorder %s42, 0
      %p147 = por %p145, %p146
      %p148 = scmp.ne.s32.totalorder %s134, %s135
      %p149 = scmp.eq.s32.totalorder %s43, 5
      %p150 = por %p148, %p149
      %p152 = scmp.ne.s32.totalorder %s135, %s151
      %p153 = scmp.eq.s32.totalorder %s43, 0
      %p154 = por %p152, %p153
      %s155 = ssub.s32 %s37, %s44
      %p156 = scmp.eq.s32.totalorder %s155, 0
      %s158 = sadd.s32 %s157, 1
      %s159 = scalar_select %p156, %s157, %s158
      %p162 = pneg %p156
      %p163 = scmp.eq.s32.totalorder %s37, 5
      %p164 = por %p162, %p163
      %p165 = scmp.ne.s32.totalorder %s157, %s160
      %p166 = scmp.eq.s32.totalorder %s37, 0
      %p167 = por %p165, %p166
      %p168 = scmp.ne.s32.totalorder %s157, %s160
      %p169 = scmp.eq.s32.totalorder %s42, 5
      %p170 = por %p168, %p169
      %p171 = scmp.ne.s32.totalorder %s160, %s161
      %p172 = scmp.eq.s32.totalorder %s42, 0
      %p173 = por %p171, %p172
      %p174 = scmp.ne.s32.totalorder %s160, %s161
      %p175 = scmp.eq.s32.totalorder %s43, 5
      %p176 = por %p174, %p175
      %p178 = scmp.ne.s32.totalorder %s161, %s177
      %p179 = scmp.eq.s32.totalorder %s43, 0
      %p180 = por %p178, %p179
      %s181 = ssub.s32 %s37, %s44
      %p182 = scmp.eq.s32.totalorder %s181, 0
      %s184 = sadd.s32 %s183, 1
      %s185 = scalar_select %p182, %s183, %s184
      %p188 = pneg %p182
      %p189 = scmp.eq.s32.totalorder %s37, 5
      %p190 = por %p188, %p189
      %p191 = scmp.ne.s32.totalorder %s183, %s186
      %p192 = scmp.eq.s32.totalorder %s37, 0
      %p193 = por %p191, %p192
      %p194 = scmp.ne.s32.totalorder %s183, %s186
      %p195 = scmp.eq.s32.totalorder %s42, 5
      %p196 = por %p194, %p195
      %p197 = scmp.ne.s32.totalorder %s186, %s187
      %p198 = scmp.eq.s32.totalorder %s42, 0
      %p199 = por %p197, %p198
      %p200 = scmp.ne.s32.totalorder %s186, %s187
      %p201 = scmp.eq.s32.totalorder %s43, 5
      %p202 = por %p200, %p201
      %p204 = scmp.ne.s32.totalorder %s187, %s203
      %p205 = scmp.eq.s32.totalorder %s43, 0
      %p206 = por %p204, %p205
      %s207 = ssub.s32 %s37, %s44
      %p208 = scmp.eq.s32.totalorder %s207, 0
      %s210 = sadd.s32 %s209, 1
      %s211 = scalar_select %p208, %s209, %s210
      %p214 = pneg %p208
      %p215 = scmp.eq.s32.totalorder %s37, 5
      %p216 = por %p214, %p215
      %p217 = scmp.ne.s32.totalorder %s209, %s212
      %p218 = scmp.eq.s32.totalorder %s37, 0
      %p219 = por %p217, %p218
      %p220 = scmp.ne.s32.totalorder %s209, %s212
      %p221 = scmp.eq.s32.totalorder %s42, 5
      %p222 = por %p220, %p221
      %p223 = scmp.ne.s32.totalorder %s212, %s213
      %p224 = scmp.eq.s32.totalorder %s42, 0
      %p225 = por %p223, %p224
      %p226 = scmp.ne.s32.totalorder %s212, %s213
      %p227 = scmp.eq.s32.totalorder %s43, 5
      %p228 = por %p226, %p227
      %p230 = scmp.ne.s32.totalorder %s213, %s229
      %p231 = scmp.eq.s32.totalorder %s43, 0
      %p232 = por %p230, %p231
      %s233 = ssub.s32 %s37, %s44
      %p234 = scmp.eq.s32.totalorder %s233, 0
      %s236 = sadd.s32 %s235, 1
      %s237 = scalar_select %p234, %s235, %s236
      %p240 = pneg %p234
      %p241 = scmp.eq.s32.totalorder %s37, 5
      %p242 = por %p240, %p241
      %p243 = scmp.ne.s32.totalorder %s235, %s238
      %p244 = scmp.eq.s32.totalorder %s37, 0
      %p245 = por %p243, %p244
      %p246 = scmp.ne.s32.totalorder %s235, %s238
      %p247 = scmp.eq.s32.totalorder %s42, 5
      %p248 = por %p246, %p247
      %p249 = scmp.ne.s32.totalorder %s238, %s239
      %p250 = scmp.eq.s32.totalorder %s42, 0
      %p251 = por %p249, %p250
      %p252 = scmp.ne.s32.totalorder %s238, %s239
      %p253 = scmp.eq.s32.totalorder %s43, 5
      %p254 = por %p252, %p253
      %p256 = scmp.ne.s32.totalorder %s239, %s255
      %p257 = scmp.eq.s32.totalorder %s43, 0
      %p258 = por %p256, %p257
      %s259 = ssub.s32 %s37, %s44
      %p260 = scmp.eq.s32.totalorder %s259, 0
      %s262 = sadd.s32 %s261, 1
      %s263 = scalar_select %p260, %s261, %s262
      %p266 = pneg %p260
      %p267 = scmp.eq.s32.totalorder %s37, 5
      %p268 = por %p266, %p267
      %p269 = scmp.ne.s32.totalorder %s261, %s264
      %p270 = scmp.eq.s32.totalorder %s37, 0
      %p271 = por %p269, %p270
      %p272 = scmp.ne.s32.totalorder %s261, %s264
      %p273 = scmp.eq.s32.totalorder %s42, 5
      %p274 = por %p272, %p273
      %p275 = scmp.ne.s32.totalorder %s264, %s265
      %p276 = scmp.eq.s32.totalorder %s42, 0
      %p277 = por %p275, %p276
      %p278 = scmp.ne.s32.totalorder %s264, %s265
      %p279 = scmp.eq.s32.totalorder %s43, 5
      %p280 = por %p278, %p279
      %p282 = scmp.ne.s32.totalorder %s265, %s281
      %p283 = scmp.eq.s32.totalorder %s43, 0
      %p284 = por %p282, %p283
      %s285 = ssub.s32 %s37, %s44
      %p286 = scmp.eq.s32.totalorder %s285, 0
      %s288 = sadd.s32 %s287, 1
      %s289 = scalar_select %p286, %s287, %s288
      %p292 = pneg %p286
      %p293 = scmp.eq.s32.totalorder %s37, 5
      %p294 = por %p292, %p293
      %p295 = scmp.ne.s32.totalorder %s287, %s290
      %p296 = scmp.eq.s32.totalorder %s37, 0
      %p297 = por %p295, %p296
      %p298 = scmp.ne.s32.totalorder %s287, %s290
      %p299 = scmp.eq.s32.totalorder %s42, 5
      %p300 = por %p298, %p299
      %p301 = scmp.ne.s32.totalorder %s290, %s291
      %p302 = scmp.eq.s32.totalorder %s42, 0
      %p303 = por %p301, %p302
      %p304 = scmp.ne.s32.totalorder %s290, %s291
      %p305 = scmp.eq.s32.totalorder %s43, 5
      %p306 = por %p304, %p305
      %p308 = scmp.ne.s32.totalorder %s291, %s307
      %p309 = scmp.eq.s32.totalorder %s43, 0
      %p310 = por %p308, %p309
      %s312 = sadd.s32 %s311, 1
      %p315 = scmp.eq.s32.totalorder %s37, 5
      %p316 = scmp.ne.s32.totalorder %s311, %s313
      %p317 = scmp.eq.s32.totalorder %s37, 0
      %p318 = por %p316, %p317
      %p319 = scmp.ne.s32.totalorder %s311, %s313
      %p320 = scmp.eq.s32.totalorder %s42, 5
      %p321 = por %p319, %p320
      %p322 = scmp.ne.s32.totalorder %s313, %s314
      %p323 = scmp.eq.s32.totalorder %s42, 0
      %p324 = por %p322, %p323
      %p325 = scmp.ne.s32.totalorder %s313, %s314
      %p326 = scmp.eq.s32.totalorder %s43, 5
      %p327 = por %p325, %p326
      %p329 = scmp.ne.s32.totalorder %s314, %s328
      %p330 = scmp.eq.s32.totalorder %s43, 0
      %p331 = por %p329, %p330
      %s333 = sadd.s32 %s332, 1
      %p336 = scmp.eq.s32.totalorder %s37, 5
      %p337 = scmp.ne.s32.totalorder %s332, %s334
      %p338 = scmp.eq.s32.totalorder %s37, 0
      %p339 = por %p337, %p338
      %p340 = scmp.ne.s32.totalorder %s332, %s334
      %p341 = scmp.eq.s32.totalorder %s42, 5
      %p342 = por %p340, %p341
      %p343 = scmp.ne.s32.totalorder %s334, %s335
      %p344 = scmp.eq.s32.totalorder %s42, 0
      %p345 = por %p343, %p344
      %p346 = scmp.ne.s32.totalorder %s334, %s335
      %p347 = scmp.eq.s32.totalorder %s43, 5
      %p348 = por %p346, %p347
      %p350 = scmp.ne.s32.totalorder %s335, %s349
      %p351 = scmp.eq.s32.totalorder %s43, 0
      %p352 = por %p350, %p351
      %s354 = sadd.s32 %s353, 1
      %p357 = scmp.eq.s32.totalorder %s37, 5
      %p358 = scmp.ne.s32.totalorder %s353, %s355
      %p359 = scmp.eq.s32.totalorder %s37, 0
      %p360 = por %p358, %p359
      %p361 = scmp.ne.s32.totalorder %s353, %s355
      %p362 = scmp.eq.s32.totalorder %s42, 5
      %p363 = por %p361, %p362
      %p364 = scmp.ne.s32.totalorder %s355, %s356
      %p365 = scmp.eq.s32.totalorder %s42, 0
      %p366 = por %p364, %p365
      %p367 = scmp.ne.s32.totalorder %s355, %s356
      %p368 = scmp.eq.s32.totalorder %s43, 5
      %p369 = por %p367, %p368
      %p371 = scmp.ne.s32.totalorder %s356, %s370
      %p372 = scmp.eq.s32.totalorder %s43, 0
      %p373 = por %p371, %p372
      %p374 = scmp.le.s32.totalorder 1, %s37
      %p375 = scmp.lt.s32.totalorder %s37, 7
      %p376 = pnand %p374, %p375
      %p377 = pneg %p376
      // Predicated region
      $region9: #{tpu_custom_call.1} parent=5 // pred_check
        _
      $region10: #{tpu_custom_call.1} parent=5 // pred_check_branch
        %379 = sbr.rel (%p376) target = $region12
      $region11: #{tpu_custom_call.1} parent=5 // pred_region
        %s380 = ssub.s32 %s37, 1
        // Predicated region
        $region13: #{tpu_custom_call.1} parent=11 // pred_check
          %p381 = pneg %p58
        $region14: #{tpu_custom_call.1} parent=11 // pred_check_branch
          %383 = sbr.rel (%p381) target = $region16
        $region15: #{tpu_custom_call.1} parent=11 // pred_region
          %s385 = ssub.s32 256, 256
          %386 = vsyncadd [#allocation6], %s385
          %s388 = sshll.u32 [#allocation5], 4
          %s389 = int_to_ptr.vmem [resolvable:$true] %s388
          %391 = dma.hbm_to_vmem [thread:$0]  %s0, 256, %s389, [#allocation6]
        $region16: #{tpu_custom_call.1} parent=11 // pred_fallthru
          _
        // Predicated region
        $region17: #{tpu_custom_call.1} parent=11 // pred_check
          %p392 = pneg %p79
        $region18: #{tpu_custom_call.1} parent=11 // pred_check_branch
          %394 = sbr.rel (%p392) target = $region20
        $region19: #{tpu_custom_call.1} parent=11 // pred_region
          %s396 = ssub.s32 256, 256
          %397 = vsyncadd [#allocation9], %s396
          %s398 = sshll.u32 [#allocation8], 4
          %s399 = int_to_ptr.vmem [resolvable:$true] %s398
          %404 = dma.hbm_to_vmem [thread:$0]  %s1, 256, %s399, [#allocation9], 128, 128, 8
        $region20: #{tpu_custom_call.1} parent=11 // pred_fallthru
          _
        // Predicated region
        $region21: #{tpu_custom_call.1} parent=11 // pred_check
          %p405 = pneg %p100
        $region22: #{tpu_custom_call.1} parent=11 // pred_check_branch
          %407 = sbr.rel (%p405) target = $region24
        $region23: #{tpu_custom_call.1} parent=11 // pred_region
          _
        $region24: #{tpu_custom_call.1} parent=11 // pred_fallthru
          _
        // Predicated region
        $region25: #{tpu_custom_call.1} parent=11 // pred_check
          %p408 = pneg %p121
        $region26: #{tpu_custom_call.1} parent=11 // pred_check_branch
          %410 = sbr.rel (%p408) target = $region28
        $region27: #{tpu_custom_call.1} parent=11 // pred_region
          %s412 = ssub.s32 128, 128
          %413 = vsyncadd [#allocation9], %s412
          %s415 = sshll.u32 [#allocation10], 4
          %s416 = int_to_ptr.vmem [resolvable:$true] %s415
          %418 = dma.hbm_to_vmem [thread:$0]  %s3, 128, %s416, [#allocation9]
        $region28: #{tpu_custom_call.1} parent=11 // pred_fallthru
          _
        // Predicated region
        $region29: #{tpu_custom_call.1} parent=11 // pred_check
          %p419 = pneg %p324
        $region30: #{tpu_custom_call.1} parent=11 // pred_check_branch
          %421 = sbr.rel (%p419) target = $region32
        $region31: #{tpu_custom_call.1} parent=11 // pred_region
          %s423 = ssub.s32 256, 256
          %424 = vsyncadd [#allocation21], %s423
          %s426 = sshll.u32 [#allocation22], 4
          %s427 = int_to_ptr.vmem [resolvable:$true] %s426
          %429 = dma.hbm_to_vmem [thread:$0]  %s12, 256, %s427, [#allocation21]
        $region32: #{tpu_custom_call.1} parent=11 // pred_fallthru
          _
      $region12: #{tpu_custom_call.1} parent=5 // pred_fallthru
        _
      %p430 = scmp.lt.s32.totalorder %s37, 6
      // Predicated region
      $region33: #{tpu_custom_call.1} parent=5 // pred_check
        %p431 = pneg %p430
      $region34: #{tpu_custom_call.1} parent=5 // pred_check_branch
        %433 = sbr.rel (%p431) target = $region36
      $region35: #{tpu_custom_call.1} parent=5 // pred_region
        // Predicated region
        $region37: #{tpu_custom_call.1} parent=35 // pred_check
          %p434 = pneg %p141
        $region38: #{tpu_custom_call.1} parent=35 // pred_check_branch
          %436 = sbr.rel (%p434) target = $region40
        $region39: #{tpu_custom_call.1} parent=35 // pred_region
          %s437 = sand.u32 %s37, 1
          %s438 = scalar_lea.sflag [#allocation12], %s437
          %s439 = sand.u32 %s131, 1
          %s440 = smul.addr %s439, 256
          %s441 = scalar_lea.vmem [#allocation11], %s440
          %s443 = ssub.s32 4096, 4096
          %444 = vsyncadd %s438, %s443
          %s445 = smul.addr %s37, 64
          %s446 = smul.addr %s445, 64
          %s447 = scalar_lea.hbm %s4, %s446
          %s448 = sshll.u32 %s441, 4
          %s449 = int_to_ptr.vmem [resolvable:$true] %s448
          %454 = dma.hbm_to_vmem [thread:$0]  %s447, 4096, %s449, %s438, 128, 128, 8
        $region40: #{tpu_custom_call.1} parent=35 // pred_fallthru
          _
        // Predicated region
        $region41: #{tpu_custom_call.1} parent=35 // pred_check
          %p455 = pneg %p167
        $region42: #{tpu_custom_call.1} parent=35 // pred_check_branch
          %457 = sbr.rel (%p455) target = $region44
        $region43: #{tpu_custom_call.1} parent=35 // pred_region
          %s458 = sand.u32 %s37, 1
          %s459 = scalar_lea.sflag [#allocation12], %s458
          %s460 = sand.u32 %s157, 1
          %s461 = smul.addr %s460, 16
          %s462 = scalar_lea.vmem [#allocation13], %s461
          %s464 = ssub.s32 256, 256
          %465 = vsyncadd %s459, %s464
          %s466 = smul.addr %s37, 4
          %s467 = smul.addr %s466, 64
          %s468 = scalar_lea.hbm %s5, %s467
          %s469 = sshll.u32 %s462, 4
          %s470 = int_to_ptr.vmem [resolvable:$true] %s469
          %475 = dma.hbm_to_vmem [thread:$0]  %s468, 256, %s470, %s459, 128, 128, 8
        $region44: #{tpu_custom_call.1} parent=35 // pred_fallthru
          _
        // Predicated region
        $region45: #{tpu_custom_call.1} parent=35 // pred_check
          %p476 = pneg %p193
        $region46: #{tpu_custom_call.1} parent=35 // pred_check_branch
          %478 = sbr.rel (%p476) target = $region48
        $region47: #{tpu_custom_call.1} parent=35 // pred_region
          %s479 = sand.u32 %s37, 1
          %s480 = scalar_lea.sflag [#allocation15], %s479
          %s481 = sand.u32 %s183, 1
          %s482 = smul.addr %s481, 512
          %s483 = scalar_lea.vmem [#allocation14], %s482
          %s485 = ssub.s32 8192, 8192
          %486 = vsyncadd %s480, %s485
          %s487 = smul.addr %s37, 128
          %s488 = smul.addr %s487, 64
          %s489 = scalar_lea.hbm %s6, %s488
          %s490 = sshll.u32 %s483, 4
          %s491 = int_to_ptr.vmem [resolvable:$true] %s490
          %496 = dma.hbm_to_vmem [thread:$0]  %s489, 8192, %s491, %s480, 128, 128, 8
        $region48: #{tpu_custom_call.1} parent=35 // pred_fallthru
          _
        // Predicated region
        $region49: #{tpu_custom_call.1} parent=35 // pred_check
          %p497 = pneg %p219
        $region50: #{tpu_custom_call.1} parent=35 // pred_check_branch
          %499 = sbr.rel (%p497) target = $region52
        $region51: #{tpu_custom_call.1} parent=35 // pred_region
          %s500 = sand.u32 %s37, 1
          %s501 = scalar_lea.sflag [#allocation15], %s500
          %s502 = sand.u32 %s209, 1
          %s503 = smul.addr %s502, 256
          %s504 = scalar_lea.vmem [#allocation16], %s503
          %s506 = ssub.s32 4096, 4096
          %507 = vsyncadd %s501, %s506
          %s508 = smul.addr %s37, 64
          %s509 = smul.addr %s508, 64
          %s510 = scalar_lea.hbm %s7, %s509
          %s511 = sshll.u32 %s504, 4
          %s512 = int_to_ptr.vmem [resolvable:$true] %s511
          %517 = dma.hbm_to_vmem [thread:$0]  %s510, 4096, %s512, %s501, 128, 128, 8
        $region52: #{tpu_custom_call.1} parent=35 // pred_fallthru
          _
        // Predicated region
        $region53: #{tpu_custom_call.1} parent=35 // pred_check
          %p518 = pneg %p245
        $region54: #{tpu_custom_call.1} parent=35 // pred_check_branch
          %520 = sbr.rel (%p518) target = $region56
        $region55: #{tpu_custom_call.1} parent=35 // pred_region
          %s521 = sand.u32 %s37, 1
          %s522 = scalar_lea.sflag [#allocation18], %s521
          %s523 = sand.u32 %s235, 1
          %s524 = smul.addr %s523, 512
          %s525 = scalar_lea.vmem [#allocation17], %s524
          %s527 = ssub.s32 8192, 8192
          %528 = vsyncadd %s522, %s527
          %s529 = smul.addr %s37, 128
          %s530 = smul.addr %s529, 64
          %s531 = scalar_lea.hbm %s8, %s530
          %s532 = sshll.u32 %s525, 4
          %s533 = int_to_ptr.vmem [resolvable:$true] %s532
          %538 = dma.hbm_to_vmem [thread:$0]  %s531, 8192, %s533, %s522, 128, 128, 8
        $region56: #{tpu_custom_call.1} parent=35 // pred_fallthru
          _
        // Predicated region
        $region57: #{tpu_custom_call.1} parent=35 // pred_check
          %p539 = pneg %p271
        $region58: #{tpu_custom_call.1} parent=35 // pred_check_branch
          %541 = sbr.rel (%p539) target = $region60
        $region59: #{tpu_custom_call.1} parent=35 // pred_region
          %s542 = sand.u32 %s37, 1
          %s543 = scalar_lea.sflag [#allocation18], %s542
          %s544 = sand.u32 %s261, 1
          %s545 = smul.addr %s544, 256
          %s546 = scalar_lea.vmem [#allocation19], %s545
          %s548 = ssub.s32 4096, 4096
          %549 = vsyncadd %s543, %s548
          %s550 = smul.addr %s37, 64
          %s551 = smul.addr %s550, 64
          %s552 = scalar_lea.hbm %s9, %s551
          %s553 = sshll.u32 %s546, 4
          %s554 = int_to_ptr.vmem [resolvable:$true] %s553
          %559 = dma.hbm_to_vmem [thread:$0]  %s552, 4096, %s554, %s543, 128, 128, 8
        $region60: #{tpu_custom_call.1} parent=35 // pred_fallthru
          _
        // Predicated region
        $region61: #{tpu_custom_call.1} parent=35 // pred_check
          %p560 = pneg %p297
        $region62: #{tpu_custom_call.1} parent=35 // pred_check_branch
          %562 = sbr.rel (%p560) target = $region64
        $region63: #{tpu_custom_call.1} parent=35 // pred_region
          %s563 = sand.u32 %s37, 1
          %s564 = scalar_lea.sflag [#allocation21], %s563
          %s565 = sand.u32 %s287, 1
          %s566 = smul.addr %s565, 16
          %s567 = scalar_lea.vmem [#allocation20], %s566
          %s569 = ssub.s32 256, 256
          %570 = vsyncadd %s564, %s569
          %s571 = smul.addr %s37, 2
          %s572 = smul.addr %s571, 128
          %s573 = scalar_lea.hbm %s10, %s572
          %s575 = sshll.u32 %s567, 4
          %s576 = int_to_ptr.vmem [resolvable:$true] %s575
          %578 = dma.hbm_to_vmem [thread:$0]  %s573, 256, %s576, %s564
        $region64: #{tpu_custom_call.1} parent=35 // pred_fallthru
          _
      $region36: #{tpu_custom_call.1} parent=5 // pred_fallthru
        _
      %p579 = scmp.le.s32.totalorder 1, %s37
      %p580 = scmp.lt.s32.totalorder %s37, 7
      %p581 = pnand %p579, %p580
      %p582 = pneg %p581
      // Predicated region
      $region65: #{tpu_custom_call.1} parent=5 // pred_check
        _
      $region66: #{tpu_custom_call.1} parent=5 // pred_check_branch
        %584 = sbr.rel (%p581) target = $region68
      $region67: #{tpu_custom_call.1} parent=5 // pred_region
        %s585 = ssub.s32 %s37, 1
        // Predicated region
        $region69: #{tpu_custom_call.1} parent=67 // pred_check
          %p586 = pneg %p58
        $region70: #{tpu_custom_call.1} parent=67 // pred_check_branch
          %588 = sbr.rel (%p586) target = $region72
        $region71: #{tpu_custom_call.1} parent=67 // pred_region
          %589 = dma.done [#allocation6], 256
        $region72: #{tpu_custom_call.1} parent=67 // pred_fallthru
          _
        // Predicated region
        $region73: #{tpu_custom_call.1} parent=67 // pred_check
          %p590 = pneg %p79
        $region74: #{tpu_custom_call.1} parent=67 // pred_check_branch
          %592 = sbr.rel (%p590) target = $region76
        $region75: #{tpu_custom_call.1} parent=67 // pred_region
          %593 = dma.done [#allocation9], 256
        $region76: #{tpu_custom_call.1} parent=67 // pred_fallthru
          _
        // Predicated region
        $region77: #{tpu_custom_call.1} parent=67 // pred_check
          %p594 = pneg %p121
        $region78: #{tpu_custom_call.1} parent=67 // pred_check_branch
          %596 = sbr.rel (%p594) target = $region80
        $region79: #{tpu_custom_call.1} parent=67 // pred_region
          %597 = dma.done [#allocation9], 128
        $region80: #{tpu_custom_call.1} parent=67 // pred_fallthru
          _
        %s598 = sand.u32 %s42, 1
        %s599 = scalar_lea.sflag [#allocation12], %s598
        %s600 = sand.u32 %s134, 1
        %s601 = smul.addr %s600, 256
        %s602 = scalar_lea.vmem [#allocation11], %s601
        // Predicated region
        $region81: #{tpu_custom_call.1} parent=67 // pred_check
          %p603 = pneg %p147
        $region82: #{tpu_custom_call.1} parent=67 // pred_check_branch
          %605 = sbr.rel (%p603) target = $region84
        $region83: #{tpu_custom_call.1} parent=67 // pred_region
          %606 = dma.done %s599, 4096
        $region84: #{tpu_custom_call.1} parent=67 // pred_fallthru
          _
        %s607 = sand.u32 %s42, 1
        %s608 = scalar_lea.sflag [#allocation12], %s607
        %s609 = sand.u32 %s160, 1
        %s610 = smul.addr %s609, 16
        %s611 = scalar_lea.vmem [#allocation13], %s610
        // Predicated region
        $region85: #{tpu_custom_call.1} parent=67 // pred_check
          %p612 = pneg %p173
        $region86: #{tpu_custom_call.1} parent=67 // pred_check_branch
          %614 = sbr.rel (%p612) target = $region88
        $region87: #{tpu_custom_call.1} parent=67 // pred_region
          %615 = dma.done %s608, 256
        $region88: #{tpu_custom_call.1} parent=67 // pred_fallthru
          _
        %s616 = sand.u32 %s42, 1
        %s617 = scalar_lea.sflag [#allocation15], %s616
        %s618 = sand.u32 %s186, 1
        %s619 = smul.addr %s618, 512
        %s620 = scalar_lea.vmem [#allocation14], %s619
        // Predicated region
        $region89: #{tpu_custom_call.1} parent=67 // pred_check
          %p621 = pneg %p199
        $region90: #{tpu_custom_call.1} parent=67 // pred_check_branch
          %623 = sbr.rel (%p621) target = $region92
        $region91: #{tpu_custom_call.1} parent=67 // pred_region
          %624 = dma.done %s617, 8192
        $region92: #{tpu_custom_call.1} parent=67 // pred_fallthru
          _
        %s625 = sand.u32 %s42, 1
        %s626 = scalar_lea.sflag [#allocation15], %s625
        %s627 = sand.u32 %s212, 1
        %s628 = smul.addr %s627, 256
        %s629 = scalar_lea.vmem [#allocation16], %s628
        // Predicated region
        $region93: #{tpu_custom_call.1} parent=67 // pred_check
          %p630 = pneg %p225
        $region94: #{tpu_custom_call.1} parent=67 // pred_check_branch
          %632 = sbr.rel (%p630) target = $region96
        $region95: #{tpu_custom_call.1} parent=67 // pred_region
          %633 = dma.done %s626, 4096
        $region96: #{tpu_custom_call.1} parent=67 // pred_fallthru
          _
        %s634 = sand.u32 %s42, 1
        %s635 = scalar_lea.sflag [#allocation18], %s634
        %s636 = sand.u32 %s238, 1
        %s637 = smul.addr %s636, 512
        %s638 = scalar_lea.vmem [#allocation17], %s637
        // Predicated region
        $region97: #{tpu_custom_call.1} parent=67 // pred_check
          %p639 = pneg %p251
        $region98: #{tpu_custom_call.1} parent=67 // pred_check_branch
          %641 = sbr.rel (%p639) target = $region100
        $region99: #{tpu_custom_call.1} parent=67 // pred_region
          %642 = dma.done %s635, 8192
        $region100: #{tpu_custom_call.1} parent=67 // pred_fallthru
          _
        %s643 = sand.u32 %s42, 1
        %s644 = scalar_lea.sflag [#allocation18], %s643
        %s645 = sand.u32 %s264, 1
        %s646 = smul.addr %s645, 256
        %s647 = scalar_lea.vmem [#allocation19], %s646
        // Predicated region
        $region101: #{tpu_custom_call.1} parent=67 // pred_check
          %p648 = pneg %p277
        $region102: #{tpu_custom_call.1} parent=67 // pred_check_branch
          %650 = sbr.rel (%p648) target = $region104
        $region103: #{tpu_custom_call.1} parent=67 // pred_region
          %651 = dma.done %s644, 4096
        $region104: #{tpu_custom_call.1} parent=67 // pred_fallthru
          _
        %s652 = sand.u32 %s42, 1
        %s653 = scalar_lea.sflag [#allocation21], %s652
        %s654 = sand.u32 %s290, 1
        %s655 = smul.addr %s654, 16
        %s656 = scalar_lea.vmem [#allocation20], %s655
        // Predicated region
        $region105: #{tpu_custom_call.1} parent=67 // pred_check
          %p657 = pneg %p303
        $region106: #{tpu_custom_call.1} parent=67 // pred_check_branch
          %659 = sbr.rel (%p657) target = $region108
        $region107: #{tpu_custom_call.1} parent=67 // pred_region
          %660 = dma.done %s653, 256
        $region108: #{tpu_custom_call.1} parent=67 // pred_fallthru
          _
        // Predicated region
        $region109: #{tpu_custom_call.1} parent=67 // pred_check
          %p661 = pneg %p324
        $region110: #{tpu_custom_call.1} parent=67 // pred_check_branch
          %663 = sbr.rel (%p661) target = $region112
        $region111: #{tpu_custom_call.1} parent=67 // pred_region
          %664 = dma.done [#allocation21], 256
        $region112: #{tpu_custom_call.1} parent=67 // pred_fallthru
          _
        %p665 = pneg %p58
        %p666 = pneg %p55
        %p667 = pneg %p79
        %p668 = pneg %p76
        %p669 = pneg %p100
        %p670 = pneg %p97
        %p671 = pneg %p121
        %p672 = pneg %p118
        %s673 = sand.u32 %s42, 1
        %s674 = scalar_lea.sflag [#allocation12], %s673
        %s675 = sand.u32 %s134, 1
        %s676 = smul.addr %s675, 256
        %s677 = scalar_lea.vmem [#allocation11], %s676
        %p678 = pneg %p147
        %p679 = pneg %p144
        %s680 = sand.u32 %s42, 1
        %s681 = scalar_lea.sflag [#allocation12], %s680
        %s682 = sand.u32 %s160, 1
        %s683 = smul.addr %s682, 16
        %s684 = scalar_lea.vmem [#allocation13], %s683
        %p685 = pneg %p173
        %p686 = pneg %p170
        %s687 = sand.u32 %s42, 1
        %s688 = scalar_lea.sflag [#allocation15], %s687
        %s689 = sand.u32 %s186, 1
        %s690 = smul.addr %s689, 512
        %s691 = scalar_lea.vmem [#allocation14], %s690
        %p692 = pneg %p199
        %p693 = pneg %p196
        %s694 = sand.u32 %s42, 1
        %s695 = scalar_lea.sflag [#allocation15], %s694
        %s696 = sand.u32 %s212, 1
        %s697 = smul.addr %s696, 256
        %s698 = scalar_lea.vmem [#allocation16], %s697
        %p699 = pneg %p225
        %p700 = pneg %p222
        %s701 = sand.u32 %s42, 1
        %s702 = scalar_lea.sflag [#allocation18], %s701
        %s703 = sand.u32 %s238, 1
        %s704 = smul.addr %s703, 512
        %s705 = scalar_lea.vmem [#allocation17], %s704
        %p706 = pneg %p251
        %p707 = pneg %p248
        %s708 = sand.u32 %s42, 1
        %s709 = scalar_lea.sflag [#allocation18], %s708
        %s710 = sand.u32 %s264, 1
        %s711 = smul.addr %s710, 256
        %s712 = scalar_lea.vmem [#allocation19], %s711
        %p713 = pneg %p277
        %p714 = pneg %p274
        %s715 = sand.u32 %s42, 1
        %s716 = scalar_lea.sflag [#allocation21], %s715
        %s717 = sand.u32 %s290, 1
        %s718 = smul.addr %s717, 16
        %s719 = scalar_lea.vmem [#allocation20], %s718
        %p720 = pneg %p303
        %p721 = pneg %p300
        %p722 = pneg %p324
        %p723 = pneg %p321
        %p724 = pneg %p345
        %p725 = pneg %p342
        %p726 = pneg %p366
        %p727 = pneg %p363
        %p729 = scmp.eq.s32.totalorder %s42, 0
        // Predicated region
        $region113: #{tpu_custom_call.1} parent=67 // pred_check
          %p730 = pneg %p729
        $region114: #{tpu_custom_call.1} parent=67 // pred_check_branch
          %732 = sbr.rel (%p730) target = $region116
        $region115: #{tpu_custom_call.1} parent=67 // pred_region
          %v733 = vld [vmem:[#allocation5] sm:$0xff]
          %v734 = vld [vmem:[#allocation5 + $0x8] sm:$0xff]
          %735 = vst [vmem:[#allocation2] sm:$0xff] %v733
          %736 = vst [vmem:[#allocation2 + $0x8] sm:$0xff] %v734
          // Predicated region
          $region117: #{tpu_custom_call.1} parent=115 // pred_check
            _
          $region118: #{tpu_custom_call.1} parent=115 // pred_check_branch
            %738 = sbr.rel target = $region120
          $region119: #{tpu_custom_call.1} parent=115 // pred_region
            %739 = sst [smem:[#allocation28]] [#allocation27]
            %740 = sst [smem:[#allocation29]] [#allocation26]
          $region120: #{tpu_custom_call.1} parent=115 // pred_fallthru
            _
          %742 = shalt.err (0)
          %s744 = sshll.u32 [#allocation3], 4
          %s745 = int_to_ptr.vmem [resolvable:$true] %s744
          %747 = dma.hbm_to_vmem [thread:$0]  %s11, 34816, %s745, [#allocation4]
        $region116: #{tpu_custom_call.1} parent=67 // pred_fallthru
          _
        %v748 = vld [vmem:[#allocation2] sm:$0xff]
        %v749 = vld [vmem:[#allocation2 + $0x8] sm:$0xff]
        %v750 = vld [vmem:[#allocation8] sm:$0xff]
        %v751 = vld [vmem:[#allocation8 + $0x8] sm:$0xff]
        %v752 = vld [vmem:[%s656] sm:$0xff]
        %v753 = vld [vmem:[%s656 + $0x8] sm:$0xff]
        %v754 = vld [vmem:[%s602] sm:$0xff]
        %v755 = vld [vmem:[%s602 + $0x8] sm:$0xff]
        %v756 = vld [vmem:[%s602 + $0x10] sm:$0xff]
        %v757 = vld [vmem:[%s602 + $0x18] sm:$0xff]
        %v758 = vld [vmem:[%s602 + $0x20] sm:$0xff]
        %v759 = vld [vmem:[%s602 + $0x28] sm:$0xff]
        %v760 = vld [vmem:[%s602 + $0x30] sm:$0xff]
        %v761 = vld [vmem:[%s602 + $0x38] sm:$0xff]
        %v762 = vld [vmem:[%s602 + $0x40] sm:$0xff]
        %v763 = vld [vmem:[%s602 + $0x48] sm:$0xff]
        %v764 = vld [vmem:[%s602 + $0x50] sm:$0xff]
        %v765 = vld [vmem:[%s602 + $0x58] sm:$0xff]
        %v766 = vld [vmem:[%s602 + $0x60] sm:$0xff]
        %v767 = vld [vmem:[%s602 + $0x68] sm:$0xff]
        %v768 = vld [vmem:[%s602 + $0x70] sm:$0xff]
        %v769 = vld [vmem:[%s602 + $0x78] sm:$0xff]
        %v770 = vld [vmem:[%s602 + $0x80] sm:$0xff]
        %v771 = vld [vmem:[%s602 + $0x88] sm:$0xff]
        %v772 = vld [vmem:[%s602 + $0x90] sm:$0xff]
        %v773 = vld [vmem:[%s602 + $0x98] sm:$0xff]
        %v774 = vld [vmem:[%s602 + $0xa0] sm:$0xff]
        %v775 = vld [vmem:[%s602 + $0xa8] sm:$0xff]
        %v776 = vld [vmem:[%s602 + $0xb0] sm:$0xff]
        %v777 = vld [vmem:[%s602 + $0xb8] sm:$0xff]
        %v778 = vld [vmem:[%s602 + $0xc0] sm:$0xff]
        %v779 = vld [vmem:[%s602 + $0xc8] sm:$0xff]
        %v780 = vld [vmem:[%s602 + $0xd0] sm:$0xff]
        %v781 = vld [vmem:[%s602 + $0xd8] sm:$0xff]
        %v782 = vld [vmem:[%s602 + $0xe0] sm:$0xff]
        %v783 = vld [vmem:[%s602 + $0xe8] sm:$0xff]
        %v784 = vld [vmem:[%s602 + $0xf0] sm:$0xff]
        %v785 = vld [vmem:[%s602 + $0xf8] sm:$0xff]
        %v786 = vpack.c.bf16 %v748, %v748
        %v787 = vpack.c.bf16 %v749, %v749
        %v788 = vlaneseq
        %v789 = vshrl.u32 %v788, 7
        %v790 = vsub.s32 0, %v789
        %v791 = vrot.slane %v752, %v790
        %v792 = vlaneseq
        %v793 = vshrl.u32 %v792, 7
        %v794 = vsub.s32 0, %v793
        %v795 = vrot.slane %v753, %v794
        %v828 = vunpack.c.l.b16 %v754
        %v829 = vunpack.c.h.b16 %v754
        %v830 = vunpack.c.l.b16 %v755
        %v831 = vunpack.c.h.b16 %v755
        %v832 = vunpack.c.l.b16 %v756
        %v833 = vunpack.c.h.b16 %v756
        %v834 = vunpack.c.l.b16 %v757
        %v835 = vunpack.c.h.b16 %v757
        %v836 = vunpack.c.l.b16 %v758
        %v837 = vunpack.c.h.b16 %v758
        %v838 = vunpack.c.l.b16 %v759
        %v839 = vunpack.c.h.b16 %v759
        %v840 = vunpack.c.l.b16 %v760
        %v841 = vunpack.c.h.b16 %v760
        %v842 = vunpack.c.l.b16 %v761
        %v843 = vunpack.c.h.b16 %v761
        %v844 = vunpack.c.l.b16 %v762
        %v845 = vunpack.c.h.b16 %v762
        %v846 = vunpack.c.l.b16 %v763
        %v847 = vunpack.c.h.b16 %v763
        %v848 = vunpack.c.l.b16 %v764
        %v849 = vunpack.c.h.b16 %v764
        %v850 = vunpack.c.l.b16 %v765
        %v851 = vunpack.c.h.b16 %v765
        %v852 = vunpack.c.l.b16 %v766
        %v853 = vunpack.c.h.b16 %v766
        %v854 = vunpack.c.l.b16 %v767
        %v855 = vunpack.c.h.b16 %v767
        %v856 = vunpack.c.l.b16 %v768
        %v857 = vunpack.c.h.b16 %v768
        %v858 = vunpack.c.l.b16 %v769
        %v859 = vunpack.c.h.b16 %v769
        %v860 = vunpack.c.l.b16 %v770
        %v861 = vunpack.c.h.b16 %v770
        %v862 = vunpack.c.l.b16 %v771
        %v863 = vunpack.c.h.b16 %v771
        %v864 = vunpack.c.l.b16 %v772
        %v865 = vunpack.c.h.b16 %v772
        %v866 = vunpack.c.l.b16 %v773
        %v867 = vunpack.c.h.b16 %v773
        %v868 = vunpack.c.l.b16 %v774
        %v869 = vunpack.c.h.b16 %v774
        %v870 = vunpack.c.l.b16 %v775
        %v871 = vunpack.c.h.b16 %v775
        %v872 = vunpack.c.l.b16 %v776
        %v873 = vunpack.c.h.b16 %v776
        %v874 = vunpack.c.l.b16 %v777
        %v875 = vunpack.c.h.b16 %v777
        %v876 = vunpack.c.l.b16 %v778
        %v877 = vunpack.c.h.b16 %v778
        %v878 = vunpack.c.l.b16 %v779
        %v879 = vunpack.c.h.b16 %v779
        %v880 = vunpack.c.l.b16 %v780
        %v881 = vunpack.c.h.b16 %v780
        %v882 = vunpack.c.l.b16 %v781
        %v883 = vunpack.c.h.b16 %v781
        %v884 = vunpack.c.l.b16 %v782
        %v885 = vunpack.c.h.b16 %v782
        %v886 = vunpack.c.l.b16 %v783
        %v887 = vunpack.c.h.b16 %v783
        %v888 = vunpack.c.l.b16 %v784
        %v889 = vunpack.c.h.b16 %v784
        %v890 = vunpack.c.l.b16 %v785
        %v891 = vunpack.c.h.b16 %v785
        %v892 = vpack.c.b16 %v830, %v828
        %v893 = vpack.c.b16 %v831, %v829
        %v894 = vpack.c.b16 %v834, %v832
        %v895 = vpack.c.b16 %v835, %v833
        %v896 = vpack.c.b16 %v838, %v836
        %v897 = vpack.c.b16 %v839, %v837
        %v898 = vpack.c.b16 %v842, %v840
        %v899 = vpack.c.b16 %v843, %v841
        %v900 = vpack.c.b16 %v846, %v844
        %v901 = vpack.c.b16 %v847, %v845
        %v902 = vpack.c.b16 %v850, %v848
        %v903 = vpack.c.b16 %v851, %v849
        %v904 = vpack.c.b16 %v854, %v852
        %v905 = vpack.c.b16 %v855, %v853
        %v906 = vpack.c.b16 %v858, %v856
        %v907 = vpack.c.b16 %v859, %v857
        %v908 = vpack.c.b16 %v862, %v860
        %v909 = vpack.c.b16 %v863, %v861
        %v910 = vpack.c.b16 %v866, %v864
        %v911 = vpack.c.b16 %v867, %v865
        %v912 = vpack.c.b16 %v870, %v868
        %v913 = vpack.c.b16 %v871, %v869
        %v914 = vpack.c.b16 %v874, %v872
        %v915 = vpack.c.b16 %v875, %v873
        %v916 = vpack.c.b16 %v878, %v876
        %v917 = vpack.c.b16 %v879, %v877
        %v918 = vpack.c.b16 %v882, %v880
        %v919 = vpack.c.b16 %v883, %v881
        %v920 = vpack.c.b16 %v886, %v884
        %v921 = vpack.c.b16 %v887, %v885
        %v922 = vpack.c.b16 %v890, %v888
        %v923 = vpack.c.b16 %v891, %v889
        %956 = vmatprep.subr.bf16.mxu0 %v907
        %957 = vmatpush1.bf16.msra.mxu0 %v906
        %958 = vmatprep.subr.bf16.mxu0 %v905
        %959 = vmatpush1.bf16.msra.mxu0 %v904
        %960 = vmatprep.subr.bf16.mxu0 %v903
        %961 = vmatpush1.bf16.msra.mxu0 %v902
        %962 = vmatprep.subr.bf16.mxu0 %v901
        %963 = vmatpush1.bf16.msra.mxu0 %v900
        %964 = vmatprep.subr.bf16.mxu0 %v899
        %965 = vmatpush1.bf16.msra.mxu0 %v898
        %966 = vmatprep.subr.bf16.mxu0 %v897
        %967 = vmatpush1.bf16.msra.mxu0 %v896
        %968 = vmatprep.subr.bf16.mxu0 %v895
        %969 = vmatpush1.bf16.msra.mxu0 %v894
        %970 = vmatprep.subr.bf16.mxu0 %v893
        %971 = vmatpush1.bf16.msra.mxu0 %v892
        %972 = vmatprep.subr.bf16.mxu0 %v923
        %973 = vmatpush2.bf16.msra.mxu0 %v922
        %974 = vmatprep.subr.bf16.mxu0 %v921
        %975 = vmatpush2.bf16.msra.mxu0 %v920
        %976 = vmatprep.subr.bf16.mxu0 %v919
        %977 = vmatpush2.bf16.msra.mxu0 %v918
        %978 = vmatprep.subr.bf16.mxu0 %v917
        %979 = vmatpush2.bf16.msra.mxu0 %v916
        %980 = vmatprep.subr.bf16.mxu0 %v915
        %981 = vmatpush2.bf16.msra.mxu0 %v914
        %982 = vmatprep.subr.bf16.mxu0 %v913
        %983 = vmatpush2.bf16.msra.mxu0 %v912
        %984 = vmatprep.subr.bf16.mxu0 %v911
        %985 = vmatpush2.bf16.msra.mxu0 %v910
        %986 = vmatprep.subr.bf16.mxu0 %v909
        %987 = vmatpush2.bf16.msra.mxu0 %v908
        %988 = vmatprep.mubr.bf16.mxu0 %v787
        %989 = vmatmul.mubr.bf16.gmra.mxu0 %v786
        %v990 = vpop.f32.mrf.mxu0
        %v991 = vadd.f32 %v791, %v990
        %v992 = vpop.f32.mrf.mxu0
        %v993 = vadd.f32 %v795, %v992
        %v994 = vpop.f32.mrf.mxu0
        %v995 = vpop.f32.mrf.mxu0
        %996 = vdwg.mxu0
        %v997 = vld [vmem:[%s611] sm:$0xff]
        %v998 = vld [vmem:[%s611 + $0x8] sm:$0xff]
        %v999 = vpack.c.bf16 %v751, %v750
        %v1000 = vlaneseq
        %v1001 = vshrl.u32 %v1000, 7
        %v1002 = vsub.s32 1, %v1001
        %v1003 = vrot.slane %v752, %v1002
        %v1004 = vlaneseq
        %v1005 = vshrl.u32 %v1004, 7
        %v1006 = vsub.s32 1, %v1005
        %v1007 = vrot.slane %v753, %v1006
        %v1010 = vunpack.c.l.b16 %v997
        %v1011 = vunpack.c.h.b16 %v997
        %v1012 = vunpack.c.l.b16 %v998
        %v1013 = vunpack.c.h.b16 %v998
        %v1014 = vpack.c.b16 %v1012, %v1010
        %v1015 = vpack.c.b16 %v1013, %v1011
        %vm1018 = vcmask 130048
        %v1020 = vsel %vm1018, %v999, 0
        %1022 = vmatprep.subr.bf16.mxu0 0
        %1023 = vmatpush1.bf16.msra.mxu0 0
        %1024 = vmatprep.subr.bf16.mxu0 0
        %1025 = vmatpush1.bf16.msra.mxu0 0
        %1026 = vmatprep.subr.bf16.mxu0 0
        %1027 = vmatpush1.bf16.msra.mxu0 0
        %1028 = vmatprep.subr.bf16.mxu0 0
        %1029 = vmatpush1.bf16.msra.mxu0 0
        %1030 = vmatprep.subr.bf16.mxu0 0
        %1031 = vmatpush1.bf16.msra.mxu0 0
        %1032 = vmatprep.subr.bf16.mxu0 0
        %1033 = vmatpush1.bf16.msra.mxu0 0
        %1034 = vmatprep.subr.bf16.mxu0 0
        %1035 = vmatpush1.bf16.msra.mxu0 0
        %1036 = vmatprep.subr.bf16.mxu0 %v1015
        %1037 = vmatpush1.bf16.msra.mxu0 %v1014
        %1038 = vmatprep.subr.bf16.mxu0 0
        %1039 = vmatpush2.bf16.msra.mxu0 0
        %1040 = vmatprep.subr.bf16.mxu0 0
        %1041 = vmatpush2.bf16.msra.mxu0 0
        %1042 = vmatprep.subr.bf16.mxu0 0
        %1043 = vmatpush2.bf16.msra.mxu0 0
        %1044 = vmatprep.subr.bf16.mxu0 0
        %1045 = vmatpush2.bf16.msra.mxu0 0
        %1046 = vmatprep.subr.bf16.mxu0 0
        %1047 = vmatpush2.bf16.msra.mxu0 0
        %1048 = vmatprep.subr.bf16.mxu0 0
        %1049 = vmatpush2.bf16.msra.mxu0 0
        %1050 = vmatprep.subr.bf16.mxu0 0
        %1051 = vmatpush2.bf16.msra.mxu0 0
        %1052 = vmatprep.subr.bf16.mxu0 0
        %1053 = vmatpush2.bf16.msra.mxu0 0
        %1054 = vmatprep.mubr.bf16.mxu0 0
        %1055 = vmatmul.mubr.bf16.gmra.mxu0 %v1020
        %v1056 = vpop.f32.mrf.mxu0
        %v1057 = vadd.f32 %v1003, %v1056
        %v1058 = vpop.f32.mrf.mxu0
        %v1059 = vadd.f32 %v1007, %v1058
        %v1060 = vpop.f32.mrf.mxu0
        %v1061 = vadd.f32 %v1003, %v1060
        %v1062 = vpop.f32.mrf.mxu0
        %v1063 = vadd.f32 %v1007, %v1062
        %1064 = vdwg.mxu0
        %v1065 = vld [vmem:[%s2] sm:$0xff]
        %v1066 = vld [vmem:[%s2 + $0x8] sm:$0xff]
        %vm1067 = vcmask 64512
        %v1069 = vsel %vm1067, %v1065, 0
        %v1072 = vsel %vm1067, %v1066, 0
        %1074 = vmatprep.subr.mxu0 0.0
        %1075 = vmatpush1.msra.mxu0 0.0
        %1076 = vmatprep.subr.mxu0 0.0
        %1077 = vmatpush1.msra.mxu0 0.0
        %1078 = vmatprep.subr.mxu0 0.0
        %1079 = vmatpush1.msra.mxu0 0.0
        %1080 = vmatprep.subr.mxu0 0.0
        %1081 = vmatpush1.msra.mxu0 0.0
        %1082 = vmatprep.subr.mxu0 0.0
        %1083 = vmatpush1.msra.mxu0 0.0
        %1084 = vmatprep.subr.mxu0 0.0
        %1085 = vmatpush1.msra.mxu0 0.0
        %1086 = vmatprep.subr.mxu0 0.0
        %1087 = vmatpush1.msra.mxu0 0.0
        %1088 = vmatprep.subr.mxu0 0.0
        %1089 = vmatpush1.msra.mxu0 0.0
        %1090 = vmatprep.subr.mxu0 0.0
        %1091 = vmatpush1.msra.mxu0 0.0
        %1092 = vmatprep.subr.mxu0 0.0
        %1093 = vmatpush1.msra.mxu0 0.0
        %1094 = vmatprep.subr.mxu0 0.0
        %1095 = vmatpush1.msra.mxu0 0.0
        %1096 = vmatprep.subr.mxu0 0.0
        %1097 = vmatpush1.msra.mxu0 0.0
        %1098 = vmatprep.subr.mxu0 0.0
        %1099 = vmatpush1.msra.mxu0 0.0
        %1100 = vmatprep.subr.mxu0 0.0
        %1101 = vmatpush1.msra.mxu0 0.0
        %1102 = vmatprep.subr.mxu0 0.0
        %1103 = vmatpush1.msra.mxu0 0.0
        %1104 = vmatprep.subr.mxu0 %v993
        %1105 = vmatpush1.msra.mxu0 %v991
        %1106 = vmatprep.subr.mxu0 0.0
        %1107 = vmatpush2.msra.mxu0 0.0
        %1108 = vmatprep.subr.mxu0 0.0
        %1109 = vmatpush2.msra.mxu0 0.0
        %1110 = vmatprep.subr.mxu0 0.0
        %1111 = vmatpush2.msra.mxu0 0.0
        %1112 = vmatprep.subr.mxu0 0.0
        %1113 = vmatpush2.msra.mxu0 0.0
        %1114 = vmatprep.subr.mxu0 0.0
        %1115 = vmatpush2.msra.mxu0 0.0
        %1116 = vmatprep.subr.mxu0 0.0
        %1117 = vmatpush2.msra.mxu0 0.0
        %1118 = vmatprep.subr.mxu0 0.0
        %1119 = vmatpush2.msra.mxu0 0.0
        %1120 = vmatprep.subr.mxu0 0.0
        %1121 = vmatpush2.msra.mxu0 0.0
        %1122 = vmatprep.subr.mxu0 0.0
        %1123 = vmatpush2.msra.mxu0 0.0
        %1124 = vmatprep.subr.mxu0 0.0
        %1125 = vmatpush2.msra.mxu0 0.0
        %1126 = vmatprep.subr.mxu0 0.0
        %1127 = vmatpush2.msra.mxu0 0.0
        %1128 = vmatprep.subr.mxu0 0.0
        %1129 = vmatpush2.msra.mxu0 0.0
        %1130 = vmatprep.subr.mxu0 0.0
        %1131 = vmatpush2.msra.mxu0 0.0
        %1132 = vmatprep.subr.mxu0 0.0
        %1133 = vmatpush2.msra.mxu0 0.0
        %1134 = vmatprep.subr.mxu0 0.0
        %1135 = vmatpush2.msra.mxu0 0.0
        %1136 = vmatprep.subr.mxu0 0.0
        %1137 = vmatpush2.msra.mxu0 0.0
        %1138 = vmatprep.mubr.f32.mxu0 0.0
        %1139 = vmatmul.mubr.f32.gmra.mxu0 %v1069
        %v1140 = vpop.f32.mrf.mxu0
        %v1141 = vadd.f32 0.0, %v1140
        %v1142 = vpop.f32.mrf.mxu0
        %v1143 = vadd.f32 0.0, %v1142
        %1144 = vmatprep.mubr.f32.mxu0 0.0
        %1145 = vmatmul.mubr.f32.gmra.mxu0 %v1072
        %v1146 = vpop.f32.mrf.mxu0
        %v1147 = vadd.f32 0.0, %v1146
        %v1148 = vpop.f32.mrf.mxu0
        %v1149 = vadd.f32 0.0, %v1148
        %1150 = vdwg.mxu0
        %v1151 = vld [vmem:[%s620] sm:$0xff]
        %v1152 = vld [vmem:[%s620 + $0x8] sm:$0xff]
        %v1153 = vld [vmem:[%s620 + $0x10] sm:$0xff]
        %v1154 = vld [vmem:[%s620 + $0x18] sm:$0xff]
        %v1155 = vld [vmem:[%s620 + $0x20] sm:$0xff]
        %v1156 = vld [vmem:[%s620 + $0x28] sm:$0xff]
        %v1157 = vld [vmem:[%s620 + $0x30] sm:$0xff]
        %v1158 = vld [vmem:[%s620 + $0x38] sm:$0xff]
        %v1159 = vld [vmem:[%s620 + $0x40] sm:$0xff]
        %v1160 = vld [vmem:[%s620 + $0x48] sm:$0xff]
        %v1161 = vld [vmem:[%s620 + $0x50] sm:$0xff]
        %v1162 = vld [vmem:[%s620 + $0x58] sm:$0xff]
        %v1163 = vld [vmem:[%s620 + $0x60] sm:$0xff]
        %v1164 = vld [vmem:[%s620 + $0x68] sm:$0xff]
        %v1165 = vld [vmem:[%s620 + $0x70] sm:$0xff]
        %v1166 = vld [vmem:[%s620 + $0x78] sm:$0xff]
        %v1167 = vld [vmem:[%s620 + $0x80] sm:$0xff]
        %v1168 = vld [vmem:[%s620 + $0x88] sm:$0xff]
        %v1169 = vld [vmem:[%s620 + $0x90] sm:$0xff]
        %v1170 = vld [vmem:[%s620 + $0x98] sm:$0xff]
        %v1171 = vld [vmem:[%s620 + $0xa0] sm:$0xff]
        %v1172 = vld [vmem:[%s620 + $0xa8] sm:$0xff]
        %v1173 = vld [vmem:[%s620 + $0xb0] sm:$0xff]
        %v1174 = vld [vmem:[%s620 + $0xb8] sm:$0xff]
        %v1175 = vld [vmem:[%s620 + $0xc0] sm:$0xff]
        %v1176 = vld [vmem:[%s620 + $0xc8] sm:$0xff]
        %v1177 = vld [vmem:[%s620 + $0xd0] sm:$0xff]
        %v1178 = vld [vmem:[%s620 + $0xd8] sm:$0xff]
        %v1179 = vld [vmem:[%s620 + $0xe0] sm:$0xff]
        %v1180 = vld [vmem:[%s620 + $0xe8] sm:$0xff]
        %v1181 = vld [vmem:[%s620 + $0xf0] sm:$0xff]
        %v1182 = vld [vmem:[%s620 + $0xf8] sm:$0xff]
        %v1183 = vld [vmem:[%s620 + $0x100] sm:$0xff]
        %v1184 = vld [vmem:[%s620 + $0x108] sm:$0xff]
        %v1185 = vld [vmem:[%s620 + $0x110] sm:$0xff]
        %v1186 = vld [vmem:[%s620 + $0x118] sm:$0xff]
        %v1187 = vld [vmem:[%s620 + $0x120] sm:$0xff]
        %v1188 = vld [vmem:[%s620 + $0x128] sm:$0xff]
        %v1189 = vld [vmem:[%s620 + $0x130] sm:$0xff]
        %v1190 = vld [vmem:[%s620 + $0x138] sm:$0xff]
        %v1191 = vld [vmem:[%s620 + $0x140] sm:$0xff]
        %v1192 = vld [vmem:[%s620 + $0x148] sm:$0xff]
        %v1193 = vld [vmem:[%s620 + $0x150] sm:$0xff]
        %v1194 = vld [vmem:[%s620 + $0x158] sm:$0xff]
        %v1195 = vld [vmem:[%s620 + $0x160] sm:$0xff]
        %v1196 = vld [vmem:[%s620 + $0x168] sm:$0xff]
        %v1197 = vld [vmem:[%s620 + $0x170] sm:$0xff]
        %v1198 = vld [vmem:[%s620 + $0x178] sm:$0xff]
        %v1199 = vld [vmem:[%s620 + $0x180] sm:$0xff]
        %v1200 = vld [vmem:[%s620 + $0x188] sm:$0xff]
        %v1201 = vld [vmem:[%s620 + $0x190] sm:$0xff]
        %v1202 = vld [vmem:[%s620 + $0x198] sm:$0xff]
        %v1203 = vld [vmem:[%s620 + $0x1a0] sm:$0xff]
        %v1204 = vld [vmem:[%s620 + $0x1a8] sm:$0xff]
        %v1205 = vld [vmem:[%s620 + $0x1b0] sm:$0xff]
        %v1206 = vld [vmem:[%s620 + $0x1b8] sm:$0xff]
        %v1207 = vld [vmem:[%s620 + $0x1c0] sm:$0xff]
        %v1208 = vld [vmem:[%s620 + $0x1c8] sm:$0xff]
        %v1209 = vld [vmem:[%s620 + $0x1d0] sm:$0xff]
        %v1210 = vld [vmem:[%s620 + $0x1d8] sm:$0xff]
        %v1211 = vld [vmem:[%s620 + $0x1e0] sm:$0xff]
        %v1212 = vld [vmem:[%s620 + $0x1e8] sm:$0xff]
        %v1213 = vld [vmem:[%s620 + $0x1f0] sm:$0xff]
        %v1214 = vld [vmem:[%s620 + $0x1f8] sm:$0xff]
        %v1215 = vpack.c.bf16 %v1147, %v1141
        %v1216 = vpack.c.bf16 %v1149, %v1143
        %v1217 = vpack.c.bf16 %v1061, %v1057
        %v1218 = vpack.c.bf16 %v1063, %v1059
        %v1219 = vlaneseq
        %v1220 = vshrl.u32 %v1219, 7
        %v1221 = vsub.s32 2, %v1220
        %v1222 = vrot.slane %v752, %v1221
        %v1223 = vlaneseq
        %v1224 = vshrl.u32 %v1223, 7
        %v1225 = vsub.s32 2, %v1224
        %v1226 = vrot.slane %v753, %v1225
        %v1291 = vunpack.c.l.b16 %v1151
        %v1292 = vunpack.c.h.b16 %v1151
        %v1293 = vunpack.c.l.b16 %v1152
        %v1294 = vunpack.c.h.b16 %v1152
        %v1295 = vunpack.c.l.b16 %v1153
        %v1296 = vunpack.c.h.b16 %v1153
        %v1297 = vunpack.c.l.b16 %v1154
        %v1298 = vunpack.c.h.b16 %v1154
        %v1299 = vunpack.c.l.b16 %v1155
        %v1300 = vunpack.c.h.b16 %v1155
        %v1301 = vunpack.c.l.b16 %v1156
        %v1302 = vunpack.c.h.b16 %v1156
        %v1303 = vunpack.c.l.b16 %v1157
        %v1304 = vunpack.c.h.b16 %v1157
        %v1305 = vunpack.c.l.b16 %v1158
        %v1306 = vunpack.c.h.b16 %v1158
        %v1307 = vunpack.c.l.b16 %v1159
        %v1308 = vunpack.c.h.b16 %v1159
        %v1309 = vunpack.c.l.b16 %v1160
        %v1310 = vunpack.c.h.b16 %v1160
        %v1311 = vunpack.c.l.b16 %v1161
        %v1312 = vunpack.c.h.b16 %v1161
        %v1313 = vunpack.c.l.b16 %v1162
        %v1314 = vunpack.c.h.b16 %v1162
        %v1315 = vunpack.c.l.b16 %v1163
        %v1316 = vunpack.c.h.b16 %v1163
        %v1317 = vunpack.c.l.b16 %v1164
        %v1318 = vunpack.c.h.b16 %v1164
        %v1319 = vunpack.c.l.b16 %v1165
        %v1320 = vunpack.c.h.b16 %v1165
        %v1321 = vunpack.c.l.b16 %v1166
        %v1322 = vunpack.c.h.b16 %v1166
        %v1323 = vunpack.c.l.b16 %v1167
        %v1324 = vunpack.c.h.b16 %v1167
        %v1325 = vunpack.c.l.b16 %v1168
        %v1326 = vunpack.c.h.b16 %v1168
        %v1327 = vunpack.c.l.b16 %v1169
        %v1328 = vunpack.c.h.b16 %v1169
        %v1329 = vunpack.c.l.b16 %v1170
        %v1330 = vunpack.c.h.b16 %v1170
        %v1331 = vunpack.c.l.b16 %v1171
        %v1332 = vunpack.c.h.b16 %v1171
        %v1333 = vunpack.c.l.b16 %v1172
        %v1334 = vunpack.c.h.b16 %v1172
        %v1335 = vunpack.c.l.b16 %v1173
        %v1336 = vunpack.c.h.b16 %v1173
        %v1337 = vunpack.c.l.b16 %v1174
        %v1338 = vunpack.c.h.b16 %v1174
        %v1339 = vunpack.c.l.b16 %v1175
        %v1340 = vunpack.c.h.b16 %v1175
        %v1341 = vunpack.c.l.b16 %v1176
        %v1342 = vunpack.c.h.b16 %v1176
        %v1343 = vunpack.c.l.b16 %v1177
        %v1344 = vunpack.c.h.b16 %v1177
        %v1345 = vunpack.c.l.b16 %v1178
        %v1346 = vunpack.c.h.b16 %v1178
        %v1347 = vunpack.c.l.b16 %v1179
        %v1348 = vunpack.c.h.b16 %v1179
        %v1349 = vunpack.c.l.b16 %v1180
        %v1350 = vunpack.c.h.b16 %v1180
        %v1351 = vunpack.c.l.b16 %v1181
        %v1352 = vunpack.c.h.b16 %v1181
        %v1353 = vunpack.c.l.b16 %v1182
        %v1354 = vunpack.c.h.b16 %v1182
        %v1355 = vunpack.c.l.b16 %v1183
        %v1356 = vunpack.c.h.b16 %v1183
        %v1357 = vunpack.c.l.b16 %v1184
        %v1358 = vunpack.c.h.b16 %v1184
        %v1359 = vunpack.c.l.b16 %v1185
        %v1360 = vunpack.c.h.b16 %v1185
        %v1361 = vunpack.c.l.b16 %v1186
        %v1362 = vunpack.c.h.b16 %v1186
        %v1363 = vunpack.c.l.b16 %v1187
        %v1364 = vunpack.c.h.b16 %v1187
        %v1365 = vunpack.c.l.b16 %v1188
        %v1366 = vunpack.c.h.b16 %v1188
        %v1367 = vunpack.c.l.b16 %v1189
        %v1368 = vunpack.c.h.b16 %v1189
        %v1369 = vunpack.c.l.b16 %v1190
        %v1370 = vunpack.c.h.b16 %v1190
        %v1371 = vunpack.c.l.b16 %v1191
        %v1372 = vunpack.c.h.b16 %v1191
        %v1373 = vunpack.c.l.b16 %v1192
        %v1374 = vunpack.c.h.b16 %v1192
        %v1375 = vunpack.c.l.b16 %v1193
        %v1376 = vunpack.c.h.b16 %v1193
        %v1377 = vunpack.c.l.b16 %v1194
        %v1378 = vunpack.c.h.b16 %v1194
        %v1379 = vunpack.c.l.b16 %v1195
        %v1380 = vunpack.c.h.b16 %v1195
        %v1381 = vunpack.c.l.b16 %v1196
        %v1382 = vunpack.c.h.b16 %v1196
        %v1383 = vunpack.c.l.b16 %v1197
        %v1384 = vunpack.c.h.b16 %v1197
        %v1385 = vunpack.c.l.b16 %v1198
        %v1386 = vunpack.c.h.b16 %v1198
        %v1387 = vunpack.c.l.b16 %v1199
        %v1388 = vunpack.c.h.b16 %v1199
        %v1389 = vunpack.c.l.b16 %v1200
        %v1390 = vunpack.c.h.b16 %v1200
        %v1391 = vunpack.c.l.b16 %v1201
        %v1392 = vunpack.c.h.b16 %v1201
        %v1393 = vunpack.c.l.b16 %v1202
        %v1394 = vunpack.c.h.b16 %v1202
        %v1395 = vunpack.c.l.b16 %v1203
        %v1396 = vunpack.c.h.b16 %v1203
        %v1397 = vunpack.c.l.b16 %v1204
        %v1398 = vunpack.c.h.b16 %v1204
        %v1399 = vunpack.c.l.b16 %v1205
        %v1400 = vunpack.c.h.b16 %v1205
        %v1401 = vunpack.c.l.b16 %v1206
        %v1402 = vunpack.c.h.b16 %v1206
        %v1403 = vunpack.c.l.b16 %v1207
        %v1404 = vunpack.c.h.b16 %v1207
        %v1405 = vunpack.c.l.b16 %v1208
        %v1406 = vunpack.c.h.b16 %v1208
        %v1407 = vunpack.c.l.b16 %v1209
        %v1408 = vunpack.c.h.b16 %v1209
        %v1409 = vunpack.c.l.b16 %v1210
        %v1410 = vunpack.c.h.b16 %v1210
        %v1411 = vunpack.c.l.b16 %v1211
        %v1412 = vunpack.c.h.b16 %v1211
        %v1413 = vunpack.c.l.b16 %v1212
        %v1414 = vunpack.c.h.b16 %v1212
        %v1415 = vunpack.c.l.b16 %v1213
        %v1416 = vunpack.c.h.b16 %v1213
        %v1417 = vunpack.c.l.b16 %v1214
        %v1418 = vunpack.c.h.b16 %v1214
        %v1419 = vpack.c.b16 %v1293, %v1291
        %v1420 = vpack.c.b16 %v1294, %v1292
        %v1421 = vpack.c.b16 %v1297, %v1295
        %v1422 = vpack.c.b16 %v1298, %v1296
        %v1423 = vpack.c.b16 %v1301, %v1299
        %v1424 = vpack.c.b16 %v1302, %v1300
        %v1425 = vpack.c.b16 %v1305, %v1303
        %v1426 = vpack.c.b16 %v1306, %v1304
        %v1427 = vpack.c.b16 %v1309, %v1307
        %v1428 = vpack.c.b16 %v1310, %v1308
        %v1429 = vpack.c.b16 %v1313, %v1311
        %v1430 = vpack.c.b16 %v1314, %v1312
        %v1431 = vpack.c.b16 %v1317, %v1315
        %v1432 = vpack.c.b16 %v1318, %v1316
        %v1433 = vpack.c.b16 %v1321, %v1319
        %v1434 = vpack.c.b16 %v1322, %v1320
        %v1435 = vpack.c.b16 %v1325, %v1323
        %v1436 = vpack.c.b16 %v1326, %v1324
        %v1437 = vpack.c.b16 %v1329, %v1327
        %v1438 = vpack.c.b16 %v1330, %v1328
        %v1439 = vpack.c.b16 %v1333, %v1331
        %v1440 = vpack.c.b16 %v1334, %v1332
        %v1441 = vpack.c.b16 %v1337, %v1335
        %v1442 = vpack.c.b16 %v1338, %v1336
        %v1443 = vpack.c.b16 %v1341, %v1339
        %v1444 = vpack.c.b16 %v1342, %v1340
        %v1445 = vpack.c.b16 %v1345, %v1343
        %v1446 = vpack.c.b16 %v1346, %v1344
        %v1447 = vpack.c.b16 %v1349, %v1347
        %v1448 = vpack.c.b16 %v1350, %v1348
        %v1449 = vpack.c.b16 %v1353, %v1351
        %v1450 = vpack.c.b16 %v1354, %v1352
        %v1451 = vpack.c.b16 %v1357, %v1355
        %v1452 = vpack.c.b16 %v1358, %v1356
        %v1453 = vpack.c.b16 %v1361, %v1359
        %v1454 = vpack.c.b16 %v1362, %v1360
        %v1455 = vpack.c.b16 %v1365, %v1363
        %v1456 = vpack.c.b16 %v1366, %v1364
        %v1457 = vpack.c.b16 %v1369, %v1367
        %v1458 = vpack.c.b16 %v1370, %v1368
        %v1459 = vpack.c.b16 %v1373, %v1371
        %v1460 = vpack.c.b16 %v1374, %v1372
        %v1461 = vpack.c.b16 %v1377, %v1375
        %v1462 = vpack.c.b16 %v1378, %v1376
        %v1463 = vpack.c.b16 %v1381, %v1379
        %v1464 = vpack.c.b16 %v1382, %v1380
        %v1465 = vpack.c.b16 %v1385, %v1383
        %v1466 = vpack.c.b16 %v1386, %v1384
        %v1467 = vpack.c.b16 %v1389, %v1387
        %v1468 = vpack.c.b16 %v1390, %v1388
        %v1469 = vpack.c.b16 %v1393, %v1391
        %v1470 = vpack.c.b16 %v1394, %v1392
        %v1471 = vpack.c.b16 %v1397, %v1395
        %v1472 = vpack.c.b16 %v1398, %v1396
        %v1473 = vpack.c.b16 %v1401, %v1399
        %v1474 = vpack.c.b16 %v1402, %v1400
        %v1475 = vpack.c.b16 %v1405, %v1403
        %v1476 = vpack.c.b16 %v1406, %v1404
        %v1477 = vpack.c.b16 %v1409, %v1407
        %v1478 = vpack.c.b16 %v1410, %v1408
        %v1479 = vpack.c.b16 %v1413, %v1411
        %v1480 = vpack.c.b16 %v1414, %v1412
        %v1481 = vpack.c.b16 %v1417, %v1415
        %v1482 = vpack.c.b16 %v1418, %v1416
        %1547 = vmatprep.subr.bf16.mxu0 %v1434
        %1548 = vmatpush1.bf16.msra.mxu0 %v1433
        %1549 = vmatprep.subr.bf16.mxu0 %v1432
        %1550 = vmatpush1.bf16.msra.mxu0 %v1431
        %1551 = vmatprep.subr.bf16.mxu0 %v1430
        %1552 = vmatpush1.bf16.msra.mxu0 %v1429
        %1553 = vmatprep.subr.bf16.mxu0 %v1428
        %1554 = vmatpush1.bf16.msra.mxu0 %v1427
        %1555 = vmatprep.subr.bf16.mxu0 %v1426
        %1556 = vmatpush1.bf16.msra.mxu0 %v1425
        %1557 = vmatprep.subr.bf16.mxu0 %v1424
        %1558 = vmatpush1.bf16.msra.mxu0 %v1423
        %1559 = vmatprep.subr.bf16.mxu0 %v1422
        %1560 = vmatpush1.bf16.msra.mxu0 %v1421
        %1561 = vmatprep.subr.bf16.mxu0 %v1420
        %1562 = vmatpush1.bf16.msra.mxu0 %v1419
        %1563 = vmatprep.subr.bf16.mxu0 %v1450
        %1564 = vmatpush2.bf16.msra.mxu0 %v1449
        %1565 = vmatprep.subr.bf16.mxu0 %v1448
        %1566 = vmatpush2.bf16.msra.mxu0 %v1447
        %1567 = vmatprep.subr.bf16.mxu0 %v1446
        %1568 = vmatpush2.bf16.msra.mxu0 %v1445
        %1569 = vmatprep.subr.bf16.mxu0 %v1444
        %1570 = vmatpush2.bf16.msra.mxu0 %v1443
        %1571 = vmatprep.subr.bf16.mxu0 %v1442
        %1572 = vmatpush2.bf16.msra.mxu0 %v1441
        %1573 = vmatprep.subr.bf16.mxu0 %v1440
        %1574 = vmatpush2.bf16.msra.mxu0 %v1439
        %1575 = vmatprep.subr.bf16.mxu0 %v1438
        %1576 = vmatpush2.bf16.msra.mxu0 %v1437
        %1577 = vmatprep.subr.bf16.mxu0 %v1436
        %1578 = vmatpush2.bf16.msra.mxu0 %v1435
        %1579 = vmatprep.mubr.bf16.mxu0 %v1216
        %1580 = vmatmul.mubr.bf16.gmra.mxu0 %v1215
        %v1581 = vpop.f32.mrf.mxu0
        %v1582 = vadd.f32 %v1222, %v1581
        %v1583 = vpop.f32.mrf.mxu0
        %v1584 = vadd.f32 %v1226, %v1583
        %v1585 = vpop.f32.mrf.mxu0
        %v1586 = vadd.f32 %v1222, %v1585
        %v1587 = vpop.f32.mrf.mxu0
        %v1588 = vadd.f32 %v1226, %v1587
        %1589 = vdwg.mxu0
        %1590 = vmatprep.subr.bf16.mxu0 %v1466
        %1591 = vmatpush1.bf16.msra.mxu0 %v1465
        %1592 = vmatprep.subr.bf16.mxu0 %v1464
        %1593 = vmatpush1.bf16.msra.mxu0 %v1463
        %1594 = vmatprep.subr.bf16.mxu0 %v1462
        %1595 = vmatpush1.bf16.msra.mxu0 %v1461
        %1596 = vmatprep.subr.bf16.mxu0 %v1460
        %1597 = vmatpush1.bf16.msra.mxu0 %v1459
        %1598 = vmatprep.subr.bf16.mxu0 %v1458
        %1599 = vmatpush1.bf16.msra.mxu0 %v1457
        %1600 = vmatprep.subr.bf16.mxu0 %v1456
        %1601 = vmatpush1.bf16.msra.mxu0 %v1455
        %1602 = vmatprep.subr.bf16.mxu0 %v1454
        %1603 = vmatpush1.bf16.msra.mxu0 %v1453
        %1604 = vmatprep.subr.bf16.mxu0 %v1452
        %1605 = vmatpush1.bf16.msra.mxu0 %v1451
        %1606 = vmatprep.subr.bf16.mxu0 %v1482
        %1607 = vmatpush2.bf16.msra.mxu0 %v1481
        %1608 = vmatprep.subr.bf16.mxu0 %v1480
        %1609 = vmatpush2.bf16.msra.mxu0 %v1479
        %1610 = vmatprep.subr.bf16.mxu0 %v1478
        %1611 = vmatpush2.bf16.msra.mxu0 %v1477
        %1612 = vmatprep.subr.bf16.mxu0 %v1476
        %1613 = vmatpush2.bf16.msra.mxu0 %v1475
        %1614 = vmatprep.subr.bf16.mxu0 %v1474
        %1615 = vmatpush2.bf16.msra.mxu0 %v1473
        %1616 = vmatprep.subr.bf16.mxu0 %v1472
        %1617 = vmatpush2.bf16.msra.mxu0 %v1471
        %1618 = vmatprep.subr.bf16.mxu0 %v1470
        %1619 = vmatpush2.bf16.msra.mxu0 %v1469
        %1620 = vmatprep.subr.bf16.mxu0 %v1468
        %1621 = vmatpush2.bf16.msra.mxu0 %v1467
        %1622 = vmatprep.mubr.bf16.mxu0 %v1218
        %1623 = vmatmul.mubr.bf16.gmra.mxu0 %v1217
        %v1624 = vpop.f32.mrf.mxu0
        %v1625 = vadd.f32 %v1582, %v1624
        %v1626 = vpop.f32.mrf.mxu0
        %v1627 = vadd.f32 %v1584, %v1626
        %v1628 = vpop.f32.mrf.mxu0
        %v1629 = vadd.f32 %v1586, %v1628
        %v1630 = vpop.f32.mrf.mxu0
        %v1631 = vadd.f32 %v1588, %v1630
        %1632 = vdwg.mxu0
        %v1633 = vmax.f32 %v1625, 0.0
        %v1634 = vmax.f32 %v1627, 0.0
        %v1635 = vmax.f32 %v1629, 0.0
        %v1636 = vmax.f32 %v1631, 0.0
        %v1637 = vld [vmem:[%s629] sm:$0xff]
        %v1638 = vld [vmem:[%s629 + $0x8] sm:$0xff]
        %v1639 = vld [vmem:[%s629 + $0x10] sm:$0xff]
        %v1640 = vld [vmem:[%s629 + $0x18] sm:$0xff]
        %v1641 = vld [vmem:[%s629 + $0x20] sm:$0xff]
        %v1642 = vld [vmem:[%s629 + $0x28] sm:$0xff]
        %v1643 = vld [vmem:[%s629 + $0x30] sm:$0xff]
        %v1644 = vld [vmem:[%s629 + $0x38] sm:$0xff]
        %v1645 = vld [vmem:[%s629 + $0x40] sm:$0xff]
        %v1646 = vld [vmem:[%s629 + $0x48] sm:$0xff]
        %v1647 = vld [vmem:[%s629 + $0x50] sm:$0xff]
        %v1648 = vld [vmem:[%s629 + $0x58] sm:$0xff]
        %v1649 = vld [vmem:[%s629 + $0x60] sm:$0xff]
        %v1650 = vld [vmem:[%s629 + $0x68] sm:$0xff]
        %v1651 = vld [vmem:[%s629 + $0x70] sm:$0xff]
        %v1652 = vld [vmem:[%s629 + $0x78] sm:$0xff]
        %v1653 = vld [vmem:[%s629 + $0x80] sm:$0xff]
        %v1654 = vld [vmem:[%s629 + $0x88] sm:$0xff]
        %v1655 = vld [vmem:[%s629 + $0x90] sm:$0xff]
        %v1656 = vld [vmem:[%s629 + $0x98] sm:$0xff]
        %v1657 = vld [vmem:[%s629 + $0xa0] sm:$0xff]
        %v1658 = vld [vmem:[%s629 + $0xa8] sm:$0xff]
        %v1659 = vld [vmem:[%s629 + $0xb0] sm:$0xff]
        %v1660 = vld [vmem:[%s629 + $0xb8] sm:$0xff]
        %v1661 = vld [vmem:[%s629 + $0xc0] sm:$0xff]
        %v1662 = vld [vmem:[%s629 + $0xc8] sm:$0xff]
        %v1663 = vld [vmem:[%s629 + $0xd0] sm:$0xff]
        %v1664 = vld [vmem:[%s629 + $0xd8] sm:$0xff]
        %v1665 = vld [vmem:[%s629 + $0xe0] sm:$0xff]
        %v1666 = vld [vmem:[%s629 + $0xe8] sm:$0xff]
        %v1667 = vld [vmem:[%s629 + $0xf0] sm:$0xff]
        %v1668 = vld [vmem:[%s629 + $0xf8] sm:$0xff]
        %v1669 = vpack.c.bf16 %v1635, %v1633
        %v1670 = vpack.c.bf16 %v1636, %v1634
        %v1671 = vlaneseq
        %v1672 = vshrl.u32 %v1671, 7
        %v1673 = vsub.s32 3, %v1672
        %v1674 = vrot.slane %v752, %v1673
        %v1675 = vlaneseq
        %v1676 = vshrl.u32 %v1675, 7
        %v1677 = vsub.s32 3, %v1676
        %v1678 = vrot.slane %v753, %v1677
        %v1711 = vunpack.c.l.b16 %v1637
        %v1712 = vunpack.c.h.b16 %v1637
        %v1713 = vunpack.c.l.b16 %v1638
        %v1714 = vunpack.c.h.b16 %v1638
        %v1715 = vunpack.c.l.b16 %v1639
        %v1716 = vunpack.c.h.b16 %v1639
        %v1717 = vunpack.c.l.b16 %v1640
        %v1718 = vunpack.c.h.b16 %v1640
        %v1719 = vunpack.c.l.b16 %v1641
        %v1720 = vunpack.c.h.b16 %v1641
        %v1721 = vunpack.c.l.b16 %v1642
        %v1722 = vunpack.c.h.b16 %v1642
        %v1723 = vunpack.c.l.b16 %v1643
        %v1724 = vunpack.c.h.b16 %v1643
        %v1725 = vunpack.c.l.b16 %v1644
        %v1726 = vunpack.c.h.b16 %v1644
        %v1727 = vunpack.c.l.b16 %v1645
        %v1728 = vunpack.c.h.b16 %v1645
        %v1729 = vunpack.c.l.b16 %v1646
        %v1730 = vunpack.c.h.b16 %v1646
        %v1731 = vunpack.c.l.b16 %v1647
        %v1732 = vunpack.c.h.b16 %v1647
        %v1733 = vunpack.c.l.b16 %v1648
        %v1734 = vunpack.c.h.b16 %v1648
        %v1735 = vunpack.c.l.b16 %v1649
        %v1736 = vunpack.c.h.b16 %v1649
        %v1737 = vunpack.c.l.b16 %v1650
        %v1738 = vunpack.c.h.b16 %v1650
        %v1739 = vunpack.c.l.b16 %v1651
        %v1740 = vunpack.c.h.b16 %v1651
        %v1741 = vunpack.c.l.b16 %v1652
        %v1742 = vunpack.c.h.b16 %v1652
        %v1743 = vunpack.c.l.b16 %v1653
        %v1744 = vunpack.c.h.b16 %v1653
        %v1745 = vunpack.c.l.b16 %v1654
        %v1746 = vunpack.c.h.b16 %v1654
        %v1747 = vunpack.c.l.b16 %v1655
        %v1748 = vunpack.c.h.b16 %v1655
        %v1749 = vunpack.c.l.b16 %v1656
        %v1750 = vunpack.c.h.b16 %v1656
        %v1751 = vunpack.c.l.b16 %v1657
        %v1752 = vunpack.c.h.b16 %v1657
        %v1753 = vunpack.c.l.b16 %v1658
        %v1754 = vunpack.c.h.b16 %v1658
        %v1755 = vunpack.c.l.b16 %v1659
        %v1756 = vunpack.c.h.b16 %v1659
        %v1757 = vunpack.c.l.b16 %v1660
        %v1758 = vunpack.c.h.b16 %v1660
        %v1759 = vunpack.c.l.b16 %v1661
        %v1760 = vunpack.c.h.b16 %v1661
        %v1761 = vunpack.c.l.b16 %v1662
        %v1762 = vunpack.c.h.b16 %v1662
        %v1763 = vunpack.c.l.b16 %v1663
        %v1764 = vunpack.c.h.b16 %v1663
        %v1765 = vunpack.c.l.b16 %v1664
        %v1766 = vunpack.c.h.b16 %v1664
        %v1767 = vunpack.c.l.b16 %v1665
        %v1768 = vunpack.c.h.b16 %v1665
        %v1769 = vunpack.c.l.b16 %v1666
        %v1770 = vunpack.c.h.b16 %v1666
        %v1771 = vunpack.c.l.b16 %v1667
        %v1772 = vunpack.c.h.b16 %v1667
        %v1773 = vunpack.c.l.b16 %v1668
        %v1774 = vunpack.c.h.b16 %v1668
        %v1775 = vpack.c.b16 %v1713, %v1711
        %v1776 = vpack.c.b16 %v1714, %v1712
        %v1777 = vpack.c.b16 %v1717, %v1715
        %v1778 = vpack.c.b16 %v1718, %v1716
        %v1779 = vpack.c.b16 %v1721, %v1719
        %v1780 = vpack.c.b16 %v1722, %v1720
        %v1781 = vpack.c.b16 %v1725, %v1723
        %v1782 = vpack.c.b16 %v1726, %v1724
        %v1783 = vpack.c.b16 %v1729, %v1727
        %v1784 = vpack.c.b16 %v1730, %v1728
        %v1785 = vpack.c.b16 %v1733, %v1731
        %v1786 = vpack.c.b16 %v1734, %v1732
        %v1787 = vpack.c.b16 %v1737, %v1735
        %v1788 = vpack.c.b16 %v1738, %v1736
        %v1789 = vpack.c.b16 %v1741, %v1739
        %v1790 = vpack.c.b16 %v1742, %v1740
        %v1791 = vpack.c.b16 %v1745, %v1743
        %v1792 = vpack.c.b16 %v1746, %v1744
        %v1793 = vpack.c.b16 %v1749, %v1747
        %v1794 = vpack.c.b16 %v1750, %v1748
        %v1795 = vpack.c.b16 %v1753, %v1751
        %v1796 = vpack.c.b16 %v1754, %v1752
        %v1797 = vpack.c.b16 %v1757, %v1755
        %v1798 = vpack.c.b16 %v1758, %v1756
        %v1799 = vpack.c.b16 %v1761, %v1759
        %v1800 = vpack.c.b16 %v1762, %v1760
        %v1801 = vpack.c.b16 %v1765, %v1763
        %v1802 = vpack.c.b16 %v1766, %v1764
        %v1803 = vpack.c.b16 %v1769, %v1767
        %v1804 = vpack.c.b16 %v1770, %v1768
        %v1805 = vpack.c.b16 %v1773, %v1771
        %v1806 = vpack.c.b16 %v1774, %v1772
        %1839 = vmatprep.subr.bf16.mxu0 %v1790
        %1840 = vmatpush1.bf16.msra.mxu0 %v1789
        %1841 = vmatprep.subr.bf16.mxu0 %v1788
        %1842 = vmatpush1.bf16.msra.mxu0 %v1787
        %1843 = vmatprep.subr.bf16.mxu0 %v1786
        %1844 = vmatpush1.bf16.msra.mxu0 %v1785
        %1845 = vmatprep.subr.bf16.mxu0 %v1784
        %1846 = vmatpush1.bf16.msra.mxu0 %v1783
        %1847 = vmatprep.subr.bf16.mxu0 %v1782
        %1848 = vmatpush1.bf16.msra.mxu0 %v1781
        %1849 = vmatprep.subr.bf16.mxu0 %v1780
        %1850 = vmatpush1.bf16.msra.mxu0 %v1779
        %1851 = vmatprep.subr.bf16.mxu0 %v1778
        %1852 = vmatpush1.bf16.msra.mxu0 %v1777
        %1853 = vmatprep.subr.bf16.mxu0 %v1776
        %1854 = vmatpush1.bf16.msra.mxu0 %v1775
        %1855 = vmatprep.subr.bf16.mxu0 %v1806
        %1856 = vmatpush2.bf16.msra.mxu0 %v1805
        %1857 = vmatprep.subr.bf16.mxu0 %v1804
        %1858 = vmatpush2.bf16.msra.mxu0 %v1803
        %1859 = vmatprep.subr.bf16.mxu0 %v1802
        %1860 = vmatpush2.bf16.msra.mxu0 %v1801
        %1861 = vmatprep.subr.bf16.mxu0 %v1800
        %1862 = vmatpush2.bf16.msra.mxu0 %v1799
        %1863 = vmatprep.subr.bf16.mxu0 %v1798
        %1864 = vmatpush2.bf16.msra.mxu0 %v1797
        %1865 = vmatprep.subr.bf16.mxu0 %v1796
        %1866 = vmatpush2.bf16.msra.mxu0 %v1795
        %1867 = vmatprep.subr.bf16.mxu0 %v1794
        %1868 = vmatpush2.bf16.msra.mxu0 %v1793
        %1869 = vmatprep.subr.bf16.mxu0 %v1792
        %1870 = vmatpush2.bf16.msra.mxu0 %v1791
        %1871 = vmatprep.mubr.bf16.mxu0 %v1670
        %1872 = vmatmul.mubr.bf16.gmra.mxu0 %v1669
        %v1873 = vpop.f32.mrf.mxu0
        %v1874 = vadd.f32 %v1674, %v1873
        %v1875 = vpop.f32.mrf.mxu0
        %v1876 = vadd.f32 %v1678, %v1875
        %v1877 = vpop.f32.mrf.mxu0
        %v1878 = vadd.f32 %v1674, %v1877
        %v1879 = vpop.f32.mrf.mxu0
        %v1880 = vadd.f32 %v1678, %v1879
        %1881 = vdwg.mxu0
        %v1882 = vld [vmem:[#allocation10] sm:$0xff]
        %v1884 = vsel %vm1018, %v1882, 0
        %1886 = vmatprep.subr.mxu0 0.0
        %1887 = vmatpush1.msra.mxu0 0.0
        %1888 = vmatprep.subr.mxu0 0.0
        %1889 = vmatpush1.msra.mxu0 0.0
        %1890 = vmatprep.subr.mxu0 0.0
        %1891 = vmatpush1.msra.mxu0 0.0
        %1892 = vmatprep.subr.mxu0 0.0
        %1893 = vmatpush1.msra.mxu0 0.0
        %1894 = vmatprep.subr.mxu0 0.0
        %1895 = vmatpush1.msra.mxu0 0.0
        %1896 = vmatprep.subr.mxu0 0.0
        %1897 = vmatpush1.msra.mxu0 0.0
        %1898 = vmatprep.subr.mxu0 0.0
        %1899 = vmatpush1.msra.mxu0 0.0
        %1900 = vmatprep.subr.mxu0 0.0
        %1901 = vmatpush1.msra.mxu0 0.0
        %1902 = vmatprep.subr.mxu0 0.0
        %1903 = vmatpush1.msra.mxu0 0.0
        %1904 = vmatprep.subr.mxu0 0.0
        %1905 = vmatpush1.msra.mxu0 0.0
        %1906 = vmatprep.subr.mxu0 0.0
        %1907 = vmatpush1.msra.mxu0 0.0
        %1908 = vmatprep.subr.mxu0 0.0
        %1909 = vmatpush1.msra.mxu0 0.0
        %1910 = vmatprep.subr.mxu0 0.0
        %1911 = vmatpush1.msra.mxu0 0.0
        %1912 = vmatprep.subr.mxu0 0.0
        %1913 = vmatpush1.msra.mxu0 0.0
        %1914 = vmatprep.subr.mxu0 %v1880
        %1915 = vmatpush1.msra.mxu0 %v1878
        %1916 = vmatprep.subr.mxu0 %v1876
        %1917 = vmatpush1.msra.mxu0 %v1874
        %1918 = vmatprep.subr.mxu0 0.0
        %1919 = vmatpush2.msra.mxu0 0.0
        %1920 = vmatprep.subr.mxu0 0.0
        %1921 = vmatpush2.msra.mxu0 0.0
        %1922 = vmatprep.subr.mxu0 0.0
        %1923 = vmatpush2.msra.mxu0 0.0
        %1924 = vmatprep.subr.mxu0 0.0
        %1925 = vmatpush2.msra.mxu0 0.0
        %1926 = vmatprep.subr.mxu0 0.0
        %1927 = vmatpush2.msra.mxu0 0.0
        %1928 = vmatprep.subr.mxu0 0.0
        %1929 = vmatpush2.msra.mxu0 0.0
        %1930 = vmatprep.subr.mxu0 0.0
        %1931 = vmatpush2.msra.mxu0 0.0
        %1932 = vmatprep.subr.mxu0 0.0
        %1933 = vmatpush2.msra.mxu0 0.0
        %1934 = vmatprep.subr.mxu0 0.0
        %1935 = vmatpush2.msra.mxu0 0.0
        %1936 = vmatprep.subr.mxu0 0.0
        %1937 = vmatpush2.msra.mxu0 0.0
        %1938 = vmatprep.subr.mxu0 0.0
        %1939 = vmatpush2.msra.mxu0 0.0
        %1940 = vmatprep.subr.mxu0 0.0
        %1941 = vmatpush2.msra.mxu0 0.0
        %1942 = vmatprep.subr.mxu0 0.0
        %1943 = vmatpush2.msra.mxu0 0.0
        %1944 = vmatprep.subr.mxu0 0.0
        %1945 = vmatpush2.msra.mxu0 0.0
        %1946 = vmatprep.subr.mxu0 0.0
        %1947 = vmatpush2.msra.mxu0 0.0
        %1948 = vmatprep.subr.mxu0 0.0
        %1949 = vmatpush2.msra.mxu0 0.0
        %1950 = vmatprep.mubr.f32.mxu0 0.0
        %1951 = vmatmul.mubr.f32.gmra.mxu0 %v1884
        %v1952 = vpop.f32.mrf.mxu0
        %v1953 = vadd.f32 0.0, %v1952
        %v1954 = vpop.f32.mrf.mxu0
        %v1955 = vadd.f32 0.0, %v1954
        %1956 = vdwg.mxu0
        %v1957 = vld [vmem:[%s638] sm:$0xff]
        %v1958 = vld [vmem:[%s638 + $0x8] sm:$0xff]
        %v1959 = vld [vmem:[%s638 + $0x10] sm:$0xff]
        %v1960 = vld [vmem:[%s638 + $0x18] sm:$0xff]
        %v1961 = vld [vmem:[%s638 + $0x20] sm:$0xff]
        %v1962 = vld [vmem:[%s638 + $0x28] sm:$0xff]
        %v1963 = vld [vmem:[%s638 + $0x30] sm:$0xff]
        %v1964 = vld [vmem:[%s638 + $0x38] sm:$0xff]
        %v1965 = vld [vmem:[%s638 + $0x40] sm:$0xff]
        %v1966 = vld [vmem:[%s638 + $0x48] sm:$0xff]
        %v1967 = vld [vmem:[%s638 + $0x50] sm:$0xff]
        %v1968 = vld [vmem:[%s638 + $0x58] sm:$0xff]
        %v1969 = vld [vmem:[%s638 + $0x60] sm:$0xff]
        %v1970 = vld [vmem:[%s638 + $0x68] sm:$0xff]
        %v1971 = vld [vmem:[%s638 + $0x70] sm:$0xff]
        %v1972 = vld [vmem:[%s638 + $0x78] sm:$0xff]
        %v1973 = vld [vmem:[%s638 + $0x80] sm:$0xff]
        %v1974 = vld [vmem:[%s638 + $0x88] sm:$0xff]
        %v1975 = vld [vmem:[%s638 + $0x90] sm:$0xff]
        %v1976 = vld [vmem:[%s638 + $0x98] sm:$0xff]
        %v1977 = vld [vmem:[%s638 + $0xa0] sm:$0xff]
        %v1978 = vld [vmem:[%s638 + $0xa8] sm:$0xff]
        %v1979 = vld [vmem:[%s638 + $0xb0] sm:$0xff]
        %v1980 = vld [vmem:[%s638 + $0xb8] sm:$0xff]
        %v1981 = vld [vmem:[%s638 + $0xc0] sm:$0xff]
        %v1982 = vld [vmem:[%s638 + $0xc8] sm:$0xff]
        %v1983 = vld [vmem:[%s638 + $0xd0] sm:$0xff]
        %v1984 = vld [vmem:[%s638 + $0xd8] sm:$0xff]
        %v1985 = vld [vmem:[%s638 + $0xe0] sm:$0xff]
        %v1986 = vld [vmem:[%s638 + $0xe8] sm:$0xff]
        %v1987 = vld [vmem:[%s638 + $0xf0] sm:$0xff]
        %v1988 = vld [vmem:[%s638 + $0xf8] sm:$0xff]
        %v1989 = vld [vmem:[%s638 + $0x100] sm:$0xff]
        %v1990 = vld [vmem:[%s638 + $0x108] sm:$0xff]
        %v1991 = vld [vmem:[%s638 + $0x110] sm:$0xff]
        %v1992 = vld [vmem:[%s638 + $0x118] sm:$0xff]
        %v1993 = vld [vmem:[%s638 + $0x120] sm:$0xff]
        %v1994 = vld [vmem:[%s638 + $0x128] sm:$0xff]
        %v1995 = vld [vmem:[%s638 + $0x130] sm:$0xff]
        %v1996 = vld [vmem:[%s638 + $0x138] sm:$0xff]
        %v1997 = vld [vmem:[%s638 + $0x140] sm:$0xff]
        %v1998 = vld [vmem:[%s638 + $0x148] sm:$0xff]
        %v1999 = vld [vmem:[%s638 + $0x150] sm:$0xff]
        %v2000 = vld [vmem:[%s638 + $0x158] sm:$0xff]
        %v2001 = vld [vmem:[%s638 + $0x160] sm:$0xff]
        %v2002 = vld [vmem:[%s638 + $0x168] sm:$0xff]
        %v2003 = vld [vmem:[%s638 + $0x170] sm:$0xff]
        %v2004 = vld [vmem:[%s638 + $0x178] sm:$0xff]
        %v2005 = vld [vmem:[%s638 + $0x180] sm:$0xff]
        %v2006 = vld [vmem:[%s638 + $0x188] sm:$0xff]
        %v2007 = vld [vmem:[%s638 + $0x190] sm:$0xff]
        %v2008 = vld [vmem:[%s638 + $0x198] sm:$0xff]
        %v2009 = vld [vmem:[%s638 + $0x1a0] sm:$0xff]
        %v2010 = vld [vmem:[%s638 + $0x1a8] sm:$0xff]
        %v2011 = vld [vmem:[%s638 + $0x1b0] sm:$0xff]
        %v2012 = vld [vmem:[%s638 + $0x1b8] sm:$0xff]
        %v2013 = vld [vmem:[%s638 + $0x1c0] sm:$0xff]
        %v2014 = vld [vmem:[%s638 + $0x1c8] sm:$0xff]
        %v2015 = vld [vmem:[%s638 + $0x1d0] sm:$0xff]
        %v2016 = vld [vmem:[%s638 + $0x1d8] sm:$0xff]
        %v2017 = vld [vmem:[%s638 + $0x1e0] sm:$0xff]
        %v2018 = vld [vmem:[%s638 + $0x1e8] sm:$0xff]
        %v2019 = vld [vmem:[%s638 + $0x1f0] sm:$0xff]
        %v2020 = vld [vmem:[%s638 + $0x1f8] sm:$0xff]
        %v2021 = vpack.c.bf16 %v1953, %v1953
        %v2022 = vpack.c.bf16 %v1955, %v1955
        %v2023 = vlaneseq
        %v2024 = vshrl.u32 %v2023, 7
        %v2025 = vsub.s32 4, %v2024
        %v2026 = vrot.slane %v752, %v2025
        %v2027 = vlaneseq
        %v2028 = vshrl.u32 %v2027, 7
        %v2029 = vsub.s32 4, %v2028
        %v2030 = vrot.slane %v753, %v2029
        %v2095 = vunpack.c.l.b16 %v1957
        %v2096 = vunpack.c.h.b16 %v1957
        %v2097 = vunpack.c.l.b16 %v1958
        %v2098 = vunpack.c.h.b16 %v1958
        %v2099 = vunpack.c.l.b16 %v1959
        %v2100 = vunpack.c.h.b16 %v1959
        %v2101 = vunpack.c.l.b16 %v1960
        %v2102 = vunpack.c.h.b16 %v1960
        %v2103 = vunpack.c.l.b16 %v1961
        %v2104 = vunpack.c.h.b16 %v1961
        %v2105 = vunpack.c.l.b16 %v1962
        %v2106 = vunpack.c.h.b16 %v1962
        %v2107 = vunpack.c.l.b16 %v1963
        %v2108 = vunpack.c.h.b16 %v1963
        %v2109 = vunpack.c.l.b16 %v1964
        %v2110 = vunpack.c.h.b16 %v1964
        %v2111 = vunpack.c.l.b16 %v1965
        %v2112 = vunpack.c.h.b16 %v1965
        %v2113 = vunpack.c.l.b16 %v1966
        %v2114 = vunpack.c.h.b16 %v1966
        %v2115 = vunpack.c.l.b16 %v1967
        %v2116 = vunpack.c.h.b16 %v1967
        %v2117 = vunpack.c.l.b16 %v1968
        %v2118 = vunpack.c.h.b16 %v1968
        %v2119 = vunpack.c.l.b16 %v1969
        %v2120 = vunpack.c.h.b16 %v1969
        %v2121 = vunpack.c.l.b16 %v1970
        %v2122 = vunpack.c.h.b16 %v1970
        %v2123 = vunpack.c.l.b16 %v1971
        %v2124 = vunpack.c.h.b16 %v1971
        %v2125 = vunpack.c.l.b16 %v1972
        %v2126 = vunpack.c.h.b16 %v1972
        %v2127 = vunpack.c.l.b16 %v1973
        %v2128 = vunpack.c.h.b16 %v1973
        %v2129 = vunpack.c.l.b16 %v1974
        %v2130 = vunpack.c.h.b16 %v1974
        %v2131 = vunpack.c.l.b16 %v1975
        %v2132 = vunpack.c.h.b16 %v1975
        %v2133 = vunpack.c.l.b16 %v1976
        %v2134 = vunpack.c.h.b16 %v1976
        %v2135 = vunpack.c.l.b16 %v1977
        %v2136 = vunpack.c.h.b16 %v1977
        %v2137 = vunpack.c.l.b16 %v1978
        %v2138 = vunpack.c.h.b16 %v1978
        %v2139 = vunpack.c.l.b16 %v1979
        %v2140 = vunpack.c.h.b16 %v1979
        %v2141 = vunpack.c.l.b16 %v1980
        %v2142 = vunpack.c.h.b16 %v1980
        %v2143 = vunpack.c.l.b16 %v1981
        %v2144 = vunpack.c.h.b16 %v1981
        %v2145 = vunpack.c.l.b16 %v1982
        %v2146 = vunpack.c.h.b16 %v1982
        %v2147 = vunpack.c.l.b16 %v1983
        %v2148 = vunpack.c.h.b16 %v1983
        %v2149 = vunpack.c.l.b16 %v1984
        %v2150 = vunpack.c.h.b16 %v1984
        %v2151 = vunpack.c.l.b16 %v1985
        %v2152 = vunpack.c.h.b16 %v1985
        %v2153 = vunpack.c.l.b16 %v1986
        %v2154 = vunpack.c.h.b16 %v1986
        %v2155 = vunpack.c.l.b16 %v1987
        %v2156 = vunpack.c.h.b16 %v1987
        %v2157 = vunpack.c.l.b16 %v1988
        %v2158 = vunpack.c.h.b16 %v1988
        %v2159 = vunpack.c.l.b16 %v1989
        %v2160 = vunpack.c.h.b16 %v1989
        %v2161 = vunpack.c.l.b16 %v1990
        %v2162 = vunpack.c.h.b16 %v1990
        %v2163 = vunpack.c.l.b16 %v1991
        %v2164 = vunpack.c.h.b16 %v1991
        %v2165 = vunpack.c.l.b16 %v1992
        %v2166 = vunpack.c.h.b16 %v1992
        %v2167 = vunpack.c.l.b16 %v1993
        %v2168 = vunpack.c.h.b16 %v1993
        %v2169 = vunpack.c.l.b16 %v1994
        %v2170 = vunpack.c.h.b16 %v1994
        %v2171 = vunpack.c.l.b16 %v1995
        %v2172 = vunpack.c.h.b16 %v1995
        %v2173 = vunpack.c.l.b16 %v1996
        %v2174 = vunpack.c.h.b16 %v1996
        %v2175 = vunpack.c.l.b16 %v1997
        %v2176 = vunpack.c.h.b16 %v1997
        %v2177 = vunpack.c.l.b16 %v1998
        %v2178 = vunpack.c.h.b16 %v1998
        %v2179 = vunpack.c.l.b16 %v1999
        %v2180 = vunpack.c.h.b16 %v1999
        %v2181 = vunpack.c.l.b16 %v2000
        %v2182 = vunpack.c.h.b16 %v2000
        %v2183 = vunpack.c.l.b16 %v2001
        %v2184 = vunpack.c.h.b16 %v2001
        %v2185 = vunpack.c.l.b16 %v2002
        %v2186 = vunpack.c.h.b16 %v2002
        %v2187 = vunpack.c.l.b16 %v2003
        %v2188 = vunpack.c.h.b16 %v2003
        %v2189 = vunpack.c.l.b16 %v2004
        %v2190 = vunpack.c.h.b16 %v2004
        %v2191 = vunpack.c.l.b16 %v2005
        %v2192 = vunpack.c.h.b16 %v2005
        %v2193 = vunpack.c.l.b16 %v2006
        %v2194 = vunpack.c.h.b16 %v2006
        %v2195 = vunpack.c.l.b16 %v2007
        %v2196 = vunpack.c.h.b16 %v2007
        %v2197 = vunpack.c.l.b16 %v2008
        %v2198 = vunpack.c.h.b16 %v2008
        %v2199 = vunpack.c.l.b16 %v2009
        %v2200 = vunpack.c.h.b16 %v2009
        %v2201 = vunpack.c.l.b16 %v2010
        %v2202 = vunpack.c.h.b16 %v2010
        %v2203 = vunpack.c.l.b16 %v2011
        %v2204 = vunpack.c.h.b16 %v2011
        %v2205 = vunpack.c.l.b16 %v2012
        %v2206 = vunpack.c.h.b16 %v2012
        %v2207 = vunpack.c.l.b16 %v2013
        %v2208 = vunpack.c.h.b16 %v2013
        %v2209 = vunpack.c.l.b16 %v2014
        %v2210 = vunpack.c.h.b16 %v2014
        %v2211 = vunpack.c.l.b16 %v2015
        %v2212 = vunpack.c.h.b16 %v2015
        %v2213 = vunpack.c.l.b16 %v2016
        %v2214 = vunpack.c.h.b16 %v2016
        %v2215 = vunpack.c.l.b16 %v2017
        %v2216 = vunpack.c.h.b16 %v2017
        %v2217 = vunpack.c.l.b16 %v2018
        %v2218 = vunpack.c.h.b16 %v2018
        %v2219 = vunpack.c.l.b16 %v2019
        %v2220 = vunpack.c.h.b16 %v2019
        %v2221 = vunpack.c.l.b16 %v2020
        %v2222 = vunpack.c.h.b16 %v2020
        %v2223 = vpack.c.b16 %v2097, %v2095
        %v2224 = vpack.c.b16 %v2098, %v2096
        %v2225 = vpack.c.b16 %v2101, %v2099
        %v2226 = vpack.c.b16 %v2102, %v2100
        %v2227 = vpack.c.b16 %v2105, %v2103
        %v2228 = vpack.c.b16 %v2106, %v2104
        %v2229 = vpack.c.b16 %v2109, %v2107
        %v2230 = vpack.c.b16 %v2110, %v2108
        %v2231 = vpack.c.b16 %v2113, %v2111
        %v2232 = vpack.c.b16 %v2114, %v2112
        %v2233 = vpack.c.b16 %v2117, %v2115
        %v2234 = vpack.c.b16 %v2118, %v2116
        %v2235 = vpack.c.b16 %v2121, %v2119
        %v2236 = vpack.c.b16 %v2122, %v2120
        %v2237 = vpack.c.b16 %v2125, %v2123
        %v2238 = vpack.c.b16 %v2126, %v2124
        %v2239 = vpack.c.b16 %v2129, %v2127
        %v2240 = vpack.c.b16 %v2130, %v2128
        %v2241 = vpack.c.b16 %v2133, %v2131
        %v2242 = vpack.c.b16 %v2134, %v2132
        %v2243 = vpack.c.b16 %v2137, %v2135
        %v2244 = vpack.c.b16 %v2138, %v2136
        %v2245 = vpack.c.b16 %v2141, %v2139
        %v2246 = vpack.c.b16 %v2142, %v2140
        %v2247 = vpack.c.b16 %v2145, %v2143
        %v2248 = vpack.c.b16 %v2146, %v2144
        %v2249 = vpack.c.b16 %v2149, %v2147
        %v2250 = vpack.c.b16 %v2150, %v2148
        %v2251 = vpack.c.b16 %v2153, %v2151
        %v2252 = vpack.c.b16 %v2154, %v2152
        %v2253 = vpack.c.b16 %v2157, %v2155
        %v2254 = vpack.c.b16 %v2158, %v2156
        %v2255 = vpack.c.b16 %v2161, %v2159
        %v2256 = vpack.c.b16 %v2162, %v2160
        %v2257 = vpack.c.b16 %v2165, %v2163
        %v2258 = vpack.c.b16 %v2166, %v2164
        %v2259 = vpack.c.b16 %v2169, %v2167
        %v2260 = vpack.c.b16 %v2170, %v2168
        %v2261 = vpack.c.b16 %v2173, %v2171
        %v2262 = vpack.c.b16 %v2174, %v2172
        %v2263 = vpack.c.b16 %v2177, %v2175
        %v2264 = vpack.c.b16 %v2178, %v2176
        %v2265 = vpack.c.b16 %v2181, %v2179
        %v2266 = vpack.c.b16 %v2182, %v2180
        %v2267 = vpack.c.b16 %v2185, %v2183
        %v2268 = vpack.c.b16 %v2186, %v2184
        %v2269 = vpack.c.b16 %v2189, %v2187
        %v2270 = vpack.c.b16 %v2190, %v2188
        %v2271 = vpack.c.b16 %v2193, %v2191
        %v2272 = vpack.c.b16 %v2194, %v2192
        %v2273 = vpack.c.b16 %v2197, %v2195
        %v2274 = vpack.c.b16 %v2198, %v2196
        %v2275 = vpack.c.b16 %v2201, %v2199
        %v2276 = vpack.c.b16 %v2202, %v2200
        %v2277 = vpack.c.b16 %v2205, %v2203
        %v2278 = vpack.c.b16 %v2206, %v2204
        %v2279 = vpack.c.b16 %v2209, %v2207
        %v2280 = vpack.c.b16 %v2210, %v2208
        %v2281 = vpack.c.b16 %v2213, %v2211
        %v2282 = vpack.c.b16 %v2214, %v2212
        %v2283 = vpack.c.b16 %v2217, %v2215
        %v2284 = vpack.c.b16 %v2218, %v2216
        %v2285 = vpack.c.b16 %v2221, %v2219
        %v2286 = vpack.c.b16 %v2222, %v2220
        %2351 = vmatprep.subr.bf16.mxu0 %v2238
        %2352 = vmatpush1.bf16.msra.mxu0 %v2237
        %2353 = vmatprep.subr.bf16.mxu0 %v2236
        %2354 = vmatpush1.bf16.msra.mxu0 %v2235
        %2355 = vmatprep.subr.bf16.mxu0 %v2234
        %2356 = vmatpush1.bf16.msra.mxu0 %v2233
        %2357 = vmatprep.subr.bf16.mxu0 %v2232
        %2358 = vmatpush1.bf16.msra.mxu0 %v2231
        %2359 = vmatprep.subr.bf16.mxu0 %v2230
        %2360 = vmatpush1.bf16.msra.mxu0 %v2229
        %2361 = vmatprep.subr.bf16.mxu0 %v2228
        %2362 = vmatpush1.bf16.msra.mxu0 %v2227
        %2363 = vmatprep.subr.bf16.mxu0 %v2226
        %2364 = vmatpush1.bf16.msra.mxu0 %v2225
        %2365 = vmatprep.subr.bf16.mxu0 %v2224
        %2366 = vmatpush1.bf16.msra.mxu0 %v2223
        %2367 = vmatprep.subr.bf16.mxu0 %v2254
        %2368 = vmatpush2.bf16.msra.mxu0 %v2253
        %2369 = vmatprep.subr.bf16.mxu0 %v2252
        %2370 = vmatpush2.bf16.msra.mxu0 %v2251
        %2371 = vmatprep.subr.bf16.mxu0 %v2250
        %2372 = vmatpush2.bf16.msra.mxu0 %v2249
        %2373 = vmatprep.subr.bf16.mxu0 %v2248
        %2374 = vmatpush2.bf16.msra.mxu0 %v2247
        %2375 = vmatprep.subr.bf16.mxu0 %v2246
        %2376 = vmatpush2.bf16.msra.mxu0 %v2245
        %2377 = vmatprep.subr.bf16.mxu0 %v2244
        %2378 = vmatpush2.bf16.msra.mxu0 %v2243
        %2379 = vmatprep.subr.bf16.mxu0 %v2242
        %2380 = vmatpush2.bf16.msra.mxu0 %v2241
        %2381 = vmatprep.subr.bf16.mxu0 %v2240
        %2382 = vmatpush2.bf16.msra.mxu0 %v2239
        %2383 = vmatprep.mubr.bf16.mxu0 %v787
        %2384 = vmatmul.mubr.bf16.gmra.mxu0 %v786
        %v2385 = vpop.f32.mrf.mxu0
        %v2386 = vadd.f32 %v2026, %v2385
        %v2387 = vpop.f32.mrf.mxu0
        %v2388 = vadd.f32 %v2030, %v2387
        %v2389 = vpop.f32.mrf.mxu0
        %v2390 = vpop.f32.mrf.mxu0
        %2391 = vdwg.mxu0
        %2392 = vmatprep.subr.bf16.mxu0 %v2270
        %2393 = vmatpush1.bf16.msra.mxu0 %v2269
        %2394 = vmatprep.subr.bf16.mxu0 %v2268
        %2395 = vmatpush1.bf16.msra.mxu0 %v2267
        %2396 = vmatprep.subr.bf16.mxu0 %v2266
        %2397 = vmatpush1.bf16.msra.mxu0 %v2265
        %2398 = vmatprep.subr.bf16.mxu0 %v2264
        %2399 = vmatpush1.bf16.msra.mxu0 %v2263
        %2400 = vmatprep.subr.bf16.mxu0 %v2262
        %2401 = vmatpush1.bf16.msra.mxu0 %v2261
        %2402 = vmatprep.subr.bf16.mxu0 %v2260
        %2403 = vmatpush1.bf16.msra.mxu0 %v2259
        %2404 = vmatprep.subr.bf16.mxu0 %v2258
        %2405 = vmatpush1.bf16.msra.mxu0 %v2257
        %2406 = vmatprep.subr.bf16.mxu0 %v2256
        %2407 = vmatpush1.bf16.msra.mxu0 %v2255
        %2408 = vmatprep.subr.bf16.mxu0 %v2286
        %2409 = vmatpush2.bf16.msra.mxu0 %v2285
        %2410 = vmatprep.subr.bf16.mxu0 %v2284
        %2411 = vmatpush2.bf16.msra.mxu0 %v2283
        %2412 = vmatprep.subr.bf16.mxu0 %v2282
        %2413 = vmatpush2.bf16.msra.mxu0 %v2281
        %2414 = vmatprep.subr.bf16.mxu0 %v2280
        %2415 = vmatpush2.bf16.msra.mxu0 %v2279
        %2416 = vmatprep.subr.bf16.mxu0 %v2278
        %2417 = vmatpush2.bf16.msra.mxu0 %v2277
        %2418 = vmatprep.subr.bf16.mxu0 %v2276
        %2419 = vmatpush2.bf16.msra.mxu0 %v2275
        %2420 = vmatprep.subr.bf16.mxu0 %v2274
        %2421 = vmatpush2.bf16.msra.mxu0 %v2273
        %2422 = vmatprep.subr.bf16.mxu0 %v2272
        %2423 = vmatpush2.bf16.msra.mxu0 %v2271
        %2424 = vmatprep.mubr.bf16.mxu0 %v2022
        %2425 = vmatmul.mubr.bf16.gmra.mxu0 %v2021
        %v2426 = vpop.f32.mrf.mxu0
        %v2427 = vadd.f32 %v2386, %v2426
        %v2428 = vpop.f32.mrf.mxu0
        %v2429 = vadd.f32 %v2388, %v2428
        %v2430 = vpop.f32.mrf.mxu0
        %v2431 = vpop.f32.mrf.mxu0
        %2432 = vdwg.mxu0
        %v2433 = vmax.f32 %v2427, 0.0
        %v2434 = vmax.f32 %v2429, 0.0
        %v2435 = vld [vmem:[%s647] sm:$0xff]
        %v2436 = vld [vmem:[%s647 + $0x8] sm:$0xff]
        %v2437 = vld [vmem:[%s647 + $0x10] sm:$0xff]
        %v2438 = vld [vmem:[%s647 + $0x18] sm:$0xff]
        %v2439 = vld [vmem:[%s647 + $0x20] sm:$0xff]
        %v2440 = vld [vmem:[%s647 + $0x28] sm:$0xff]
        %v2441 = vld [vmem:[%s647 + $0x30] sm:$0xff]
        %v2442 = vld [vmem:[%s647 + $0x38] sm:$0xff]
        %v2443 = vld [vmem:[%s647 + $0x40] sm:$0xff]
        %v2444 = vld [vmem:[%s647 + $0x48] sm:$0xff]
        %v2445 = vld [vmem:[%s647 + $0x50] sm:$0xff]
        %v2446 = vld [vmem:[%s647 + $0x58] sm:$0xff]
        %v2447 = vld [vmem:[%s647 + $0x60] sm:$0xff]
        %v2448 = vld [vmem:[%s647 + $0x68] sm:$0xff]
        %v2449 = vld [vmem:[%s647 + $0x70] sm:$0xff]
        %v2450 = vld [vmem:[%s647 + $0x78] sm:$0xff]
        %v2451 = vld [vmem:[%s647 + $0x80] sm:$0xff]
        %v2452 = vld [vmem:[%s647 + $0x88] sm:$0xff]
        %v2453 = vld [vmem:[%s647 + $0x90] sm:$0xff]
        %v2454 = vld [vmem:[%s647 + $0x98] sm:$0xff]
        %v2455 = vld [vmem:[%s647 + $0xa0] sm:$0xff]
        %v2456 = vld [vmem:[%s647 + $0xa8] sm:$0xff]
        %v2457 = vld [vmem:[%s647 + $0xb0] sm:$0xff]
        %v2458 = vld [vmem:[%s647 + $0xb8] sm:$0xff]
        %v2459 = vld [vmem:[%s647 + $0xc0] sm:$0xff]
        %v2460 = vld [vmem:[%s647 + $0xc8] sm:$0xff]
        %v2461 = vld [vmem:[%s647 + $0xd0] sm:$0xff]
        %v2462 = vld [vmem:[%s647 + $0xd8] sm:$0xff]
        %v2463 = vld [vmem:[%s647 + $0xe0] sm:$0xff]
        %v2464 = vld [vmem:[%s647 + $0xe8] sm:$0xff]
        %v2465 = vld [vmem:[%s647 + $0xf0] sm:$0xff]
        %v2466 = vld [vmem:[%s647 + $0xf8] sm:$0xff]
        %v2467 = vpack.c.bf16 %v2433, %v2433
        %v2468 = vpack.c.bf16 %v2434, %v2434
        %v2469 = vlaneseq
        %v2470 = vshrl.u32 %v2469, 7
        %v2471 = vsub.s32 5, %v2470
        %v2472 = vrot.slane %v752, %v2471
        %v2473 = vlaneseq
        %v2474 = vshrl.u32 %v2473, 7
        %v2475 = vsub.s32 5, %v2474
        %v2476 = vrot.slane %v753, %v2475
        %v2509 = vunpack.c.l.b16 %v2435
        %v2510 = vunpack.c.h.b16 %v2435
        %v2511 = vunpack.c.l.b16 %v2436
        %v2512 = vunpack.c.h.b16 %v2436
        %v2513 = vunpack.c.l.b16 %v2437
        %v2514 = vunpack.c.h.b16 %v2437
        %v2515 = vunpack.c.l.b16 %v2438
        %v2516 = vunpack.c.h.b16 %v2438
        %v2517 = vunpack.c.l.b16 %v2439
        %v2518 = vunpack.c.h.b16 %v2439
        %v2519 = vunpack.c.l.b16 %v2440
        %v2520 = vunpack.c.h.b16 %v2440
        %v2521 = vunpack.c.l.b16 %v2441
        %v2522 = vunpack.c.h.b16 %v2441
        %v2523 = vunpack.c.l.b16 %v2442
        %v2524 = vunpack.c.h.b16 %v2442
        %v2525 = vunpack.c.l.b16 %v2443
        %v2526 = vunpack.c.h.b16 %v2443
        %v2527 = vunpack.c.l.b16 %v2444
        %v2528 = vunpack.c.h.b16 %v2444
        %v2529 = vunpack.c.l.b16 %v2445
        %v2530 = vunpack.c.h.b16 %v2445
        %v2531 = vunpack.c.l.b16 %v2446
        %v2532 = vunpack.c.h.b16 %v2446
        %v2533 = vunpack.c.l.b16 %v2447
        %v2534 = vunpack.c.h.b16 %v2447
        %v2535 = vunpack.c.l.b16 %v2448
        %v2536 = vunpack.c.h.b16 %v2448
        %v2537 = vunpack.c.l.b16 %v2449
        %v2538 = vunpack.c.h.b16 %v2449
        %v2539 = vunpack.c.l.b16 %v2450
        %v2540 = vunpack.c.h.b16 %v2450
        %v2541 = vunpack.c.l.b16 %v2451
        %v2542 = vunpack.c.h.b16 %v2451
        %v2543 = vunpack.c.l.b16 %v2452
        %v2544 = vunpack.c.h.b16 %v2452
        %v2545 = vunpack.c.l.b16 %v2453
        %v2546 = vunpack.c.h.b16 %v2453
        %v2547 = vunpack.c.l.b16 %v2454
        %v2548 = vunpack.c.h.b16 %v2454
        %v2549 = vunpack.c.l.b16 %v2455
        %v2550 = vunpack.c.h.b16 %v2455
        %v2551 = vunpack.c.l.b16 %v2456
        %v2552 = vunpack.c.h.b16 %v2456
        %v2553 = vunpack.c.l.b16 %v2457
        %v2554 = vunpack.c.h.b16 %v2457
        %v2555 = vunpack.c.l.b16 %v2458
        %v2556 = vunpack.c.h.b16 %v2458
        %v2557 = vunpack.c.l.b16 %v2459
        %v2558 = vunpack.c.h.b16 %v2459
        %v2559 = vunpack.c.l.b16 %v2460
        %v2560 = vunpack.c.h.b16 %v2460
        %v2561 = vunpack.c.l.b16 %v2461
        %v2562 = vunpack.c.h.b16 %v2461
        %v2563 = vunpack.c.l.b16 %v2462
        %v2564 = vunpack.c.h.b16 %v2462
        %v2565 = vunpack.c.l.b16 %v2463
        %v2566 = vunpack.c.h.b16 %v2463
        %v2567 = vunpack.c.l.b16 %v2464
        %v2568 = vunpack.c.h.b16 %v2464
        %v2569 = vunpack.c.l.b16 %v2465
        %v2570 = vunpack.c.h.b16 %v2465
        %v2571 = vunpack.c.l.b16 %v2466
        %v2572 = vunpack.c.h.b16 %v2466
        %v2573 = vpack.c.b16 %v2511, %v2509
        %v2574 = vpack.c.b16 %v2512, %v2510
        %v2575 = vpack.c.b16 %v2515, %v2513
        %v2576 = vpack.c.b16 %v2516, %v2514
        %v2577 = vpack.c.b16 %v2519, %v2517
        %v2578 = vpack.c.b16 %v2520, %v2518
        %v2579 = vpack.c.b16 %v2523, %v2521
        %v2580 = vpack.c.b16 %v2524, %v2522
        %v2581 = vpack.c.b16 %v2527, %v2525
        %v2582 = vpack.c.b16 %v2528, %v2526
        %v2583 = vpack.c.b16 %v2531, %v2529
        %v2584 = vpack.c.b16 %v2532, %v2530
        %v2585 = vpack.c.b16 %v2535, %v2533
        %v2586 = vpack.c.b16 %v2536, %v2534
        %v2587 = vpack.c.b16 %v2539, %v2537
        %v2588 = vpack.c.b16 %v2540, %v2538
        %v2589 = vpack.c.b16 %v2543, %v2541
        %v2590 = vpack.c.b16 %v2544, %v2542
        %v2591 = vpack.c.b16 %v2547, %v2545
        %v2592 = vpack.c.b16 %v2548, %v2546
        %v2593 = vpack.c.b16 %v2551, %v2549
        %v2594 = vpack.c.b16 %v2552, %v2550
        %v2595 = vpack.c.b16 %v2555, %v2553
        %v2596 = vpack.c.b16 %v2556, %v2554
        %v2597 = vpack.c.b16 %v2559, %v2557
        %v2598 = vpack.c.b16 %v2560, %v2558
        %v2599 = vpack.c.b16 %v2563, %v2561
        %v2600 = vpack.c.b16 %v2564, %v2562
        %v2601 = vpack.c.b16 %v2567, %v2565
        %v2602 = vpack.c.b16 %v2568, %v2566
        %v2603 = vpack.c.b16 %v2571, %v2569
        %v2604 = vpack.c.b16 %v2572, %v2570
        %2637 = vmatprep.subr.bf16.mxu0 %v2588
        %2638 = vmatpush1.bf16.msra.mxu0 %v2587
        %2639 = vmatprep.subr.bf16.mxu0 %v2586
        %2640 = vmatpush1.bf16.msra.mxu0 %v2585
        %2641 = vmatprep.subr.bf16.mxu0 %v2584
        %2642 = vmatpush1.bf16.msra.mxu0 %v2583
        %2643 = vmatprep.subr.bf16.mxu0 %v2582
        %2644 = vmatpush1.bf16.msra.mxu0 %v2581
        %2645 = vmatprep.subr.bf16.mxu0 %v2580
        %2646 = vmatpush1.bf16.msra.mxu0 %v2579
        %2647 = vmatprep.subr.bf16.mxu0 %v2578
        %2648 = vmatpush1.bf16.msra.mxu0 %v2577
        %2649 = vmatprep.subr.bf16.mxu0 %v2576
        %2650 = vmatpush1.bf16.msra.mxu0 %v2575
        %2651 = vmatprep.subr.bf16.mxu0 %v2574
        %2652 = vmatpush1.bf16.msra.mxu0 %v2573
        %2653 = vmatprep.subr.bf16.mxu0 %v2604
        %2654 = vmatpush2.bf16.msra.mxu0 %v2603
        %2655 = vmatprep.subr.bf16.mxu0 %v2602
        %2656 = vmatpush2.bf16.msra.mxu0 %v2601
        %2657 = vmatprep.subr.bf16.mxu0 %v2600
        %2658 = vmatpush2.bf16.msra.mxu0 %v2599
        %2659 = vmatprep.subr.bf16.mxu0 %v2598
        %2660 = vmatpush2.bf16.msra.mxu0 %v2597
        %2661 = vmatprep.subr.bf16.mxu0 %v2596
        %2662 = vmatpush2.bf16.msra.mxu0 %v2595
        %2663 = vmatprep.subr.bf16.mxu0 %v2594
        %2664 = vmatpush2.bf16.msra.mxu0 %v2593
        %2665 = vmatprep.subr.bf16.mxu0 %v2592
        %2666 = vmatpush2.bf16.msra.mxu0 %v2591
        %2667 = vmatprep.subr.bf16.mxu0 %v2590
        %2668 = vmatpush2.bf16.msra.mxu0 %v2589
        %2669 = vmatprep.mubr.bf16.mxu0 %v2468
        %2670 = vmatmul.mubr.bf16.gmra.mxu0 %v2467
        %v2671 = vpop.f32.mrf.mxu0
        %v2672 = vadd.f32 %v2472, %v2671
        %v2673 = vpop.f32.mrf.mxu0
        %v2674 = vadd.f32 %v2476, %v2673
        %v2675 = vpop.f32.mrf.mxu0
        %v2676 = vpop.f32.mrf.mxu0
        %2677 = vdwg.mxu0
        %v2678 = vadd.f32 %v2672, %v2674
        %2679 = vadd.xlane.f32.xlu0 %v2678
        %v2680 = vpop.xlane.xlu0 %2679
        %v2681 = vrcp.pop 256.0
        %v2682 = vmul.f32 %v2680, %v2681
        %v2683 = vsub.f32 %v2672, %v2682
        %v2684 = vsub.f32 %v2674, %v2682
        %v2685 = vmul.f32 %v2683, %v2683
        %v2686 = vmul.f32 %v2684, %v2684
        %v2687 = vadd.f32 %v2685, %v2686
        %2688 = vadd.xlane.f32.xlu0 %v2687
        %v2689 = vpop.xlane.xlu0 %2688
        %v2690 = vmul.f32 %v2689, %v2681
        %v2691 = vadd.f32 %v2690, 1e-05
        %v2692 = vrsqrt.pop %v2691
        %v2693 = vmul.f32 %v2683, %v2692
        %v2694 = vmul.f32 %v2684, %v2692
        %v2695 = vlaneseq
        %v2696 = vshrl.u32 %v2695, 7
        %v2697 = vsub.s32 6, %v2696
        %v2698 = vrot.slane %v752, %v2697
        %v2699 = vlaneseq
        %v2700 = vshrl.u32 %v2699, 7
        %v2701 = vsub.s32 6, %v2700
        %v2702 = vrot.slane %v753, %v2701
        %v2703 = vmul.f32 %v2693, %v2698
        %v2704 = vmul.f32 %v2694, %v2702
        %v2705 = vlaneseq
        %v2706 = vshrl.u32 %v2705, 7
        %v2707 = vsub.s32 7, %v2706
        %v2708 = vrot.slane %v752, %v2707
        %v2709 = vlaneseq
        %v2710 = vshrl.u32 %v2709, 7
        %v2711 = vsub.s32 7, %v2710
        %v2712 = vrot.slane %v753, %v2711
        %v2713 = vadd.f32 %v2703, %v2708
        %v2714 = vadd.f32 %v2704, %v2712
        %p2715 = scmp.gt.s32.totalorder %s42, 0
        %s2716 = scalar_select %p2715, 1, 0
        %v2717 = vstv %s2716
        %vm2718 = vcmp.eq.s32.totalorder %v2717, 1
        %v2719 = vsel %vm2718, %v748, 0.0
        %v2720 = vsel %vm2718, %v749, 0.0
        %v2721 = vadd.f32 %v2713, %v2719
        %v2722 = vadd.f32 %v2714, %v2720
        %v2723 = vmax.f32 %v2721, 0.0
        %v2724 = vmax.f32 %v2722, 0.0
        %2725 = vst [vmem:[#allocation2] sm:$0xff] %v2723
        %2726 = vst [vmem:[#allocation2 + $0x8] sm:$0xff] %v2724
        %p2727 = scmp.eq.s32.totalorder %s42, 5
        // Predicated region
        $region121: #{tpu_custom_call.1} parent=67 // pred_check
          %p2728 = pneg %p2727
        $region122: #{tpu_custom_call.1} parent=67 // pred_check_branch
          %2730 = sbr.rel (%p2728) target = $region124
        $region123: #{tpu_custom_call.1} parent=67 // pred_region
          %2731 = vst [vmem:[#allocation23] sm:$0xff] %v2723
          %2732 = vst [vmem:[#allocation23 + $0x8] sm:$0xff] %v2724
          %s2733 = smul.u32 4, 32
          %s2734 = smul.u32 %s2733, 17
          %s2735 = sshll.u32 %s2734, 4
          %2736 = dma.done [#allocation4], %s2735
          %v2737 = vld [vmem:[#allocation3] sm:$0xff]
          %v2738 = vld [vmem:[#allocation3 + $0x44] sm:$0xff]
          %v2739 = vld [vmem:[#allocation3 + $0x88] sm:$0xff]
          %v2740 = vld [vmem:[#allocation3 + $0xcc] sm:$0xff]
          %v2741 = vld [vmem:[#allocation3 + $0x110] sm:$0xff]
          %v2742 = vld [vmem:[#allocation3 + $0x154] sm:$0xff]
          %v2743 = vld [vmem:[#allocation3 + $0x198] sm:$0xff]
          %v2744 = vld [vmem:[#allocation3 + $0x1dc] sm:$0xff]
          %v2745 = vld [vmem:[#allocation3 + $0x220] sm:$0xff]
          %v2746 = vld [vmem:[#allocation3 + $0x264] sm:$0xff]
          %v2747 = vld [vmem:[#allocation3 + $0x2a8] sm:$0xff]
          %v2748 = vld [vmem:[#allocation3 + $0x2ec] sm:$0xff]
          %v2749 = vld [vmem:[#allocation3 + $0x330] sm:$0xff]
          %v2750 = vld [vmem:[#allocation3 + $0x374] sm:$0xff]
          %v2751 = vld [vmem:[#allocation3 + $0x3b8] sm:$0xff]
          %v2752 = vld [vmem:[#allocation3 + $0x3fc] sm:$0xff]
          %v2753 = vld [vmem:[#allocation3 + $0x440] sm:$0xff]
          %v2754 = vld [vmem:[#allocation3 + $0x484] sm:$0xff]
          %v2755 = vld [vmem:[#allocation3 + $0x4c8] sm:$0xff]
          %v2756 = vld [vmem:[#allocation3 + $0x50c] sm:$0xff]
          %v2757 = vld [vmem:[#allocation3 + $0x550] sm:$0xff]
          %v2758 = vld [vmem:[#allocation3 + $0x594] sm:$0xff]
          %v2759 = vld [vmem:[#allocation3 + $0x5d8] sm:$0xff]
          %v2760 = vld [vmem:[#allocation3 + $0x61c] sm:$0xff]
          %v2761 = vld [vmem:[#allocation3 + $0x660] sm:$0xff]
          %v2762 = vld [vmem:[#allocation3 + $0x6a4] sm:$0xff]
          %v2763 = vld [vmem:[#allocation3 + $0x6e8] sm:$0xff]
          %v2764 = vld [vmem:[#allocation3 + $0x72c] sm:$0xff]
          %v2765 = vld [vmem:[#allocation3 + $0x770] sm:$0xff]
          %v2766 = vld [vmem:[#allocation3 + $0x7b4] sm:$0xff]
          %v2767 = vld [vmem:[#allocation3 + $0x7f8] sm:$0xff]
          %v2768 = vld [vmem:[#allocation3 + $0x83c] sm:$0xff]
          %v2769 = vld [vmem:[#allocation3 + $0x8] sm:$0xff]
          %v2770 = vld [vmem:[#allocation3 + $0x10] sm:$0xff]
          %v2771 = vld [vmem:[#allocation3 + $0x18] sm:$0xff]
          %v2772 = vld [vmem:[#allocation3 + $0x20] sm:$0xff]
          %v2773 = vld [vmem:[#allocation3 + $0x4c] sm:$0xff]
          %v2774 = vld [vmem:[#allocation3 + $0x54] sm:$0xff]
          %v2775 = vld [vmem:[#allocation3 + $0x5c] sm:$0xff]
          %v2776 = vld [vmem:[#allocation3 + $0x64] sm:$0xff]
          %v2777 = vld [vmem:[#allocation3 + $0x90] sm:$0xff]
          %v2778 = vld [vmem:[#allocation3 + $0x98] sm:$0xff]
          %v2779 = vld [vmem:[#allocation3 + $0xa0] sm:$0xff]
          %v2780 = vld [vmem:[#allocation3 + $0xa8] sm:$0xff]
          %v2781 = vld [vmem:[#allocation3 + $0xd4] sm:$0xff]
          %v2782 = vld [vmem:[#allocation3 + $0xdc] sm:$0xff]
          %v2783 = vld [vmem:[#allocation3 + $0xe4] sm:$0xff]
          %v2784 = vld [vmem:[#allocation3 + $0xec] sm:$0xff]
          %v2785 = vld [vmem:[#allocation3 + $0x118] sm:$0xff]
          %v2786 = vld [vmem:[#allocation3 + $0x120] sm:$0xff]
          %v2787 = vld [vmem:[#allocation3 + $0x128] sm:$0xff]
          %v2788 = vld [vmem:[#allocation3 + $0x130] sm:$0xff]
          %v2789 = vld [vmem:[#allocation3 + $0x15c] sm:$0xff]
          %v2790 = vld [vmem:[#allocation3 + $0x164] sm:$0xff]
          %v2791 = vld [vmem:[#allocation3 + $0x16c] sm:$0xff]
          %v2792 = vld [vmem:[#allocation3 + $0x174] sm:$0xff]
          %v2793 = vld [vmem:[#allocation3 + $0x1a0] sm:$0xff]
          %v2794 = vld [vmem:[#allocation3 + $0x1a8] sm:$0xff]
          %v2795 = vld [vmem:[#allocation3 + $0x1b0] sm:$0xff]
          %v2796 = vld [vmem:[#allocation3 + $0x1b8] sm:$0xff]
          %v2797 = vld [vmem:[#allocation3 + $0x1e4] sm:$0xff]
          %v2798 = vld [vmem:[#allocation3 + $0x1ec] sm:$0xff]
          %v2799 = vld [vmem:[#allocation3 + $0x1f4] sm:$0xff]
          %v2800 = vld [vmem:[#allocation3 + $0x1fc] sm:$0xff]
          %v2801 = vld [vmem:[#allocation3 + $0x228] sm:$0xff]
          %v2802 = vld [vmem:[#allocation3 + $0x230] sm:$0xff]
          %v2803 = vld [vmem:[#allocation3 + $0x238] sm:$0xff]
          %v2804 = vld [vmem:[#allocation3 + $0x240] sm:$0xff]
          %v2805 = vld [vmem:[#allocation3 + $0x26c] sm:$0xff]
          %v2806 = vld [vmem:[#allocation3 + $0x274] sm:$0xff]
          %v2807 = vld [vmem:[#allocation3 + $0x27c] sm:$0xff]
          %v2808 = vld [vmem:[#allocation3 + $0x284] sm:$0xff]
          %v2809 = vld [vmem:[#allocation3 + $0x2b0] sm:$0xff]
          %v2810 = vld [vmem:[#allocation3 + $0x2b8] sm:$0xff]
          %v2811 = vld [vmem:[#allocation3 + $0x2c0] sm:$0xff]
          %v2812 = vld [vmem:[#allocation3 + $0x2c8] sm:$0xff]
          %v2813 = vld [vmem:[#allocation3 + $0x2f4] sm:$0xff]
          %v2814 = vld [vmem:[#allocation3 + $0x2fc] sm:$0xff]
          %v2815 = vld [vmem:[#allocation3 + $0x304] sm:$0xff]
          %v2816 = vld [vmem:[#allocation3 + $0x30c] sm:$0xff]
          %v2817 = vld [vmem:[#allocation3 + $0x338] sm:$0xff]
          %v2818 = vld [vmem:[#allocation3 + $0x340] sm:$0xff]
          %v2819 = vld [vmem:[#allocation3 + $0x348] sm:$0xff]
          %v2820 = vld [vmem:[#allocation3 + $0x350] sm:$0xff]
          %v2821 = vld [vmem:[#allocation3 + $0x37c] sm:$0xff]
          %v2822 = vld [vmem:[#allocation3 + $0x384] sm:$0xff]
          %v2823 = vld [vmem:[#allocation3 + $0x38c] sm:$0xff]
          %v2824 = vld [vmem:[#allocation3 + $0x394] sm:$0xff]
          %v2825 = vld [vmem:[#allocation3 + $0x3c0] sm:$0xff]
          %v2826 = vld [vmem:[#allocation3 + $0x3c8] sm:$0xff]
          %v2827 = vld [vmem:[#allocation3 + $0x3d0] sm:$0xff]
          %v2828 = vld [vmem:[#allocation3 + $0x3d8] sm:$0xff]
          %v2829 = vld [vmem:[#allocation3 + $0x404] sm:$0xff]
          %v2830 = vld [vmem:[#allocation3 + $0x40c] sm:$0xff]
          %v2831 = vld [vmem:[#allocation3 + $0x414] sm:$0xff]
          %v2832 = vld [vmem:[#allocation3 + $0x41c] sm:$0xff]
          %v2833 = vld [vmem:[#allocation3 + $0x448] sm:$0xff]
          %v2834 = vld [vmem:[#allocation3 + $0x450] sm:$0xff]
          %v2835 = vld [vmem:[#allocation3 + $0x458] sm:$0xff]
          %v2836 = vld [vmem:[#allocation3 + $0x460] sm:$0xff]
          %v2837 = vld [vmem:[#allocation3 + $0x48c] sm:$0xff]
          %v2838 = vld [vmem:[#allocation3 + $0x494] sm:$0xff]
          %v2839 = vld [vmem:[#allocation3 + $0x49c] sm:$0xff]
          %v2840 = vld [vmem:[#allocation3 + $0x4a4] sm:$0xff]
          %v2841 = vld [vmem:[#allocation3 + $0x4d0] sm:$0xff]
          %v2842 = vld [vmem:[#allocation3 + $0x4d8] sm:$0xff]
          %v2843 = vld [vmem:[#allocation3 + $0x4e0] sm:$0xff]
          %v2844 = vld [vmem:[#allocation3 + $0x4e8] sm:$0xff]
          %v2845 = vld [vmem:[#allocation3 + $0x514] sm:$0xff]
          %v2846 = vld [vmem:[#allocation3 + $0x51c] sm:$0xff]
          %v2847 = vld [vmem:[#allocation3 + $0x524] sm:$0xff]
          %v2848 = vld [vmem:[#allocation3 + $0x52c] sm:$0xff]
          %v2849 = vld [vmem:[#allocation3 + $0x558] sm:$0xff]
          %v2850 = vld [vmem:[#allocation3 + $0x560] sm:$0xff]
          %v2851 = vld [vmem:[#allocation3 + $0x568] sm:$0xff]
          %v2852 = vld [vmem:[#allocation3 + $0x570] sm:$0xff]
          %v2853 = vld [vmem:[#allocation3 + $0x59c] sm:$0xff]
          %v2854 = vld [vmem:[#allocation3 + $0x5a4] sm:$0xff]
          %v2855 = vld [vmem:[#allocation3 + $0x5ac] sm:$0xff]
          %v2856 = vld [vmem:[#allocation3 + $0x5b4] sm:$0xff]
          %v2857 = vld [vmem:[#allocation3 + $0x5e0] sm:$0xff]
          %v2858 = vld [vmem:[#allocation3 + $0x5e8] sm:$0xff]
          %v2859 = vld [vmem:[#allocation3 + $0x5f0] sm:$0xff]
          %v2860 = vld [vmem:[#allocation3 + $0x5f8] sm:$0xff]
          %v2861 = vld [vmem:[#allocation3 + $0x624] sm:$0xff]
          %v2862 = vld [vmem:[#allocation3 + $0x62c] sm:$0xff]
          %v2863 = vld [vmem:[#allocation3 + $0x634] sm:$0xff]
          %v2864 = vld [vmem:[#allocation3 + $0x63c] sm:$0xff]
          %v2865 = vld [vmem:[#allocation3 + $0x668] sm:$0xff]
          %v2866 = vld [vmem:[#allocation3 + $0x670] sm:$0xff]
          %v2867 = vld [vmem:[#allocation3 + $0x678] sm:$0xff]
          %v2868 = vld [vmem:[#allocation3 + $0x680] sm:$0xff]
          %v2869 = vld [vmem:[#allocation3 + $0x6ac] sm:$0xff]
          %v2870 = vld [vmem:[#allocation3 + $0x6b4] sm:$0xff]
          %v2871 = vld [vmem:[#allocation3 + $0x6bc] sm:$0xff]
          %v2872 = vld [vmem:[#allocation3 + $0x6c4] sm:$0xff]
          %v2873 = vld [vmem:[#allocation3 + $0x6f0] sm:$0xff]
          %v2874 = vld [vmem:[#allocation3 + $0x6f8] sm:$0xff]
          %v2875 = vld [vmem:[#allocation3 + $0x700] sm:$0xff]
          %v2876 = vld [vmem:[#allocation3 + $0x708] sm:$0xff]
          %v2877 = vld [vmem:[#allocation3 + $0x734] sm:$0xff]
          %v2878 = vld [vmem:[#allocation3 + $0x73c] sm:$0xff]
          %v2879 = vld [vmem:[#allocation3 + $0x744] sm:$0xff]
          %v2880 = vld [vmem:[#allocation3 + $0x74c] sm:$0xff]
          %v2881 = vld [vmem:[#allocation3 + $0x778] sm:$0xff]
          %v2882 = vld [vmem:[#allocation3 + $0x780] sm:$0xff]
          %v2883 = vld [vmem:[#allocation3 + $0x788] sm:$0xff]
          %v2884 = vld [vmem:[#allocation3 + $0x790] sm:$0xff]
          %v2885 = vld [vmem:[#allocation3 + $0x7bc] sm:$0xff]
          %v2886 = vld [vmem:[#allocation3 + $0x7c4] sm:$0xff]
          %v2887 = vld [vmem:[#allocation3 + $0x7cc] sm:$0xff]
          %v2888 = vld [vmem:[#allocation3 + $0x7d4] sm:$0xff]
          %v2889 = vld [vmem:[#allocation3 + $0x800] sm:$0xff]
          %v2890 = vld [vmem:[#allocation3 + $0x808] sm:$0xff]
          %v2891 = vld [vmem:[#allocation3 + $0x810] sm:$0xff]
          %v2892 = vld [vmem:[#allocation3 + $0x818] sm:$0xff]
          %v2893 = vld [vmem:[#allocation3 + $0x844] sm:$0xff]
          %v2894 = vld [vmem:[#allocation3 + $0x84c] sm:$0xff]
          %v2895 = vld [vmem:[#allocation3 + $0x854] sm:$0xff]
          %v2896 = vld [vmem:[#allocation3 + $0x85c] sm:$0xff]
          %v2897 = vld [vmem:[#allocation3 + $0x28] sm:$0xff]
          %v2898 = vld [vmem:[#allocation3 + $0x30] sm:$0xff]
          %v2899 = vld [vmem:[#allocation3 + $0x38] sm:$0xff]
          %v2900 = vld [vmem:[#allocation3 + $0x6c] sm:$0xff]
          %v2901 = vld [vmem:[#allocation3 + $0x74] sm:$0xff]
          %v2902 = vld [vmem:[#allocation3 + $0x7c] sm:$0xff]
          %v2903 = vld [vmem:[#allocation3 + $0xb0] sm:$0xff]
          %v2904 = vld [vmem:[#allocation3 + $0xb8] sm:$0xff]
          %v2905 = vld [vmem:[#allocation3 + $0xc0] sm:$0xff]
          %v2906 = vld [vmem:[#allocation3 + $0xf4] sm:$0xff]
          %v2907 = vld [vmem:[#allocation3 + $0xfc] sm:$0xff]
          %v2908 = vld [vmem:[#allocation3 + $0x104] sm:$0xff]
          %v2909 = vld [vmem:[#allocation3 + $0x138] sm:$0xff]
          %v2910 = vld [vmem:[#allocation3 + $0x140] sm:$0xff]
          %v2911 = vld [vmem:[#allocation3 + $0x148] sm:$0xff]
          %v2912 = vld [vmem:[#allocation3 + $0x17c] sm:$0xff]
          %v2913 = vld [vmem:[#allocation3 + $0x184] sm:$0xff]
          %v2914 = vld [vmem:[#allocation3 + $0x18c] sm:$0xff]
          %v2915 = vld [vmem:[#allocation3 + $0x1c0] sm:$0xff]
          %v2916 = vld [vmem:[#allocation3 + $0x1c8] sm:$0xff]
          %v2917 = vld [vmem:[#allocation3 + $0x1d0] sm:$0xff]
          %v2918 = vld [vmem:[#allocation3 + $0x204] sm:$0xff]
          %v2919 = vld [vmem:[#allocation3 + $0x20c] sm:$0xff]
          %v2920 = vld [vmem:[#allocation3 + $0x214] sm:$0xff]
          %v2921 = vld [vmem:[#allocation3 + $0x248] sm:$0xff]
          %v2922 = vld [vmem:[#allocation3 + $0x250] sm:$0xff]
          %v2923 = vld [vmem:[#allocation3 + $0x258] sm:$0xff]
          %v2924 = vld [vmem:[#allocation3 + $0x28c] sm:$0xff]
          %v2925 = vld [vmem:[#allocation3 + $0x294] sm:$0xff]
          %v2926 = vld [vmem:[#allocation3 + $0x29c] sm:$0xff]
          %v2927 = vld [vmem:[#allocation3 + $0x2d0] sm:$0xff]
          %v2928 = vld [vmem:[#allocation3 + $0x2d8] sm:$0xff]
          %v2929 = vld [vmem:[#allocation3 + $0x2e0] sm:$0xff]
          %v2930 = vld [vmem:[#allocation3 + $0x314] sm:$0xff]
          %v2931 = vld [vmem:[#allocation3 + $0x31c] sm:$0xff]
          %v2932 = vld [vmem:[#allocation3 + $0x324] sm:$0xff]
          %v2933 = vld [vmem:[#allocation3 + $0x358] sm:$0xff]
          %v2934 = vld [vmem:[#allocation3 + $0x360] sm:$0xff]
          %v2935 = vld [vmem:[#allocation3 + $0x368] sm:$0xff]
          %v2936 = vld [vmem:[#allocation3 + $0x39c] sm:$0xff]
          %v2937 = vld [vmem:[#allocation3 + $0x3a4] sm:$0xff]
          %v2938 = vld [vmem:[#allocation3 + $0x3ac] sm:$0xff]
          %v2939 = vld [vmem:[#allocation3 + $0x3e0] sm:$0xff]
          %v2940 = vld [vmem:[#allocation3 + $0x3e8] sm:$0xff]
          %v2941 = vld [vmem:[#allocation3 + $0x3f0] sm:$0xff]
          %v2942 = vld [vmem:[#allocation3 + $0x424] sm:$0xff]
          %v2943 = vld [vmem:[#allocation3 + $0x42c] sm:$0xff]
          %v2944 = vld [vmem:[#allocation3 + $0x434] sm:$0xff]
          %v2945 = vld [vmem:[#allocation3 + $0x468] sm:$0xff]
          %v2946 = vld [vmem:[#allocation3 + $0x470] sm:$0xff]
          %v2947 = vld [vmem:[#allocation3 + $0x478] sm:$0xff]
          %v2948 = vld [vmem:[#allocation3 + $0x4ac] sm:$0xff]
          %v2949 = vld [vmem:[#allocation3 + $0x4b4] sm:$0xff]
          %v2950 = vld [vmem:[#allocation3 + $0x4bc] sm:$0xff]
          %v2951 = vld [vmem:[#allocation3 + $0x4f0] sm:$0xff]
          %v2952 = vld [vmem:[#allocation3 + $0x4f8] sm:$0xff]
          %v2953 = vld [vmem:[#allocation3 + $0x500] sm:$0xff]
          %v2954 = vld [vmem:[#allocation3 + $0x534] sm:$0xff]
          %v2955 = vld [vmem:[#allocation3 + $0x53c] sm:$0xff]
          %v2956 = vld [vmem:[#allocation3 + $0x544] sm:$0xff]
          %v2957 = vld [vmem:[#allocation3 + $0x578] sm:$0xff]
          %v2958 = vld [vmem:[#allocation3 + $0x580] sm:$0xff]
          %v2959 = vld [vmem:[#allocation3 + $0x588] sm:$0xff]
          %v2960 = vld [vmem:[#allocation3 + $0x5bc] sm:$0xff]
          %v2961 = vld [vmem:[#allocation3 + $0x5c4] sm:$0xff]
          %v2962 = vld [vmem:[#allocation3 + $0x5cc] sm:$0xff]
          %v2963 = vld [vmem:[#allocation3 + $0x600] sm:$0xff]
          %v2964 = vld [vmem:[#allocation3 + $0x608] sm:$0xff]
          %v2965 = vld [vmem:[#allocation3 + $0x610] sm:$0xff]
          %v2966 = vld [vmem:[#allocation3 + $0x644] sm:$0xff]
          %v2967 = vld [vmem:[#allocation3 + $0x64c] sm:$0xff]
          %v2968 = vld [vmem:[#allocation3 + $0x654] sm:$0xff]
          %v2969 = vld [vmem:[#allocation3 + $0x688] sm:$0xff]
          %v2970 = vld [vmem:[#allocation3 + $0x690] sm:$0xff]
          %v2971 = vld [vmem:[#allocation3 + $0x698] sm:$0xff]
          %v2972 = vld [vmem:[#allocation3 + $0x6cc] sm:$0xff]
          %v2973 = vld [vmem:[#allocation3 + $0x6d4] sm:$0xff]
          %v2974 = vld [vmem:[#allocation3 + $0x6dc] sm:$0xff]
          %v2975 = vld [vmem:[#allocation3 + $0x710] sm:$0xff]
          %v2976 = vld [vmem:[#allocation3 + $0x718] sm:$0xff]
          %v2977 = vld [vmem:[#allocation3 + $0x720] sm:$0xff]
          %v2978 = vld [vmem:[#allocation3 + $0x754] sm:$0xff]
          %v2979 = vld [vmem:[#allocation3 + $0x75c] sm:$0xff]
          %v2980 = vld [vmem:[#allocation3 + $0x764] sm:$0xff]
          %v2981 = vld [vmem:[#allocation3 + $0x798] sm:$0xff]
          %v2982 = vld [vmem:[#allocation3 + $0x7a0] sm:$0xff]
          %v2983 = vld [vmem:[#allocation3 + $0x7a8] sm:$0xff]
          %v2984 = vld [vmem:[#allocation3 + $0x7dc] sm:$0xff]
          %v2985 = vld [vmem:[#allocation3 + $0x7e4] sm:$0xff]
          %v2986 = vld [vmem:[#allocation3 + $0x7ec] sm:$0xff]
          %v2987 = vld [vmem:[#allocation3 + $0x820] sm:$0xff]
          %v2988 = vld [vmem:[#allocation3 + $0x828] sm:$0xff]
          %v2989 = vld [vmem:[#allocation3 + $0x830] sm:$0xff]
          %v2990 = vld [vmem:[#allocation3 + $0x864] sm:$0xff]
          %v2991 = vld [vmem:[#allocation3 + $0x86c] sm:$0xff]
          %v2992 = vld [vmem:[#allocation3 + $0x874] sm:$0xff]
          %v2993 = vld [vmem:[#allocation3 + $0x40] sm:$0xf]
          %v2994 = vld [vmem:[#allocation3 + $0x84] sm:$0xf]
          %v2995 = vld [vmem:[#allocation3 + $0xc8] sm:$0xf]
          %v2996 = vld [vmem:[#allocation3 + $0x10c] sm:$0xf]
          %v2997 = vld [vmem:[#allocation3 + $0x150] sm:$0xf]
          %v2998 = vld [vmem:[#allocation3 + $0x194] sm:$0xf]
          %v2999 = vld [vmem:[#allocation3 + $0x1d8] sm:$0xf]
          %v3000 = vld [vmem:[#allocation3 + $0x21c] sm:$0xf]
          %v3001 = vld [vmem:[#allocation3 + $0x260] sm:$0xf]
          %v3002 = vld [vmem:[#allocation3 + $0x2a4] sm:$0xf]
          %v3003 = vld [vmem:[#allocation3 + $0x2e8] sm:$0xf]
          %v3004 = vld [vmem:[#allocation3 + $0x32c] sm:$0xf]
          %v3005 = vld [vmem:[#allocation3 + $0x370] sm:$0xf]
          %v3006 = vld [vmem:[#allocation3 + $0x3b4] sm:$0xf]
          %v3007 = vld [vmem:[#allocation3 + $0x3f8] sm:$0xf]
          %v3008 = vld [vmem:[#allocation3 + $0x43c] sm:$0xf]
          %v3009 = vld [vmem:[#allocation3 + $0x480] sm:$0xf]
          %v3010 = vld [vmem:[#allocation3 + $0x4c4] sm:$0xf]
          %v3011 = vld [vmem:[#allocation3 + $0x508] sm:$0xf]
          %v3012 = vld [vmem:[#allocation3 + $0x54c] sm:$0xf]
          %v3013 = vld [vmem:[#allocation3 + $0x590] sm:$0xf]
          %v3014 = vld [vmem:[#allocation3 + $0x5d4] sm:$0xf]
          %v3015 = vld [vmem:[#allocation3 + $0x618] sm:$0xf]
          %v3016 = vld [vmem:[#allocation3 + $0x65c] sm:$0xf]
          %v3017 = vld [vmem:[#allocation3 + $0x6a0] sm:$0xf]
          %v3018 = vld [vmem:[#allocation3 + $0x6e4] sm:$0xf]
          %v3019 = vld [vmem:[#allocation3 + $0x728] sm:$0xf]
          %v3020 = vld [vmem:[#allocation3 + $0x76c] sm:$0xf]
          %v3021 = vld [vmem:[#allocation3 + $0x7b0] sm:$0xf]
          %v3022 = vld [vmem:[#allocation3 + $0x7f4] sm:$0xf]
          %v3023 = vld [vmem:[#allocation3 + $0x838] sm:$0xf]
          %v3024 = vld [vmem:[#allocation3 + $0x87c] sm:$0xf]
          %v3025 = vld [vmem:[#allocation22] sm:$0xff]
          %v3026 = vld [vmem:[#allocation22 + $0x8] sm:$0xff]
          %v3027 = vrot.slane %v2723, 4
          %v3028 = vadd.f32 %v2723, %v3027
          %v3029 = vrot.slane %v3028, 2
          %v3030 = vadd.f32 %v3028, %v3029
          %v3031 = vrot.slane %v3030, 1
          %v3032 = vadd.f32 %v3030, %v3031
          %v3033 = vrot.slane %v2724, 4
          %v3034 = vadd.f32 %v2724, %v3033
          %v3035 = vrot.slane %v3034, 2
          %v3036 = vadd.f32 %v3034, %v3035
          %v3037 = vrot.slane %v3036, 1
          %v3038 = vadd.f32 %v3036, %v3037
          %v3039 = vrcp.pop 8.0
          %v3040 = vmul.f32 %v3032, %v3039
          %v3041 = vmul.f32 %v3038, %v3039
          %v3042 = vpack.c.bf16 %v3040, %v3040
          %v3043 = vpack.c.bf16 %v3041, %v3041
          %v3076 = vunpack.c.l.b16 %v2737
          %v3077 = vunpack.c.h.b16 %v2737
          %v3078 = vunpack.c.l.b16 %v2738
          %v3079 = vunpack.c.h.b16 %v2738
          %v3080 = vunpack.c.l.b16 %v2739
          %v3081 = vunpack.c.h.b16 %v2739
          %v3082 = vunpack.c.l.b16 %v2740
          %v3083 = vunpack.c.h.b16 %v2740
          %v3084 = vunpack.c.l.b16 %v2741
          %v3085 = vunpack.c.h.b16 %v2741
          %v3086 = vunpack.c.l.b16 %v2742
          %v3087 = vunpack.c.h.b16 %v2742
          %v3088 = vunpack.c.l.b16 %v2743
          %v3089 = vunpack.c.h.b16 %v2743
          %v3090 = vunpack.c.l.b16 %v2744
          %v3091 = vunpack.c.h.b16 %v2744
          %v3092 = vunpack.c.l.b16 %v2745
          %v3093 = vunpack.c.h.b16 %v2745
          %v3094 = vunpack.c.l.b16 %v2746
          %v3095 = vunpack.c.h.b16 %v2746
          %v3096 = vunpack.c.l.b16 %v2747
          %v3097 = vunpack.c.h.b16 %v2747
          %v3098 = vunpack.c.l.b16 %v2748
          %v3099 = vunpack.c.h.b16 %v2748
          %v3100 = vunpack.c.l.b16 %v2749
          %v3101 = vunpack.c.h.b16 %v2749
          %v3102 = vunpack.c.l.b16 %v2750
          %v3103 = vunpack.c.h.b16 %v2750
          %v3104 = vunpack.c.l.b16 %v2751
          %v3105 = vunpack.c.h.b16 %v2751
          %v3106 = vunpack.c.l.b16 %v2752
          %v3107 = vunpack.c.h.b16 %v2752
          %v3108 = vunpack.c.l.b16 %v2753
          %v3109 = vunpack.c.h.b16 %v2753
          %v3110 = vunpack.c.l.b16 %v2754
          %v3111 = vunpack.c.h.b16 %v2754
          %v3112 = vunpack.c.l.b16 %v2755
          %v3113 = vunpack.c.h.b16 %v2755
          %v3114 = vunpack.c.l.b16 %v2756
          %v3115 = vunpack.c.h.b16 %v2756
          %v3116 = vunpack.c.l.b16 %v2757
          %v3117 = vunpack.c.h.b16 %v2757
          %v3118 = vunpack.c.l.b16 %v2758
          %v3119 = vunpack.c.h.b16 %v2758
          %v3120 = vunpack.c.l.b16 %v2759
          %v3121 = vunpack.c.h.b16 %v2759
          %v3122 = vunpack.c.l.b16 %v2760
          %v3123 = vunpack.c.h.b16 %v2760
          %v3124 = vunpack.c.l.b16 %v2761
          %v3125 = vunpack.c.h.b16 %v2761
          %v3126 = vunpack.c.l.b16 %v2762
          %v3127 = vunpack.c.h.b16 %v2762
          %v3128 = vunpack.c.l.b16 %v2763
          %v3129 = vunpack.c.h.b16 %v2763
          %v3130 = vunpack.c.l.b16 %v2764
          %v3131 = vunpack.c.h.b16 %v2764
          %v3132 = vunpack.c.l.b16 %v2765
          %v3133 = vunpack.c.h.b16 %v2765
          %v3134 = vunpack.c.l.b16 %v2766
          %v3135 = vunpack.c.h.b16 %v2766
          %v3136 = vunpack.c.l.b16 %v2767
          %v3137 = vunpack.c.h.b16 %v2767
          %v3138 = vunpack.c.l.b16 %v2768
          %v3139 = vunpack.c.h.b16 %v2768
          %v3140 = vpack.c.b16 %v3078, %v3076
          %v3141 = vpack.c.b16 %v3079, %v3077
          %v3142 = vpack.c.b16 %v3082, %v3080
          %v3143 = vpack.c.b16 %v3083, %v3081
          %v3144 = vpack.c.b16 %v3086, %v3084
          %v3145 = vpack.c.b16 %v3087, %v3085
          %v3146 = vpack.c.b16 %v3090, %v3088
          %v3147 = vpack.c.b16 %v3091, %v3089
          %v3148 = vpack.c.b16 %v3094, %v3092
          %v3149 = vpack.c.b16 %v3095, %v3093
          %v3150 = vpack.c.b16 %v3098, %v3096
          %v3151 = vpack.c.b16 %v3099, %v3097
          %v3152 = vpack.c.b16 %v3102, %v3100
          %v3153 = vpack.c.b16 %v3103, %v3101
          %v3154 = vpack.c.b16 %v3106, %v3104
          %v3155 = vpack.c.b16 %v3107, %v3105
          %v3156 = vpack.c.b16 %v3110, %v3108
          %v3157 = vpack.c.b16 %v3111, %v3109
          %v3158 = vpack.c.b16 %v3114, %v3112
          %v3159 = vpack.c.b16 %v3115, %v3113
          %v3160 = vpack.c.b16 %v3118, %v3116
          %v3161 = vpack.c.b16 %v3119, %v3117
          %v3162 = vpack.c.b16 %v3122, %v3120
          %v3163 = vpack.c.b16 %v3123, %v3121
          %v3164 = vpack.c.b16 %v3126, %v3124
          %v3165 = vpack.c.b16 %v3127, %v3125
          %v3166 = vpack.c.b16 %v3130, %v3128
          %v3167 = vpack.c.b16 %v3131, %v3129
          %v3168 = vpack.c.b16 %v3134, %v3132
          %v3169 = vpack.c.b16 %v3135, %v3133
          %v3170 = vpack.c.b16 %v3138, %v3136
          %v3171 = vpack.c.b16 %v3139, %v3137
          %3204 = vmatprep.subr.bf16.mxu0 %v3155
          %3205 = vmatpush1.bf16.msra.mxu0 %v3154
          %3206 = vmatprep.subr.bf16.mxu0 %v3153
          %3207 = vmatpush1.bf16.msra.mxu0 %v3152
          %3208 = vmatprep.subr.bf16.mxu0 %v3151
          %3209 = vmatpush1.bf16.msra.mxu0 %v3150
          %3210 = vmatprep.subr.bf16.mxu0 %v3149
          %3211 = vmatpush1.bf16.msra.mxu0 %v3148
          %3212 = vmatprep.subr.bf16.mxu0 %v3147
          %3213 = vmatpush1.bf16.msra.mxu0 %v3146
          %3214 = vmatprep.subr.bf16.mxu0 %v3145
          %3215 = vmatpush1.bf16.msra.mxu0 %v3144
          %3216 = vmatprep.subr.bf16.mxu0 %v3143
          %3217 = vmatpush1.bf16.msra.mxu0 %v3142
          %3218 = vmatprep.subr.bf16.mxu0 %v3141
          %3219 = vmatpush1.bf16.msra.mxu0 %v3140
          %3220 = vmatprep.subr.bf16.mxu0 %v3171
          %3221 = vmatpush2.bf16.msra.mxu0 %v3170
          %3222 = vmatprep.subr.bf16.mxu0 %v3169
          %3223 = vmatpush2.bf16.msra.mxu0 %v3168
          %3224 = vmatprep.subr.bf16.mxu0 %v3167
          %3225 = vmatpush2.bf16.msra.mxu0 %v3166
          %3226 = vmatprep.subr.bf16.mxu0 %v3165
          %3227 = vmatpush2.bf16.msra.mxu0 %v3164
          %3228 = vmatprep.subr.bf16.mxu0 %v3163
          %3229 = vmatpush2.bf16.msra.mxu0 %v3162
          %3230 = vmatprep.subr.bf16.mxu0 %v3161
          %3231 = vmatpush2.bf16.msra.mxu0 %v3160
          %3232 = vmatprep.subr.bf16.mxu0 %v3159
          %3233 = vmatpush2.bf16.msra.mxu0 %v3158
          %3234 = vmatprep.subr.bf16.mxu0 %v3157
          %3235 = vmatpush2.bf16.msra.mxu0 %v3156
          %3236 = vmatprep.mubr.bf16.mxu0 %v3043
          %3237 = vmatmul.mubr.bf16.gmra.mxu0 %v3042
          %v3238 = vpop.f32.mrf.mxu0
          %v3239 = vadd.f32 %v3025, %v3238
          %v3240 = vpop.f32.mrf.mxu0
          %v3241 = vadd.f32 %v3026, %v3240
          %v3242 = vpop.f32.mrf.mxu0
          %v3243 = vpop.f32.mrf.mxu0
          %3244 = vdwg.mxu0
          %v3245 = vpack.c.bf16 %v2723, %v2723
          %v3246 = vpack.c.bf16 %v2724, %v2724
          %v3375 = vunpack.c.l.b16 %v2769
          %v3376 = vunpack.c.h.b16 %v2769
          %v3377 = vunpack.c.l.b16 %v2770
          %v3378 = vunpack.c.h.b16 %v2770
          %v3379 = vunpack.c.l.b16 %v2771
          %v3380 = vunpack.c.h.b16 %v2771
          %v3381 = vunpack.c.l.b16 %v2772
          %v3382 = vunpack.c.h.b16 %v2772
          %v3383 = vunpack.c.l.b16 %v2773
          %v3384 = vunpack.c.h.b16 %v2773
          %v3385 = vunpack.c.l.b16 %v2774
          %v3386 = vunpack.c.h.b16 %v2774
          %v3387 = vunpack.c.l.b16 %v2775
          %v3388 = vunpack.c.h.b16 %v2775
          %v3389 = vunpack.c.l.b16 %v2776
          %v3390 = vunpack.c.h.b16 %v2776
          %v3391 = vunpack.c.l.b16 %v2777
          %v3392 = vunpack.c.h.b16 %v2777
          %v3393 = vunpack.c.l.b16 %v2778
          %v3394 = vunpack.c.h.b16 %v2778
          %v3395 = vunpack.c.l.b16 %v2779
          %v3396 = vunpack.c.h.b16 %v2779
          %v3397 = vunpack.c.l.b16 %v2780
          %v3398 = vunpack.c.h.b16 %v2780
          %v3399 = vunpack.c.l.b16 %v2781
          %v3400 = vunpack.c.h.b16 %v2781
          %v3401 = vunpack.c.l.b16 %v2782
          %v3402 = vunpack.c.h.b16 %v2782
          %v3403 = vunpack.c.l.b16 %v2783
          %v3404 = vunpack.c.h.b16 %v2783
          %v3405 = vunpack.c.l.b16 %v2784
          %v3406 = vunpack.c.h.b16 %v2784
          %v3407 = vunpack.c.l.b16 %v2785
          %v3408 = vunpack.c.h.b16 %v2785
          %v3409 = vunpack.c.l.b16 %v2786
          %v3410 = vunpack.c.h.b16 %v2786
          %v3411 = vunpack.c.l.b16 %v2787
          %v3412 = vunpack.c.h.b16 %v2787
          %v3413 = vunpack.c.l.b16 %v2788
          %v3414 = vunpack.c.h.b16 %v2788
          %v3415 = vunpack.c.l.b16 %v2789
          %v3416 = vunpack.c.h.b16 %v2789
          %v3417 = vunpack.c.l.b16 %v2790
          %v3418 = vunpack.c.h.b16 %v2790
          %v3419 = vunpack.c.l.b16 %v2791
          %v3420 = vunpack.c.h.b16 %v2791
          %v3421 = vunpack.c.l.b16 %v2792
          %v3422 = vunpack.c.h.b16 %v2792
          %v3423 = vunpack.c.l.b16 %v2793
          %v3424 = vunpack.c.h.b16 %v2793
          %v3425 = vunpack.c.l.b16 %v2794
          %v3426 = vunpack.c.h.b16 %v2794
          %v3427 = vunpack.c.l.b16 %v2795
          %v3428 = vunpack.c.h.b16 %v2795
          %v3429 = vunpack.c.l.b16 %v2796
          %v3430 = vunpack.c.h.b16 %v2796
          %v3431 = vunpack.c.l.b16 %v2797
          %v3432 = vunpack.c.h.b16 %v2797
          %v3433 = vunpack.c.l.b16 %v2798
          %v3434 = vunpack.c.h.b16 %v2798
          %v3435 = vunpack.c.l.b16 %v2799
          %v3436 = vunpack.c.h.b16 %v2799
          %v3437 = vunpack.c.l.b16 %v2800
          %v3438 = vunpack.c.h.b16 %v2800
          %v3439 = vunpack.c.l.b16 %v2801
          %v3440 = vunpack.c.h.b16 %v2801
          %v3441 = vunpack.c.l.b16 %v2802
          %v3442 = vunpack.c.h.b16 %v2802
          %v3443 = vunpack.c.l.b16 %v2803
          %v3444 = vunpack.c.h.b16 %v2803
          %v3445 = vunpack.c.l.b16 %v2804
          %v3446 = vunpack.c.h.b16 %v2804
          %v3447 = vunpack.c.l.b16 %v2805
          %v3448 = vunpack.c.h.b16 %v2805
          %v3449 = vunpack.c.l.b16 %v2806
          %v3450 = vunpack.c.h.b16 %v2806
          %v3451 = vunpack.c.l.b16 %v2807
          %v3452 = vunpack.c.h.b16 %v2807
          %v3453 = vunpack.c.l.b16 %v2808
          %v3454 = vunpack.c.h.b16 %v2808
          %v3455 = vunpack.c.l.b16 %v2809
          %v3456 = vunpack.c.h.b16 %v2809
          %v3457 = vunpack.c.l.b16 %v2810
          %v3458 = vunpack.c.h.b16 %v2810
          %v3459 = vunpack.c.l.b16 %v2811
          %v3460 = vunpack.c.h.b16 %v2811
          %v3461 = vunpack.c.l.b16 %v2812
          %v3462 = vunpack.c.h.b16 %v2812
          %v3463 = vunpack.c.l.b16 %v2813
          %v3464 = vunpack.c.h.b16 %v2813
          %v3465 = vunpack.c.l.b16 %v2814
          %v3466 = vunpack.c.h.b16 %v2814
          %v3467 = vunpack.c.l.b16 %v2815
          %v3468 = vunpack.c.h.b16 %v2815
          %v3469 = vunpack.c.l.b16 %v2816
          %v3470 = vunpack.c.h.b16 %v2816
          %v3471 = vunpack.c.l.b16 %v2817
          %v3472 = vunpack.c.h.b16 %v2817
          %v3473 = vunpack.c.l.b16 %v2818
          %v3474 = vunpack.c.h.b16 %v2818
          %v3475 = vunpack.c.l.b16 %v2819
          %v3476 = vunpack.c.h.b16 %v2819
          %v3477 = vunpack.c.l.b16 %v2820
          %v3478 = vunpack.c.h.b16 %v2820
          %v3479 = vunpack.c.l.b16 %v2821
          %v3480 = vunpack.c.h.b16 %v2821
          %v3481 = vunpack.c.l.b16 %v2822
          %v3482 = vunpack.c.h.b16 %v2822
          %v3483 = vunpack.c.l.b16 %v2823
          %v3484 = vunpack.c.h.b16 %v2823
          %v3485 = vunpack.c.l.b16 %v2824
          %v3486 = vunpack.c.h.b16 %v2824
          %v3487 = vunpack.c.l.b16 %v2825
          %v3488 = vunpack.c.h.b16 %v2825
          %v3489 = vunpack.c.l.b16 %v2826
          %v3490 = vunpack.c.h.b16 %v2826
          %v3491 = vunpack.c.l.b16 %v2827
          %v3492 = vunpack.c.h.b16 %v2827
          %v3493 = vunpack.c.l.b16 %v2828
          %v3494 = vunpack.c.h.b16 %v2828
          %v3495 = vunpack.c.l.b16 %v2829
          %v3496 = vunpack.c.h.b16 %v2829
          %v3497 = vunpack.c.l.b16 %v2830
          %v3498 = vunpack.c.h.b16 %v2830
          %v3499 = vunpack.c.l.b16 %v2831
          %v3500 = vunpack.c.h.b16 %v2831
          %v3501 = vunpack.c.l.b16 %v2832
          %v3502 = vunpack.c.h.b16 %v2832
          %v3503 = vunpack.c.l.b16 %v2833
          %v3504 = vunpack.c.h.b16 %v2833
          %v3505 = vunpack.c.l.b16 %v2834
          %v3506 = vunpack.c.h.b16 %v2834
          %v3507 = vunpack.c.l.b16 %v2835
          %v3508 = vunpack.c.h.b16 %v2835
          %v3509 = vunpack.c.l.b16 %v2836
          %v3510 = vunpack.c.h.b16 %v2836
          %v3511 = vunpack.c.l.b16 %v2837
          %v3512 = vunpack.c.h.b16 %v2837
          %v3513 = vunpack.c.l.b16 %v2838
          %v3514 = vunpack.c.h.b16 %v2838
          %v3515 = vunpack.c.l.b16 %v2839
          %v3516 = vunpack.c.h.b16 %v2839
          %v3517 = vunpack.c.l.b16 %v2840
          %v3518 = vunpack.c.h.b16 %v2840
          %v3519 = vunpack.c.l.b16 %v2841
          %v3520 = vunpack.c.h.b16 %v2841
          %v3521 = vunpack.c.l.b16 %v2842
          %v3522 = vunpack.c.h.b16 %v2842
          %v3523 = vunpack.c.l.b16 %v2843
          %v3524 = vunpack.c.h.b16 %v2843
          %v3525 = vunpack.c.l.b16 %v2844
          %v3526 = vunpack.c.h.b16 %v2844
          %v3527 = vunpack.c.l.b16 %v2845
          %v3528 = vunpack.c.h.b16 %v2845
          %v3529 = vunpack.c.l.b16 %v2846
          %v3530 = vunpack.c.h.b16 %v2846
          %v3531 = vunpack.c.l.b16 %v2847
          %v3532 = vunpack.c.h.b16 %v2847
          %v3533 = vunpack.c.l.b16 %v2848
          %v3534 = vunpack.c.h.b16 %v2848
          %v3535 = vunpack.c.l.b16 %v2849
          %v3536 = vunpack.c.h.b16 %v2849
          %v3537 = vunpack.c.l.b16 %v2850
          %v3538 = vunpack.c.h.b16 %v2850
          %v3539 = vunpack.c.l.b16 %v2851
          %v3540 = vunpack.c.h.b16 %v2851
          %v3541 = vunpack.c.l.b16 %v2852
          %v3542 = vunpack.c.h.b16 %v2852
          %v3543 = vunpack.c.l.b16 %v2853
          %v3544 = vunpack.c.h.b16 %v2853
          %v3545 = vunpack.c.l.b16 %v2854
          %v3546 = vunpack.c.h.b16 %v2854
          %v3547 = vunpack.c.l.b16 %v2855
          %v3548 = vunpack.c.h.b16 %v2855
          %v3549 = vunpack.c.l.b16 %v2856
          %v3550 = vunpack.c.h.b16 %v2856
          %v3551 = vunpack.c.l.b16 %v2857
          %v3552 = vunpack.c.h.b16 %v2857
          %v3553 = vunpack.c.l.b16 %v2858
          %v3554 = vunpack.c.h.b16 %v2858
          %v3555 = vunpack.c.l.b16 %v2859
          %v3556 = vunpack.c.h.b16 %v2859
          %v3557 = vunpack.c.l.b16 %v2860
          %v3558 = vunpack.c.h.b16 %v2860
          %v3559 = vunpack.c.l.b16 %v2861
          %v3560 = vunpack.c.h.b16 %v2861
          %v3561 = vunpack.c.l.b16 %v2862
          %v3562 = vunpack.c.h.b16 %v2862
          %v3563 = vunpack.c.l.b16 %v2863
          %v3564 = vunpack.c.h.b16 %v2863
          %v3565 = vunpack.c.l.b16 %v2864
          %v3566 = vunpack.c.h.b16 %v2864
          %v3567 = vunpack.c.l.b16 %v2865
          %v3568 = vunpack.c.h.b16 %v2865
          %v3569 = vunpack.c.l.b16 %v2866
          %v3570 = vunpack.c.h.b16 %v2866
          %v3571 = vunpack.c.l.b16 %v2867
          %v3572 = vunpack.c.h.b16 %v2867
          %v3573 = vunpack.c.l.b16 %v2868
          %v3574 = vunpack.c.h.b16 %v2868
          %v3575 = vunpack.c.l.b16 %v2869
          %v3576 = vunpack.c.h.b16 %v2869
          %v3577 = vunpack.c.l.b16 %v2870
          %v3578 = vunpack.c.h.b16 %v2870
          %v3579 = vunpack.c.l.b16 %v2871
          %v3580 = vunpack.c.h.b16 %v2871
          %v3581 = vunpack.c.l.b16 %v2872
          %v3582 = vunpack.c.h.b16 %v2872
          %v3583 = vunpack.c.l.b16 %v2873
          %v3584 = vunpack.c.h.b16 %v2873
          %v3585 = vunpack.c.l.b16 %v2874
          %v3586 = vunpack.c.h.b16 %v2874
          %v3587 = vunpack.c.l.b16 %v2875
          %v3588 = vunpack.c.h.b16 %v2875
          %v3589 = vunpack.c.l.b16 %v2876
          %v3590 = vunpack.c.h.b16 %v2876
          %v3591 = vunpack.c.l.b16 %v2877
          %v3592 = vunpack.c.h.b16 %v2877
          %v3593 = vunpack.c.l.b16 %v2878
          %v3594 = vunpack.c.h.b16 %v2878
          %v3595 = vunpack.c.l.b16 %v2879
          %v3596 = vunpack.c.h.b16 %v2879
          %v3597 = vunpack.c.l.b16 %v2880
          %v3598 = vunpack.c.h.b16 %v2880
          %v3599 = vunpack.c.l.b16 %v2881
          %v3600 = vunpack.c.h.b16 %v2881
          %v3601 = vunpack.c.l.b16 %v2882
          %v3602 = vunpack.c.h.b16 %v2882
          %v3603 = vunpack.c.l.b16 %v2883
          %v3604 = vunpack.c.h.b16 %v2883
          %v3605 = vunpack.c.l.b16 %v2884
          %v3606 = vunpack.c.h.b16 %v2884
          %v3607 = vunpack.c.l.b16 %v2885
          %v3608 = vunpack.c.h.b16 %v2885
          %v3609 = vunpack.c.l.b16 %v2886
          %v3610 = vunpack.c.h.b16 %v2886
          %v3611 = vunpack.c.l.b16 %v2887
          %v3612 = vunpack.c.h.b16 %v2887
          %v3613 = vunpack.c.l.b16 %v2888
          %v3614 = vunpack.c.h.b16 %v2888
          %v3615 = vunpack.c.l.b16 %v2889
          %v3616 = vunpack.c.h.b16 %v2889
          %v3617 = vunpack.c.l.b16 %v2890
          %v3618 = vunpack.c.h.b16 %v2890
          %v3619 = vunpack.c.l.b16 %v2891
          %v3620 = vunpack.c.h.b16 %v2891
          %v3621 = vunpack.c.l.b16 %v2892
          %v3622 = vunpack.c.h.b16 %v2892
          %v3623 = vunpack.c.l.b16 %v2893
          %v3624 = vunpack.c.h.b16 %v2893
          %v3625 = vunpack.c.l.b16 %v2894
          %v3626 = vunpack.c.h.b16 %v2894
          %v3627 = vunpack.c.l.b16 %v2895
          %v3628 = vunpack.c.h.b16 %v2895
          %v3629 = vunpack.c.l.b16 %v2896
          %v3630 = vunpack.c.h.b16 %v2896
          %v3631 = vpack.c.b16 %v3383, %v3375
          %v3632 = vpack.c.b16 %v3384, %v3376
          %v3633 = vpack.c.b16 %v3385, %v3377
          %v3634 = vpack.c.b16 %v3386, %v3378
          %v3635 = vpack.c.b16 %v3387, %v3379
          %v3636 = vpack.c.b16 %v3388, %v3380
          %v3637 = vpack.c.b16 %v3389, %v3381
          %v3638 = vpack.c.b16 %v3390, %v3382
          %v3639 = vpack.c.b16 %v3399, %v3391
          %v3640 = vpack.c.b16 %v3400, %v3392
          %v3641 = vpack.c.b16 %v3401, %v3393
          %v3642 = vpack.c.b16 %v3402, %v3394
          %v3643 = vpack.c.b16 %v3403, %v3395
          %v3644 = vpack.c.b16 %v3404, %v3396
          %v3645 = vpack.c.b16 %v3405, %v3397
          %v3646 = vpack.c.b16 %v3406, %v3398
          %v3647 = vpack.c.b16 %v3415, %v3407
          %v3648 = vpack.c.b16 %v3416, %v3408
          %v3649 = vpack.c.b16 %v3417, %v3409
          %v3650 = vpack.c.b16 %v3418, %v3410
          %v3651 = vpack.c.b16 %v3419, %v3411
          %v3652 = vpack.c.b16 %v3420, %v3412
          %v3653 = vpack.c.b16 %v3421, %v3413
          %v3654 = vpack.c.b16 %v3422, %v3414
          %v3655 = vpack.c.b16 %v3431, %v3423
          %v3656 = vpack.c.b16 %v3432, %v3424
          %v3657 = vpack.c.b16 %v3433, %v3425
          %v3658 = vpack.c.b16 %v3434, %v3426
          %v3659 = vpack.c.b16 %v3435, %v3427
          %v3660 = vpack.c.b16 %v3436, %v3428
          %v3661 = vpack.c.b16 %v3437, %v3429
          %v3662 = vpack.c.b16 %v3438, %v3430
          %v3663 = vpack.c.b16 %v3447, %v3439
          %v3664 = vpack.c.b16 %v3448, %v3440
          %v3665 = vpack.c.b16 %v3449, %v3441
          %v3666 = vpack.c.b16 %v3450, %v3442
          %v3667 = vpack.c.b16 %v3451, %v3443
          %v3668 = vpack.c.b16 %v3452, %v3444
          %v3669 = vpack.c.b16 %v3453, %v3445
          %v3670 = vpack.c.b16 %v3454, %v3446
          %v3671 = vpack.c.b16 %v3463, %v3455
          %v3672 = vpack.c.b16 %v3464, %v3456
          %v3673 = vpack.c.b16 %v3465, %v3457
          %v3674 = vpack.c.b16 %v3466, %v3458
          %v3675 = vpack.c.b16 %v3467, %v3459
          %v3676 = vpack.c.b16 %v3468, %v3460
          %v3677 = vpack.c.b16 %v3469, %v3461
          %v3678 = vpack.c.b16 %v3470, %v3462
          %v3679 = vpack.c.b16 %v3479, %v3471
          %v3680 = vpack.c.b16 %v3480, %v3472
          %v3681 = vpack.c.b16 %v3481, %v3473
          %v3682 = vpack.c.b16 %v3482, %v3474
          %v3683 = vpack.c.b16 %v3483, %v3475
          %v3684 = vpack.c.b16 %v3484, %v3476
          %v3685 = vpack.c.b16 %v3485, %v3477
          %v3686 = vpack.c.b16 %v3486, %v3478
          %v3687 = vpack.c.b16 %v3495, %v3487
          %v3688 = vpack.c.b16 %v3496, %v3488
          %v3689 = vpack.c.b16 %v3497, %v3489
          %v3690 = vpack.c.b16 %v3498, %v3490
          %v3691 = vpack.c.b16 %v3499, %v3491
          %v3692 = vpack.c.b16 %v3500, %v3492
          %v3693 = vpack.c.b16 %v3501, %v3493
          %v3694 = vpack.c.b16 %v3502, %v3494
          %v3695 = vpack.c.b16 %v3511, %v3503
          %v3696 = vpack.c.b16 %v3512, %v3504
          %v3697 = vpack.c.b16 %v3513, %v3505
          %v3698 = vpack.c.b16 %v3514, %v3506
          %v3699 = vpack.c.b16 %v3515, %v3507
          %v3700 = vpack.c.b16 %v3516, %v3508
          %v3701 = vpack.c.b16 %v3517, %v3509
          %v3702 = vpack.c.b16 %v3518, %v3510
          %v3703 = vpack.c.b16 %v3527, %v3519
          %v3704 = vpack.c.b16 %v3528, %v3520
          %v3705 = vpack.c.b16 %v3529, %v3521
          %v3706 = vpack.c.b16 %v3530, %v3522
          %v3707 = vpack.c.b16 %v3531, %v3523
          %v3708 = vpack.c.b16 %v3532, %v3524
          %v3709 = vpack.c.b16 %v3533, %v3525
          %v3710 = vpack.c.b16 %v3534, %v3526
          %v3711 = vpack.c.b16 %v3543, %v3535
          %v3712 = vpack.c.b16 %v3544, %v3536
          %v3713 = vpack.c.b16 %v3545, %v3537
          %v3714 = vpack.c.b16 %v3546, %v3538
          %v3715 = vpack.c.b16 %v3547, %v3539
          %v3716 = vpack.c.b16 %v3548, %v3540
          %v3717 = vpack.c.b16 %v3549, %v3541
          %v3718 = vpack.c.b16 %v3550, %v3542
          %v3719 = vpack.c.b16 %v3559, %v3551
          %v3720 = vpack.c.b16 %v3560, %v3552
          %v3721 = vpack.c.b16 %v3561, %v3553
          %v3722 = vpack.c.b16 %v3562, %v3554
          %v3723 = vpack.c.b16 %v3563, %v3555
          %v3724 = vpack.c.b16 %v3564, %v3556
          %v3725 = vpack.c.b16 %v3565, %v3557
          %v3726 = vpack.c.b16 %v3566, %v3558
          %v3727 = vpack.c.b16 %v3575, %v3567
          %v3728 = vpack.c.b16 %v3576, %v3568
          %v3729 = vpack.c.b16 %v3577, %v3569
          %v3730 = vpack.c.b16 %v3578, %v3570
          %v3731 = vpack.c.b16 %v3579, %v3571
          %v3732 = vpack.c.b16 %v3580, %v3572
          %v3733 = vpack.c.b16 %v3581, %v3573
          %v3734 = vpack.c.b16 %v3582, %v3574
          %v3735 = vpack.c.b16 %v3591, %v3583
          %v3736 = vpack.c.b16 %v3592, %v3584
          %v3737 = vpack.c.b16 %v3593, %v3585
          %v3738 = vpack.c.b16 %v3594, %v3586
          %v3739 = vpack.c.b16 %v3595, %v3587
          %v3740 = vpack.c.b16 %v3596, %v3588
          %v3741 = vpack.c.b16 %v3597, %v3589
          %v3742 = vpack.c.b16 %v3598, %v3590
          %v3743 = vpack.c.b16 %v3607, %v3599
          %v3744 = vpack.c.b16 %v3608, %v3600
          %v3745 = vpack.c.b16 %v3609, %v3601
          %v3746 = vpack.c.b16 %v3610, %v3602
          %v3747 = vpack.c.b16 %v3611, %v3603
          %v3748 = vpack.c.b16 %v3612, %v3604
          %v3749 = vpack.c.b16 %v3613, %v3605
          %v3750 = vpack.c.b16 %v3614, %v3606
          %v3751 = vpack.c.b16 %v3623, %v3615
          %v3752 = vpack.c.b16 %v3624, %v3616
          %v3753 = vpack.c.b16 %v3625, %v3617
          %v3754 = vpack.c.b16 %v3626, %v3618
          %v3755 = vpack.c.b16 %v3627, %v3619
          %v3756 = vpack.c.b16 %v3628, %v3620
          %v3757 = vpack.c.b16 %v3629, %v3621
          %v3758 = vpack.c.b16 %v3630, %v3622
          %3887 = vmatprep.subr.bf16.mxu0 %v3688
          %3888 = vmatpush1.bf16.msra.mxu0 %v3687
          %3889 = vmatprep.subr.bf16.mxu0 %v3680
          %3890 = vmatpush1.bf16.msra.mxu0 %v3679
          %3891 = vmatprep.subr.bf16.mxu0 %v3672
          %3892 = vmatpush1.bf16.msra.mxu0 %v3671
          %3893 = vmatprep.subr.bf16.mxu0 %v3664
          %3894 = vmatpush1.bf16.msra.mxu0 %v3663
          %3895 = vmatprep.subr.bf16.mxu0 %v3656
          %3896 = vmatpush1.bf16.msra.mxu0 %v3655
          %3897 = vmatprep.subr.bf16.mxu0 %v3648
          %3898 = vmatpush1.bf16.msra.mxu0 %v3647
          %3899 = vmatprep.subr.bf16.mxu0 %v3640
          %3900 = vmatpush1.bf16.msra.mxu0 %v3639
          %3901 = vmatprep.subr.bf16.mxu0 %v3632
          %3902 = vmatpush1.bf16.msra.mxu0 %v3631
          %3903 = vmatprep.subr.bf16.mxu0 %v3752
          %3904 = vmatpush2.bf16.msra.mxu0 %v3751
          %3905 = vmatprep.subr.bf16.mxu0 %v3744
          %3906 = vmatpush2.bf16.msra.mxu0 %v3743
          %3907 = vmatprep.subr.bf16.mxu0 %v3736
          %3908 = vmatpush2.bf16.msra.mxu0 %v3735
          %3909 = vmatprep.subr.bf16.mxu0 %v3728
          %3910 = vmatpush2.bf16.msra.mxu0 %v3727
          %3911 = vmatprep.subr.bf16.mxu0 %v3720
          %3912 = vmatpush2.bf16.msra.mxu0 %v3719
          %3913 = vmatprep.subr.bf16.mxu0 %v3712
          %3914 = vmatpush2.bf16.msra.mxu0 %v3711
          %3915 = vmatprep.subr.bf16.mxu0 %v3704
          %3916 = vmatpush2.bf16.msra.mxu0 %v3703
          %3917 = vmatprep.subr.bf16.mxu0 %v3696
          %3918 = vmatpush2.bf16.msra.mxu0 %v3695
          %3919 = vmatprep.mubr.bf16.mxu0 %v3246
          %3920 = vmatmul.mubr.bf16.gmra.mxu0 %v3245
          %v3921 = vpop.f32.mrf.mxu0
          %v3922 = vadd.f32 0.0, %v3921
          %v3923 = vpop.f32.mrf.mxu0
          %v3924 = vadd.f32 0.0, %v3923
          %v3925 = vpop.f32.mrf.mxu0
          %v3926 = vpop.f32.mrf.mxu0
          %3927 = vdwg.mxu0
          %3928 = vmatprep.subr.bf16.mxu0 %v3690
          %3929 = vmatpush1.bf16.msra.mxu0 %v3689
          %3930 = vmatprep.subr.bf16.mxu0 %v3682
          %3931 = vmatpush1.bf16.msra.mxu0 %v3681
          %3932 = vmatprep.subr.bf16.mxu0 %v3674
          %3933 = vmatpush1.bf16.msra.mxu0 %v3673
          %3934 = vmatprep.subr.bf16.mxu0 %v3666
          %3935 = vmatpush1.bf16.msra.mxu0 %v3665
          %3936 = vmatprep.subr.bf16.mxu0 %v3658
          %3937 = vmatpush1.bf16.msra.mxu0 %v3657
          %3938 = vmatprep.subr.bf16.mxu0 %v3650
          %3939 = vmatpush1.bf16.msra.mxu0 %v3649
          %3940 = vmatprep.subr.bf16.mxu0 %v3642
          %3941 = vmatpush1.bf16.msra.mxu0 %v3641
          %3942 = vmatprep.subr.bf16.mxu0 %v3634
          %3943 = vmatpush1.bf16.msra.mxu0 %v3633
          %3944 = vmatprep.subr.bf16.mxu0 %v3754
          %3945 = vmatpush2.bf16.msra.mxu0 %v3753
          %3946 = vmatprep.subr.bf16.mxu0 %v3746
          %3947 = vmatpush2.bf16.msra.mxu0 %v3745
          %3948 = vmatprep.subr.bf16.mxu0 %v3738
          %3949 = vmatpush2.bf16.msra.mxu0 %v3737
          %3950 = vmatprep.subr.bf16.mxu0 %v3730
          %3951 = vmatpush2.bf16.msra.mxu0 %v3729
          %3952 = vmatprep.subr.bf16.mxu0 %v3722
          %3953 = vmatpush2.bf16.msra.mxu0 %v3721
          %3954 = vmatprep.subr.bf16.mxu0 %v3714
          %3955 = vmatpush2.bf16.msra.mxu0 %v3713
          %3956 = vmatprep.subr.bf16.mxu0 %v3706
          %3957 = vmatpush2.bf16.msra.mxu0 %v3705
          %3958 = vmatprep.subr.bf16.mxu0 %v3698
          %3959 = vmatpush2.bf16.msra.mxu0 %v3697
          %3960 = vmatprep.mubr.bf16.mxu0 %v3246
          %3961 = vmatmul.mubr.bf16.gmra.mxu0 %v3245
          %v3962 = vpop.f32.mrf.mxu0
          %v3963 = vadd.f32 0.0, %v3962
          %v3964 = vpop.f32.mrf.mxu0
          %v3965 = vadd.f32 0.0, %v3964
          %v3966 = vpop.f32.mrf.mxu0
          %v3967 = vpop.f32.mrf.mxu0
          %3968 = vdwg.mxu0
          %3969 = vmatprep.subr.bf16.mxu0 %v3692
          %3970 = vmatpush1.bf16.msra.mxu0 %v3691
          %3971 = vmatprep.subr.bf16.mxu0 %v3684
          %3972 = vmatpush1.bf16.msra.mxu0 %v3683
          %3973 = vmatprep.subr.bf16.mxu0 %v3676
          %3974 = vmatpush1.bf16.msra.mxu0 %v3675
          %3975 = vmatprep.subr.bf16.mxu0 %v3668
          %3976 = vmatpush1.bf16.msra.mxu0 %v3667
          %3977 = vmatprep.subr.bf16.mxu0 %v3660
          %3978 = vmatpush1.bf16.msra.mxu0 %v3659
          %3979 = vmatprep.subr.bf16.mxu0 %v3652
          %3980 = vmatpush1.bf16.msra.mxu0 %v3651
          %3981 = vmatprep.subr.bf16.mxu0 %v3644
          %3982 = vmatpush1.bf16.msra.mxu0 %v3643
          %3983 = vmatprep.subr.bf16.mxu0 %v3636
          %3984 = vmatpush1.bf16.msra.mxu0 %v3635
          %3985 = vmatprep.subr.bf16.mxu0 %v3756
          %3986 = vmatpush2.bf16.msra.mxu0 %v3755
          %3987 = vmatprep.subr.bf16.mxu0 %v3748
          %3988 = vmatpush2.bf16.msra.mxu0 %v3747
          %3989 = vmatprep.subr.bf16.mxu0 %v3740
          %3990 = vmatpush2.bf16.msra.mxu0 %v3739
          %3991 = vmatprep.subr.bf16.mxu0 %v3732
          %3992 = vmatpush2.bf16.msra.mxu0 %v3731
          %3993 = vmatprep.subr.bf16.mxu0 %v3724
          %3994 = vmatpush2.bf16.msra.mxu0 %v3723
          %3995 = vmatprep.subr.bf16.mxu0 %v3716
          %3996 = vmatpush2.bf16.msra.mxu0 %v3715
          %3997 = vmatprep.subr.bf16.mxu0 %v3708
          %3998 = vmatpush2.bf16.msra.mxu0 %v3707
          %3999 = vmatprep.subr.bf16.mxu0 %v3700
          %4000 = vmatpush2.bf16.msra.mxu0 %v3699
          %4001 = vmatprep.mubr.bf16.mxu0 %v3246
          %4002 = vmatmul.mubr.bf16.gmra.mxu0 %v3245
          %v4003 = vpop.f32.mrf.mxu0
          %v4004 = vadd.f32 0.0, %v4003
          %v4005 = vpop.f32.mrf.mxu0
          %v4006 = vadd.f32 0.0, %v4005
          %v4007 = vpop.f32.mrf.mxu0
          %v4008 = vpop.f32.mrf.mxu0
          %4009 = vdwg.mxu0
          %4010 = vmatprep.subr.bf16.mxu0 %v3694
          %4011 = vmatpush1.bf16.msra.mxu0 %v3693
          %4012 = vmatprep.subr.bf16.mxu0 %v3686
          %4013 = vmatpush1.bf16.msra.mxu0 %v3685
          %4014 = vmatprep.subr.bf16.mxu0 %v3678
          %4015 = vmatpush1.bf16.msra.mxu0 %v3677
          %4016 = vmatprep.subr.bf16.mxu0 %v3670
          %4017 = vmatpush1.bf16.msra.mxu0 %v3669
          %4018 = vmatprep.subr.bf16.mxu0 %v3662
          %4019 = vmatpush1.bf16.msra.mxu0 %v3661
          %4020 = vmatprep.subr.bf16.mxu0 %v3654
          %4021 = vmatpush1.bf16.msra.mxu0 %v3653
          %4022 = vmatprep.subr.bf16.mxu0 %v3646
          %4023 = vmatpush1.bf16.msra.mxu0 %v3645
          %4024 = vmatprep.subr.bf16.mxu0 %v3638
          %4025 = vmatpush1.bf16.msra.mxu0 %v3637
          %4026 = vmatprep.subr.bf16.mxu0 %v3758
          %4027 = vmatpush2.bf16.msra.mxu0 %v3757
          %4028 = vmatprep.subr.bf16.mxu0 %v3750
          %4029 = vmatpush2.bf16.msra.mxu0 %v3749
          %4030 = vmatprep.subr.bf16.mxu0 %v3742
          %4031 = vmatpush2.bf16.msra.mxu0 %v3741
          %4032 = vmatprep.subr.bf16.mxu0 %v3734
          %4033 = vmatpush2.bf16.msra.mxu0 %v3733
          %4034 = vmatprep.subr.bf16.mxu0 %v3726
          %4035 = vmatpush2.bf16.msra.mxu0 %v3725
          %4036 = vmatprep.subr.bf16.mxu0 %v3718
          %4037 = vmatpush2.bf16.msra.mxu0 %v3717
          %4038 = vmatprep.subr.bf16.mxu0 %v3710
          %4039 = vmatpush2.bf16.msra.mxu0 %v3709
          %4040 = vmatprep.subr.bf16.mxu0 %v3702
          %4041 = vmatpush2.bf16.msra.mxu0 %v3701
          %4042 = vmatprep.mubr.bf16.mxu0 %v3246
          %4043 = vmatmul.mubr.bf16.gmra.mxu0 %v3245
          %v4044 = vpop.f32.mrf.mxu0
          %v4045 = vadd.f32 0.0, %v4044
          %v4046 = vpop.f32.mrf.mxu0
          %v4047 = vadd.f32 0.0, %v4046
          %v4048 = vpop.f32.mrf.mxu0
          %v4049 = vpop.f32.mrf.mxu0
          %4050 = vdwg.mxu0
          %v4051 = vpack.c.bf16 %v3239, %v3239
          %v4052 = vpack.c.bf16 %v3241, %v3241
          %v4149 = vunpack.c.l.b16 %v2897
          %v4150 = vunpack.c.h.b16 %v2897
          %v4151 = vunpack.c.l.b16 %v2898
          %v4152 = vunpack.c.h.b16 %v2898
          %v4153 = vunpack.c.l.b16 %v2899
          %v4154 = vunpack.c.h.b16 %v2899
          %v4155 = vunpack.c.l.b16 %v2900
          %v4156 = vunpack.c.h.b16 %v2900
          %v4157 = vunpack.c.l.b16 %v2901
          %v4158 = vunpack.c.h.b16 %v2901
          %v4159 = vunpack.c.l.b16 %v2902
          %v4160 = vunpack.c.h.b16 %v2902
          %v4161 = vunpack.c.l.b16 %v2903
          %v4162 = vunpack.c.h.b16 %v2903
          %v4163 = vunpack.c.l.b16 %v2904
          %v4164 = vunpack.c.h.b16 %v2904
          %v4165 = vunpack.c.l.b16 %v2905
          %v4166 = vunpack.c.h.b16 %v2905
          %v4167 = vunpack.c.l.b16 %v2906
          %v4168 = vunpack.c.h.b16 %v2906
          %v4169 = vunpack.c.l.b16 %v2907
          %v4170 = vunpack.c.h.b16 %v2907
          %v4171 = vunpack.c.l.b16 %v2908
          %v4172 = vunpack.c.h.b16 %v2908
          %v4173 = vunpack.c.l.b16 %v2909
          %v4174 = vunpack.c.h.b16 %v2909
          %v4175 = vunpack.c.l.b16 %v2910
          %v4176 = vunpack.c.h.b16 %v2910
          %v4177 = vunpack.c.l.b16 %v2911
          %v4178 = vunpack.c.h.b16 %v2911
          %v4179 = vunpack.c.l.b16 %v2912
          %v4180 = vunpack.c.h.b16 %v2912
          %v4181 = vunpack.c.l.b16 %v2913
          %v4182 = vunpack.c.h.b16 %v2913
          %v4183 = vunpack.c.l.b16 %v2914
          %v4184 = vunpack.c.h.b16 %v2914
          %v4185 = vunpack.c.l.b16 %v2915
          %v4186 = vunpack.c.h.b16 %v2915
          %v4187 = vunpack.c.l.b16 %v2916
          %v4188 = vunpack.c.h.b16 %v2916
          %v4189 = vunpack.c.l.b16 %v2917
          %v4190 = vunpack.c.h.b16 %v2917
          %v4191 = vunpack.c.l.b16 %v2918
          %v4192 = vunpack.c.h.b16 %v2918
          %v4193 = vunpack.c.l.b16 %v2919
          %v4194 = vunpack.c.h.b16 %v2919
          %v4195 = vunpack.c.l.b16 %v2920
          %v4196 = vunpack.c.h.b16 %v2920
          %v4197 = vunpack.c.l.b16 %v2921
          %v4198 = vunpack.c.h.b16 %v2921
          %v4199 = vunpack.c.l.b16 %v2922
          %v4200 = vunpack.c.h.b16 %v2922
          %v4201 = vunpack.c.l.b16 %v2923
          %v4202 = vunpack.c.h.b16 %v2923
          %v4203 = vunpack.c.l.b16 %v2924
          %v4204 = vunpack.c.h.b16 %v2924
          %v4205 = vunpack.c.l.b16 %v2925
          %v4206 = vunpack.c.h.b16 %v2925
          %v4207 = vunpack.c.l.b16 %v2926
          %v4208 = vunpack.c.h.b16 %v2926
          %v4209 = vunpack.c.l.b16 %v2927
          %v4210 = vunpack.c.h.b16 %v2927
          %v4211 = vunpack.c.l.b16 %v2928
          %v4212 = vunpack.c.h.b16 %v2928
          %v4213 = vunpack.c.l.b16 %v2929
          %v4214 = vunpack.c.h.b16 %v2929
          %v4215 = vunpack.c.l.b16 %v2930
          %v4216 = vunpack.c.h.b16 %v2930
          %v4217 = vunpack.c.l.b16 %v2931
          %v4218 = vunpack.c.h.b16 %v2931
          %v4219 = vunpack.c.l.b16 %v2932
          %v4220 = vunpack.c.h.b16 %v2932
          %v4221 = vunpack.c.l.b16 %v2933
          %v4222 = vunpack.c.h.b16 %v2933
          %v4223 = vunpack.c.l.b16 %v2934
          %v4224 = vunpack.c.h.b16 %v2934
          %v4225 = vunpack.c.l.b16 %v2935
          %v4226 = vunpack.c.h.b16 %v2935
          %v4227 = vunpack.c.l.b16 %v2936
          %v4228 = vunpack.c.h.b16 %v2936
          %v4229 = vunpack.c.l.b16 %v2937
          %v4230 = vunpack.c.h.b16 %v2937
          %v4231 = vunpack.c.l.b16 %v2938
          %v4232 = vunpack.c.h.b16 %v2938
          %v4233 = vunpack.c.l.b16 %v2939
          %v4234 = vunpack.c.h.b16 %v2939
          %v4235 = vunpack.c.l.b16 %v2940
          %v4236 = vunpack.c.h.b16 %v2940
          %v4237 = vunpack.c.l.b16 %v2941
          %v4238 = vunpack.c.h.b16 %v2941
          %v4239 = vunpack.c.l.b16 %v2942
          %v4240 = vunpack.c.h.b16 %v2942
          %v4241 = vunpack.c.l.b16 %v2943
          %v4242 = vunpack.c.h.b16 %v2943
          %v4243 = vunpack.c.l.b16 %v2944
          %v4244 = vunpack.c.h.b16 %v2944
          %v4245 = vunpack.c.l.b16 %v2945
          %v4246 = vunpack.c.h.b16 %v2945
          %v4247 = vunpack.c.l.b16 %v2946
          %v4248 = vunpack.c.h.b16 %v2946
          %v4249 = vunpack.c.l.b16 %v2947
          %v4250 = vunpack.c.h.b16 %v2947
          %v4251 = vunpack.c.l.b16 %v2948
          %v4252 = vunpack.c.h.b16 %v2948
          %v4253 = vunpack.c.l.b16 %v2949
          %v4254 = vunpack.c.h.b16 %v2949
          %v4255 = vunpack.c.l.b16 %v2950
          %v4256 = vunpack.c.h.b16 %v2950
          %v4257 = vunpack.c.l.b16 %v2951
          %v4258 = vunpack.c.h.b16 %v2951
          %v4259 = vunpack.c.l.b16 %v2952
          %v4260 = vunpack.c.h.b16 %v2952
          %v4261 = vunpack.c.l.b16 %v2953
          %v4262 = vunpack.c.h.b16 %v2953
          %v4263 = vunpack.c.l.b16 %v2954
          %v4264 = vunpack.c.h.b16 %v2954
          %v4265 = vunpack.c.l.b16 %v2955
          %v4266 = vunpack.c.h.b16 %v2955
          %v4267 = vunpack.c.l.b16 %v2956
          %v4268 = vunpack.c.h.b16 %v2956
          %v4269 = vunpack.c.l.b16 %v2957
          %v4270 = vunpack.c.h.b16 %v2957
          %v4271 = vunpack.c.l.b16 %v2958
          %v4272 = vunpack.c.h.b16 %v2958
          %v4273 = vunpack.c.l.b16 %v2959
          %v4274 = vunpack.c.h.b16 %v2959
          %v4275 = vunpack.c.l.b16 %v2960
          %v4276 = vunpack.c.h.b16 %v2960
          %v4277 = vunpack.c.l.b16 %v2961
          %v4278 = vunpack.c.h.b16 %v2961
          %v4279 = vunpack.c.l.b16 %v2962
          %v4280 = vunpack.c.h.b16 %v2962
          %v4281 = vunpack.c.l.b16 %v2963
          %v4282 = vunpack.c.h.b16 %v2963
          %v4283 = vunpack.c.l.b16 %v2964
          %v4284 = vunpack.c.h.b16 %v2964
          %v4285 = vunpack.c.l.b16 %v2965
          %v4286 = vunpack.c.h.b16 %v2965
          %v4287 = vunpack.c.l.b16 %v2966
          %v4288 = vunpack.c.h.b16 %v2966
          %v4289 = vunpack.c.l.b16 %v2967
          %v4290 = vunpack.c.h.b16 %v2967
          %v4291 = vunpack.c.l.b16 %v2968
          %v4292 = vunpack.c.h.b16 %v2968
          %v4293 = vunpack.c.l.b16 %v2969
          %v4294 = vunpack.c.h.b16 %v2969
          %v4295 = vunpack.c.l.b16 %v2970
          %v4296 = vunpack.c.h.b16 %v2970
          %v4297 = vunpack.c.l.b16 %v2971
          %v4298 = vunpack.c.h.b16 %v2971
          %v4299 = vunpack.c.l.b16 %v2972
          %v4300 = vunpack.c.h.b16 %v2972
          %v4301 = vunpack.c.l.b16 %v2973
          %v4302 = vunpack.c.h.b16 %v2973
          %v4303 = vunpack.c.l.b16 %v2974
          %v4304 = vunpack.c.h.b16 %v2974
          %v4305 = vunpack.c.l.b16 %v2975
          %v4306 = vunpack.c.h.b16 %v2975
          %v4307 = vunpack.c.l.b16 %v2976
          %v4308 = vunpack.c.h.b16 %v2976
          %v4309 = vunpack.c.l.b16 %v2977
          %v4310 = vunpack.c.h.b16 %v2977
          %v4311 = vunpack.c.l.b16 %v2978
          %v4312 = vunpack.c.h.b16 %v2978
          %v4313 = vunpack.c.l.b16 %v2979
          %v4314 = vunpack.c.h.b16 %v2979
          %v4315 = vunpack.c.l.b16 %v2980
          %v4316 = vunpack.c.h.b16 %v2980
          %v4317 = vunpack.c.l.b16 %v2981
          %v4318 = vunpack.c.h.b16 %v2981
          %v4319 = vunpack.c.l.b16 %v2982
          %v4320 = vunpack.c.h.b16 %v2982
          %v4321 = vunpack.c.l.b16 %v2983
          %v4322 = vunpack.c.h.b16 %v2983
          %v4323 = vunpack.c.l.b16 %v2984
          %v4324 = vunpack.c.h.b16 %v2984
          %v4325 = vunpack.c.l.b16 %v2985
          %v4326 = vunpack.c.h.b16 %v2985
          %v4327 = vunpack.c.l.b16 %v2986
          %v4328 = vunpack.c.h.b16 %v2986
          %v4329 = vunpack.c.l.b16 %v2987
          %v4330 = vunpack.c.h.b16 %v2987
          %v4331 = vunpack.c.l.b16 %v2988
          %v4332 = vunpack.c.h.b16 %v2988
          %v4333 = vunpack.c.l.b16 %v2989
          %v4334 = vunpack.c.h.b16 %v2989
          %v4335 = vunpack.c.l.b16 %v2990
          %v4336 = vunpack.c.h.b16 %v2990
          %v4337 = vunpack.c.l.b16 %v2991
          %v4338 = vunpack.c.h.b16 %v2991
          %v4339 = vunpack.c.l.b16 %v2992
          %v4340 = vunpack.c.h.b16 %v2992
          %v4341 = vpack.c.b16 %v4155, %v4149
          %v4342 = vpack.c.b16 %v4156, %v4150
          %v4343 = vpack.c.b16 %v4157, %v4151
          %v4344 = vpack.c.b16 %v4158, %v4152
          %v4345 = vpack.c.b16 %v4159, %v4153
          %v4346 = vpack.c.b16 %v4160, %v4154
          %v4347 = vpack.c.b16 %v4167, %v4161
          %v4348 = vpack.c.b16 %v4168, %v4162
          %v4349 = vpack.c.b16 %v4169, %v4163
          %v4350 = vpack.c.b16 %v4170, %v4164
          %v4351 = vpack.c.b16 %v4171, %v4165
          %v4352 = vpack.c.b16 %v4172, %v4166
          %v4353 = vpack.c.b16 %v4179, %v4173
          %v4354 = vpack.c.b16 %v4180, %v4174
          %v4355 = vpack.c.b16 %v4181, %v4175
          %v4356 = vpack.c.b16 %v4182, %v4176
          %v4357 = vpack.c.b16 %v4183, %v4177
          %v4358 = vpack.c.b16 %v4184, %v4178
          %v4359 = vpack.c.b16 %v4191, %v4185
          %v4360 = vpack.c.b16 %v4192, %v4186
          %v4361 = vpack.c.b16 %v4193, %v4187
          %v4362 = vpack.c.b16 %v4194, %v4188
          %v4363 = vpack.c.b16 %v4195, %v4189
          %v4364 = vpack.c.b16 %v4196, %v4190
          %v4365 = vpack.c.b16 %v4203, %v4197
          %v4366 = vpack.c.b16 %v4204, %v4198
          %v4367 = vpack.c.b16 %v4205, %v4199
          %v4368 = vpack.c.b16 %v4206, %v4200
          %v4369 = vpack.c.b16 %v4207, %v4201
          %v4370 = vpack.c.b16 %v4208, %v4202
          %v4371 = vpack.c.b16 %v4215, %v4209
          %v4372 = vpack.c.b16 %v4216, %v4210
          %v4373 = vpack.c.b16 %v4217, %v4211
          %v4374 = vpack.c.b16 %v4218, %v4212
          %v4375 = vpack.c.b16 %v4219, %v4213
          %v4376 = vpack.c.b16 %v4220, %v4214
          %v4377 = vpack.c.b16 %v4227, %v4221
          %v4378 = vpack.c.b16 %v4228, %v4222
          %v4379 = vpack.c.b16 %v4229, %v4223
          %v4380 = vpack.c.b16 %v4230, %v4224
          %v4381 = vpack.c.b16 %v4231, %v4225
          %v4382 = vpack.c.b16 %v4232, %v4226
          %v4383 = vpack.c.b16 %v4239, %v4233
          %v4384 = vpack.c.b16 %v4240, %v4234
          %v4385 = vpack.c.b16 %v4241, %v4235
          %v4386 = vpack.c.b16 %v4242, %v4236
          %v4387 = vpack.c.b16 %v4243, %v4237
          %v4388 = vpack.c.b16 %v4244, %v4238
          %v4389 = vpack.c.b16 %v4251, %v4245
          %v4390 = vpack.c.b16 %v4252, %v4246
          %v4391 = vpack.c.b16 %v4253, %v4247
          %v4392 = vpack.c.b16 %v4254, %v4248
          %v4393 = vpack.c.b16 %v4255, %v4249
          %v4394 = vpack.c.b16 %v4256, %v4250
          %v4395 = vpack.c.b16 %v4263, %v4257
          %v4396 = vpack.c.b16 %v4264, %v4258
          %v4397 = vpack.c.b16 %v4265, %v4259
          %v4398 = vpack.c.b16 %v4266, %v4260
          %v4399 = vpack.c.b16 %v4267, %v4261
          %v4400 = vpack.c.b16 %v4268, %v4262
          %v4401 = vpack.c.b16 %v4275, %v4269
          %v4402 = vpack.c.b16 %v4276, %v4270
          %v4403 = vpack.c.b16 %v4277, %v4271
          %v4404 = vpack.c.b16 %v4278, %v4272
          %v4405 = vpack.c.b16 %v4279, %v4273
          %v4406 = vpack.c.b16 %v4280, %v4274
          %v4407 = vpack.c.b16 %v4287, %v4281
          %v4408 = vpack.c.b16 %v4288, %v4282
          %v4409 = vpack.c.b16 %v4289, %v4283
          %v4410 = vpack.c.b16 %v4290, %v4284
          %v4411 = vpack.c.b16 %v4291, %v4285
          %v4412 = vpack.c.b16 %v4292, %v4286
          %v4413 = vpack.c.b16 %v4299, %v4293
          %v4414 = vpack.c.b16 %v4300, %v4294
          %v4415 = vpack.c.b16 %v4301, %v4295
          %v4416 = vpack.c.b16 %v4302, %v4296
          %v4417 = vpack.c.b16 %v4303, %v4297
          %v4418 = vpack.c.b16 %v4304, %v4298
          %v4419 = vpack.c.b16 %v4311, %v4305
          %v4420 = vpack.c.b16 %v4312, %v4306
          %v4421 = vpack.c.b16 %v4313, %v4307
          %v4422 = vpack.c.b16 %v4314, %v4308
          %v4423 = vpack.c.b16 %v4315, %v4309
          %v4424 = vpack.c.b16 %v4316, %v4310
          %v4425 = vpack.c.b16 %v4323, %v4317
          %v4426 = vpack.c.b16 %v4324, %v4318
          %v4427 = vpack.c.b16 %v4325, %v4319
          %v4428 = vpack.c.b16 %v4326, %v4320
          %v4429 = vpack.c.b16 %v4327, %v4321
          %v4430 = vpack.c.b16 %v4328, %v4322
          %v4431 = vpack.c.b16 %v4335, %v4329
          %v4432 = vpack.c.b16 %v4336, %v4330
          %v4433 = vpack.c.b16 %v4337, %v4331
          %v4434 = vpack.c.b16 %v4338, %v4332
          %v4435 = vpack.c.b16 %v4339, %v4333
          %v4436 = vpack.c.b16 %v4340, %v4334
          %4533 = vmatprep.subr.bf16.mxu0 %v4384
          %4534 = vmatpush1.bf16.msra.mxu0 %v4383
          %4535 = vmatprep.subr.bf16.mxu0 %v4378
          %4536 = vmatpush1.bf16.msra.mxu0 %v4377
          %4537 = vmatprep.subr.bf16.mxu0 %v4372
          %4538 = vmatpush1.bf16.msra.mxu0 %v4371
          %4539 = vmatprep.subr.bf16.mxu0 %v4366
          %4540 = vmatpush1.bf16.msra.mxu0 %v4365
          %4541 = vmatprep.subr.bf16.mxu0 %v4360
          %4542 = vmatpush1.bf16.msra.mxu0 %v4359
          %4543 = vmatprep.subr.bf16.mxu0 %v4354
          %4544 = vmatpush1.bf16.msra.mxu0 %v4353
          %4545 = vmatprep.subr.bf16.mxu0 %v4348
          %4546 = vmatpush1.bf16.msra.mxu0 %v4347
          %4547 = vmatprep.subr.bf16.mxu0 %v4342
          %4548 = vmatpush1.bf16.msra.mxu0 %v4341
          %4549 = vmatprep.subr.bf16.mxu0 %v4432
          %4550 = vmatpush2.bf16.msra.mxu0 %v4431
          %4551 = vmatprep.subr.bf16.mxu0 %v4426
          %4552 = vmatpush2.bf16.msra.mxu0 %v4425
          %4553 = vmatprep.subr.bf16.mxu0 %v4420
          %4554 = vmatpush2.bf16.msra.mxu0 %v4419
          %4555 = vmatprep.subr.bf16.mxu0 %v4414
          %4556 = vmatpush2.bf16.msra.mxu0 %v4413
          %4557 = vmatprep.subr.bf16.mxu0 %v4408
          %4558 = vmatpush2.bf16.msra.mxu0 %v4407
          %4559 = vmatprep.subr.bf16.mxu0 %v4402
          %4560 = vmatpush2.bf16.msra.mxu0 %v4401
          %4561 = vmatprep.subr.bf16.mxu0 %v4396
          %4562 = vmatpush2.bf16.msra.mxu0 %v4395
          %4563 = vmatprep.subr.bf16.mxu0 %v4390
          %4564 = vmatpush2.bf16.msra.mxu0 %v4389
          %4565 = vmatprep.mubr.bf16.mxu0 %v4052
          %4566 = vmatmul.mubr.bf16.gmra.mxu0 %v4051
          %v4567 = vpop.f32.mrf.mxu0
          %v4568 = vadd.f32 0.0, %v4567
          %v4569 = vpop.f32.mrf.mxu0
          %v4570 = vadd.f32 0.0, %v4569
          %v4571 = vpop.f32.mrf.mxu0
          %v4572 = vpop.f32.mrf.mxu0
          %4573 = vdwg.mxu0
          %4574 = vmatprep.subr.bf16.mxu0 %v4386
          %4575 = vmatpush1.bf16.msra.mxu0 %v4385
          %4576 = vmatprep.subr.bf16.mxu0 %v4380
          %4577 = vmatpush1.bf16.msra.mxu0 %v4379
          %4578 = vmatprep.subr.bf16.mxu0 %v4374
          %4579 = vmatpush1.bf16.msra.mxu0 %v4373
          %4580 = vmatprep.subr.bf16.mxu0 %v4368
          %4581 = vmatpush1.bf16.msra.mxu0 %v4367
          %4582 = vmatprep.subr.bf16.mxu0 %v4362
          %4583 = vmatpush1.bf16.msra.mxu0 %v4361
          %4584 = vmatprep.subr.bf16.mxu0 %v4356
          %4585 = vmatpush1.bf16.msra.mxu0 %v4355
          %4586 = vmatprep.subr.bf16.mxu0 %v4350
          %4587 = vmatpush1.bf16.msra.mxu0 %v4349
          %4588 = vmatprep.subr.bf16.mxu0 %v4344
          %4589 = vmatpush1.bf16.msra.mxu0 %v4343
          %4590 = vmatprep.subr.bf16.mxu0 %v4434
          %4591 = vmatpush2.bf16.msra.mxu0 %v4433
          %4592 = vmatprep.subr.bf16.mxu0 %v4428
          %4593 = vmatpush2.bf16.msra.mxu0 %v4427
          %4594 = vmatprep.subr.bf16.mxu0 %v4422
          %4595 = vmatpush2.bf16.msra.mxu0 %v4421
          %4596 = vmatprep.subr.bf16.mxu0 %v4416
          %4597 = vmatpush2.bf16.msra.mxu0 %v4415
          %4598 = vmatprep.subr.bf16.mxu0 %v4410
          %4599 = vmatpush2.bf16.msra.mxu0 %v4409
          %4600 = vmatprep.subr.bf16.mxu0 %v4404
          %4601 = vmatpush2.bf16.msra.mxu0 %v4403
          %4602 = vmatprep.subr.bf16.mxu0 %v4398
          %4603 = vmatpush2.bf16.msra.mxu0 %v4397
          %4604 = vmatprep.subr.bf16.mxu0 %v4392
          %4605 = vmatpush2.bf16.msra.mxu0 %v4391
          %4606 = vmatprep.mubr.bf16.mxu0 %v4052
          %4607 = vmatmul.mubr.bf16.gmra.mxu0 %v4051
          %v4608 = vpop.f32.mrf.mxu0
          %v4609 = vadd.f32 0.0, %v4608
          %v4610 = vpop.f32.mrf.mxu0
          %v4611 = vadd.f32 0.0, %v4610
          %v4612 = vpop.f32.mrf.mxu0
          %v4613 = vpop.f32.mrf.mxu0
          %4614 = vdwg.mxu0
          %4615 = vmatprep.subr.bf16.mxu0 %v4388
          %4616 = vmatpush1.bf16.msra.mxu0 %v4387
          %4617 = vmatprep.subr.bf16.mxu0 %v4382
          %4618 = vmatpush1.bf16.msra.mxu0 %v4381
          %4619 = vmatprep.subr.bf16.mxu0 %v4376
          %4620 = vmatpush1.bf16.msra.mxu0 %v4375
          %4621 = vmatprep.subr.bf16.mxu0 %v4370
          %4622 = vmatpush1.bf16.msra.mxu0 %v4369
          %4623 = vmatprep.subr.bf16.mxu0 %v4364
          %4624 = vmatpush1.bf16.msra.mxu0 %v4363
          %4625 = vmatprep.subr.bf16.mxu0 %v4358
          %4626 = vmatpush1.bf16.msra.mxu0 %v4357
          %4627 = vmatprep.subr.bf16.mxu0 %v4352
          %4628 = vmatpush1.bf16.msra.mxu0 %v4351
          %4629 = vmatprep.subr.bf16.mxu0 %v4346
          %4630 = vmatpush1.bf16.msra.mxu0 %v4345
          %4631 = vmatprep.subr.bf16.mxu0 %v4436
          %4632 = vmatpush2.bf16.msra.mxu0 %v4435
          %4633 = vmatprep.subr.bf16.mxu0 %v4430
          %4634 = vmatpush2.bf16.msra.mxu0 %v4429
          %4635 = vmatprep.subr.bf16.mxu0 %v4424
          %4636 = vmatpush2.bf16.msra.mxu0 %v4423
          %4637 = vmatprep.subr.bf16.mxu0 %v4418
          %4638 = vmatpush2.bf16.msra.mxu0 %v4417
          %4639 = vmatprep.subr.bf16.mxu0 %v4412
          %4640 = vmatpush2.bf16.msra.mxu0 %v4411
          %4641 = vmatprep.subr.bf16.mxu0 %v4406
          %4642 = vmatpush2.bf16.msra.mxu0 %v4405
          %4643 = vmatprep.subr.bf16.mxu0 %v4400
          %4644 = vmatpush2.bf16.msra.mxu0 %v4399
          %4645 = vmatprep.subr.bf16.mxu0 %v4394
          %4646 = vmatpush2.bf16.msra.mxu0 %v4393
          %4647 = vmatprep.mubr.bf16.mxu0 %v4052
          %4648 = vmatmul.mubr.bf16.gmra.mxu0 %v4051
          %v4649 = vpop.f32.mrf.mxu0
          %v4650 = vadd.f32 0.0, %v4649
          %v4651 = vpop.f32.mrf.mxu0
          %v4652 = vadd.f32 0.0, %v4651
          %v4653 = vpop.f32.mrf.mxu0
          %v4654 = vpop.f32.mrf.mxu0
          %4655 = vdwg.mxu0
          %v4656 = vlaneseq
          %v4657 = vshrl.u32 %v4656, 7
          %v4658 = vsub.s32 0, %v4657
          %v4659 = vrot.slane %v4568, %v4658
          %v4660 = vlaneseq
          %v4661 = vshrl.u32 %v4660, 7
          %v4662 = vsub.s32 0, %v4661
          %v4663 = vrot.slane %v4570, %v4662
          %v4664 = vadd.f32 %v3922, %v4659
          %v4665 = vadd.f32 %v3924, %v4663
          %v4666 = vlaneseq
          %v4667 = vshrl.u32 %v4666, 7
          %v4668 = vsub.s32 1, %v4667
          %v4669 = vrot.slane %v3025, %v4668
          %v4670 = vlaneseq
          %v4671 = vshrl.u32 %v4670, 7
          %v4672 = vsub.s32 1, %v4671
          %v4673 = vrot.slane %v3026, %v4672
          %v4674 = vadd.f32 %v4664, %v4669
          %v4675 = vadd.f32 %v4665, %v4673
          %v4676 = vmax.f32 %v4674, 0.0
          %v4677 = vmax.f32 %v4675, 0.0
          %v4678 = vpack.c.bf16 %v4676, %v4676
          %v4679 = vpack.c.bf16 %v4677, %v4677
          %v4712 = vunpack.c.l.b16 %v2993
          %v4713 = vunpack.c.l.b16 %v2994
          %v4714 = vunpack.c.l.b16 %v2995
          %v4715 = vunpack.c.l.b16 %v2996
          %v4716 = vunpack.c.l.b16 %v2997
          %v4717 = vunpack.c.l.b16 %v2998
          %v4718 = vunpack.c.l.b16 %v2999
          %v4719 = vunpack.c.l.b16 %v3000
          %v4720 = vunpack.c.l.b16 %v3001
          %v4721 = vunpack.c.l.b16 %v3002
          %v4722 = vunpack.c.l.b16 %v3003
          %v4723 = vunpack.c.l.b16 %v3004
          %v4724 = vunpack.c.l.b16 %v3005
          %v4725 = vunpack.c.l.b16 %v3006
          %v4726 = vunpack.c.l.b16 %v3007
          %v4727 = vunpack.c.l.b16 %v3008
          %v4728 = vunpack.c.l.b16 %v3009
          %v4729 = vunpack.c.l.b16 %v3010
          %v4730 = vunpack.c.l.b16 %v3011
          %v4731 = vunpack.c.l.b16 %v3012
          %v4732 = vunpack.c.l.b16 %v3013
          %v4733 = vunpack.c.l.b16 %v3014
          %v4734 = vunpack.c.l.b16 %v3015
          %v4735 = vunpack.c.l.b16 %v3016
          %v4736 = vunpack.c.l.b16 %v3017
          %v4737 = vunpack.c.l.b16 %v3018
          %v4738 = vunpack.c.l.b16 %v3019
          %v4739 = vunpack.c.l.b16 %v3020
          %v4740 = vunpack.c.l.b16 %v3021
          %v4741 = vunpack.c.l.b16 %v3022
          %v4742 = vunpack.c.l.b16 %v3023
          %v4743 = vunpack.c.l.b16 %v3024
          %v4744 = vpack.c.b16 %v4713, %v4712
          %v4745 = vpack.c.b16 %v4715, %v4714
          %v4746 = vpack.c.b16 %v4717, %v4716
          %v4747 = vpack.c.b16 %v4719, %v4718
          %v4748 = vpack.c.b16 %v4721, %v4720
          %v4749 = vpack.c.b16 %v4723, %v4722
          %v4750 = vpack.c.b16 %v4725, %v4724
          %v4751 = vpack.c.b16 %v4727, %v4726
          %v4752 = vpack.c.b16 %v4729, %v4728
          %v4753 = vpack.c.b16 %v4731, %v4730
          %v4754 = vpack.c.b16 %v4733, %v4732
          %v4755 = vpack.c.b16 %v4735, %v4734
          %v4756 = vpack.c.b16 %v4737, %v4736
          %v4757 = vpack.c.b16 %v4739, %v4738
          %v4758 = vpack.c.b16 %v4741, %v4740
          %v4759 = vpack.c.b16 %v4743, %v4742
          %4776 = vmatprep.subr.bf16.mxu0 0
          %4777 = vmatpush1.bf16.msra.mxu0 %v4751
          %4778 = vmatprep.subr.bf16.mxu0 0
          %4779 = vmatpush1.bf16.msra.mxu0 %v4750
          %4780 = vmatprep.subr.bf16.mxu0 0
          %4781 = vmatpush1.bf16.msra.mxu0 %v4749
          %4782 = vmatprep.subr.bf16.mxu0 0
          %4783 = vmatpush1.bf16.msra.mxu0 %v4748
          %4784 = vmatprep.subr.bf16.mxu0 0
          %4785 = vmatpush1.bf16.msra.mxu0 %v4747
          %4786 = vmatprep.subr.bf16.mxu0 0
          %4787 = vmatpush1.bf16.msra.mxu0 %v4746
          %4788 = vmatprep.subr.bf16.mxu0 0
          %4789 = vmatpush1.bf16.msra.mxu0 %v4745
          %4790 = vmatprep.subr.bf16.mxu0 0
          %4791 = vmatpush1.bf16.msra.mxu0 %v4744
          %4792 = vmatprep.subr.bf16.mxu0 0
          %4793 = vmatpush2.bf16.msra.mxu0 %v4759
          %4794 = vmatprep.subr.bf16.mxu0 0
          %4795 = vmatpush2.bf16.msra.mxu0 %v4758
          %4796 = vmatprep.subr.bf16.mxu0 0
          %4797 = vmatpush2.bf16.msra.mxu0 %v4757
          %4798 = vmatprep.subr.bf16.mxu0 0
          %4799 = vmatpush2.bf16.msra.mxu0 %v4756
          %4800 = vmatprep.subr.bf16.mxu0 0
          %4801 = vmatpush2.bf16.msra.mxu0 %v4755
          %4802 = vmatprep.subr.bf16.mxu0 0
          %4803 = vmatpush2.bf16.msra.mxu0 %v4754
          %4804 = vmatprep.subr.bf16.mxu0 0
          %4805 = vmatpush2.bf16.msra.mxu0 %v4753
          %4806 = vmatprep.subr.bf16.mxu0 0
          %4807 = vmatpush2.bf16.msra.mxu0 %v4752
          %4808 = vmatprep.mubr.bf16.mxu0 %v4679
          %4809 = vmatmul.mubr.bf16.gmra.mxu0 %v4678
          %v4810 = vpop.f32.mrf.mxu0
          %v4811 = vadd.f32 0.0, %v4810
          %v4812 = vpop.f32.mrf.mxu0
          %v4813 = vpop.f32.mrf.mxu0
          %v4814 = vpop.f32.mrf.mxu0
          %4815 = vdwg.mxu0
          %v4816 = vlaneseq
          %v4817 = vshrl.u32 %v4816, 7
          %v4818 = vsub.s32 4, %v4817
          %v4819 = vrot.slane %v3025, %v4818
          %v4820 = vadd.f32 %v4811, %v4819
          %vm4821 = vcmask 31744
          %v4822 = vsel %vm4821, %v4820, -inf
          %4823 = vmax.xlane.f32.xlu0 %v4822
          %v4824 = vpop.xlane.xlu0 %4823
          %v4825 = vsub.f32 %v4820, %v4824
          %v4826 = vmul.f32 %v4825, 1.442695
          %v4827 = vpow.pop %v4826
          %v4828 = vsel %vm4821, %v4827, 0.0
          %4829 = vadd.xlane.f32.xlu0 %v4828
          %v4830 = vpop.xlane.xlu0 %4829
          %v4831 = vrcp.pop %v4830
          %v4832 = vmul.f32 %v4827, %v4831
          %v4833 = vlaneseq
          %v4834 = vshrl.u32 %v4833, 7
          %v4835 = vsub.s32 0, %v4834
          %v4836 = vrot.slane %v4609, %v4835
          %v4837 = vlaneseq
          %v4838 = vshrl.u32 %v4837, 7
          %v4839 = vsub.s32 0, %v4838
          %v4840 = vrot.slane %v4611, %v4839
          %v4841 = vadd.f32 %v3963, %v4836
          %v4842 = vadd.f32 %v3965, %v4840
          %v4843 = vlaneseq
          %v4844 = vshrl.u32 %v4843, 7
          %v4845 = vsub.s32 2, %v4844
          %v4846 = vrot.slane %v3025, %v4845
          %v4847 = vlaneseq
          %v4848 = vshrl.u32 %v4847, 7
          %v4849 = vsub.s32 2, %v4848
          %v4850 = vrot.slane %v3026, %v4849
          %v4851 = vadd.f32 %v4841, %v4846
          %v4852 = vadd.f32 %v4842, %v4850
          %v4853 = vmax.f32 %v4851, 0.0
          %v4854 = vmax.f32 %v4852, 0.0
          %v4855 = vpack.c.bf16 %v4853, %v4853
          %v4856 = vpack.c.bf16 %v4854, %v4854
          %4857 = vmatprep.subr.bf16.mxu0 0
          %4858 = vmatpush1.bf16.msra.mxu0 %v4751
          %4859 = vmatprep.subr.bf16.mxu0 0
          %4860 = vmatpush1.bf16.msra.mxu0 %v4750
          %4861 = vmatprep.subr.bf16.mxu0 0
          %4862 = vmatpush1.bf16.msra.mxu0 %v4749
          %4863 = vmatprep.subr.bf16.mxu0 0
          %4864 = vmatpush1.bf16.msra.mxu0 %v4748
          %4865 = vmatprep.subr.bf16.mxu0 0
          %4866 = vmatpush1.bf16.msra.mxu0 %v4747
          %4867 = vmatprep.subr.bf16.mxu0 0
          %4868 = vmatpush1.bf16.msra.mxu0 %v4746
          %4869 = vmatprep.subr.bf16.mxu0 0
          %4870 = vmatpush1.bf16.msra.mxu0 %v4745
          %4871 = vmatprep.subr.bf16.mxu0 0
          %4872 = vmatpush1.bf16.msra.mxu0 %v4744
          %4873 = vmatprep.subr.bf16.mxu0 0
          %4874 = vmatpush2.bf16.msra.mxu0 %v4759
          %4875 = vmatprep.subr.bf16.mxu0 0
          %4876 = vmatpush2.bf16.msra.mxu0 %v4758
          %4877 = vmatprep.subr.bf16.mxu0 0
          %4878 = vmatpush2.bf16.msra.mxu0 %v4757
          %4879 = vmatprep.subr.bf16.mxu0 0
          %4880 = vmatpush2.bf16.msra.mxu0 %v4756
          %4881 = vmatprep.subr.bf16.mxu0 0
          %4882 = vmatpush2.bf16.msra.mxu0 %v4755
          %4883 = vmatprep.subr.bf16.mxu0 0
          %4884 = vmatpush2.bf16.msra.mxu0 %v4754
          %4885 = vmatprep.subr.bf16.mxu0 0
          %4886 = vmatpush2.bf16.msra.mxu0 %v4753
          %4887 = vmatprep.subr.bf16.mxu0 0
          %4888 = vmatpush2.bf16.msra.mxu0 %v4752
          %4889 = vmatprep.mubr.bf16.mxu0 %v4856
          %4890 = vmatmul.mubr.bf16.gmra.mxu0 %v4855
          %v4891 = vpop.f32.mrf.mxu0
          %v4892 = vadd.f32 0.0, %v4891
          %v4893 = vpop.f32.mrf.mxu0
          %v4894 = vpop.f32.mrf.mxu0
          %v4895 = vpop.f32.mrf.mxu0
          %4896 = vdwg.mxu0
          %v4897 = vlaneseq
          %v4898 = vshrl.u32 %v4897, 7
          %v4899 = vsub.s32 5, %v4898
          %v4900 = vrot.slane %v3025, %v4899
          %4902 = vrot.lane.b32.xlu0 %v4900, 4
          %v4903 = vpop.permute.xlu0 %4902
          %v4905 = vadd.f32 %v4892, %v4903
          %v4906 = vmax.f32 %v4905, -10.0
          %v4907 = vmin.f32 %v4906, 10.0
          %v4908 = vlaneseq
          %v4909 = vshrl.u32 %v4908, 7
          %v4910 = vsub.s32 0, %v4909
          %v4911 = vrot.slane %v4650, %v4910
          %v4912 = vlaneseq
          %v4913 = vshrl.u32 %v4912, 7
          %v4914 = vsub.s32 0, %v4913
          %v4915 = vrot.slane %v4652, %v4914
          %v4916 = vadd.f32 %v4004, %v4911
          %v4917 = vadd.f32 %v4006, %v4915
          %v4918 = vlaneseq
          %v4919 = vshrl.u32 %v4918, 7
          %v4920 = vsub.s32 3, %v4919
          %v4921 = vrot.slane %v3025, %v4920
          %v4922 = vlaneseq
          %v4923 = vshrl.u32 %v4922, 7
          %v4924 = vsub.s32 3, %v4923
          %v4925 = vrot.slane %v3026, %v4924
          %v4926 = vadd.f32 %v4916, %v4921
          %v4927 = vadd.f32 %v4917, %v4925
          %v4930 = vcombine.low %v4926, %v4927
          %v4931 = vcombine.high %v4926, %v4927
          %v4933 = vunpack.c.l.s4 1966171168
          %v4934 = vunpack.c.0.s8 %v4933
          %v4935 = vlaneseq
          %v4936 = vshrl.u32 %v4935, 7
          %v4937 = vsub.s32 %v4934, %v4936
          %v4938 = vrot.slane %v4930, %v4937
          %v4940 = vunpack.c.l.s4 1966171168
          %v4941 = vunpack.c.0.s8 %v4940
          %v4942 = vlaneseq
          %v4943 = vshrl.u32 %v4942, 7
          %v4944 = vsub.s32 %v4941, %v4943
          %v4945 = vrot.slane %v4931, %v4944
          %v4946 = vcombine.high %v4938, %v4938
          %v4947 = vcombine.high %v4945, %v4945
          %v4949 = vunpack.c.l.s4 1966171168
          %v4950 = vunpack.c.0.s8 %v4949
          %v4951 = vlaneseq
          %v4952 = vshrl.u32 %v4951, 7
          %v4953 = vsub.s32 %v4950, %v4952
          %v4954 = vrot.slane %v4938, %v4953
          %v4956 = vunpack.c.l.s4 1966171168
          %v4957 = vunpack.c.0.s8 %v4956
          %v4958 = vlaneseq
          %v4959 = vshrl.u32 %v4958, 7
          %v4960 = vsub.s32 %v4957, %v4959
          %v4961 = vrot.slane %v4945, %v4960
          %v4963 = vunpack.c.l.s4 1966171168
          %v4964 = vunpack.c.0.s8 %v4963
          %v4965 = vlaneseq
          %v4966 = vshrl.u32 %v4965, 7
          %v4967 = vsub.s32 %v4964, %v4966
          %v4968 = vrot.slane %v4946, %v4967
          %v4970 = vunpack.c.l.s4 1966171168
          %v4971 = vunpack.c.0.s8 %v4970
          %v4972 = vlaneseq
          %v4973 = vshrl.u32 %v4972, 7
          %v4974 = vsub.s32 %v4971, %v4973
          %v4975 = vrot.slane %v4947, %v4974
          %v4976 = vcombine.high %v4954, %v4954
          %v4977 = vcombine.high %v4961, %v4961
          %v4978 = vcombine.high %v4968, %v4968
          %v4979 = vcombine.high %v4975, %v4975
          %v4980 = vlaneseq
          %v4981 = vshrl.u32 %v4980, 7
          %v4982 = vsub.s32 0, %v4981
          %v4983 = vrot.slane %v4954, %v4982
          %v4984 = vlaneseq
          %v4985 = vshrl.u32 %v4984, 7
          %v4986 = vsub.s32 1, %v4985
          %v4987 = vrot.slane %v4954, %v4986
          %v4988 = vlaneseq
          %v4989 = vshrl.u32 %v4988, 7
          %v4990 = vsub.s32 0, %v4989
          %v4991 = vrot.slane %v4968, %v4990
          %v4992 = vlaneseq
          %v4993 = vshrl.u32 %v4992, 7
          %v4994 = vsub.s32 1, %v4993
          %v4995 = vrot.slane %v4968, %v4994
          %v4996 = vlaneseq
          %v4997 = vshrl.u32 %v4996, 7
          %v4998 = vsub.s32 0, %v4997
          %v4999 = vrot.slane %v4976, %v4998
          %v5000 = vlaneseq
          %v5001 = vshrl.u32 %v5000, 7
          %v5002 = vsub.s32 1, %v5001
          %v5003 = vrot.slane %v4976, %v5002
          %v5004 = vlaneseq
          %v5005 = vshrl.u32 %v5004, 7
          %v5006 = vsub.s32 0, %v5005
          %v5007 = vrot.slane %v4978, %v5006
          %v5008 = vlaneseq
          %v5009 = vshrl.u32 %v5008, 7
          %v5010 = vsub.s32 1, %v5009
          %v5011 = vrot.slane %v4978, %v5010
          %v5012 = vlaneseq
          %v5013 = vshrl.u32 %v5012, 7
          %v5014 = vsub.s32 0, %v5013
          %v5015 = vrot.slane %v4961, %v5014
          %v5016 = vlaneseq
          %v5017 = vshrl.u32 %v5016, 7
          %v5018 = vsub.s32 1, %v5017
          %v5019 = vrot.slane %v4961, %v5018
          %v5020 = vlaneseq
          %v5021 = vshrl.u32 %v5020, 7
          %v5022 = vsub.s32 0, %v5021
          %v5023 = vrot.slane %v4975, %v5022
          %v5024 = vlaneseq
          %v5025 = vshrl.u32 %v5024, 7
          %v5026 = vsub.s32 1, %v5025
          %v5027 = vrot.slane %v4975, %v5026
          %v5028 = vlaneseq
          %v5029 = vshrl.u32 %v5028, 7
          %v5030 = vsub.s32 0, %v5029
          %v5031 = vrot.slane %v4977, %v5030
          %v5032 = vlaneseq
          %v5033 = vshrl.u32 %v5032, 7
          %v5034 = vsub.s32 1, %v5033
          %v5035 = vrot.slane %v4977, %v5034
          %v5036 = vlaneseq
          %v5037 = vshrl.u32 %v5036, 7
          %v5038 = vsub.s32 0, %v5037
          %v5039 = vrot.slane %v4979, %v5038
          %v5040 = vlaneseq
          %v5041 = vshrl.u32 %v5040, 7
          %v5042 = vsub.s32 1, %v5041
          %v5043 = vrot.slane %v4979, %v5042
          %v5060 = vadd.f32 %v4983, %v4045
          %v5061 = vadd.f32 %v4987, %v4047
          %v5062 = vadd.f32 %v4991, %v4045
          %v5063 = vadd.f32 %v4995, %v4047
          %v5064 = vadd.f32 %v4999, %v4045
          %v5065 = vadd.f32 %v5003, %v4047
          %v5066 = vadd.f32 %v5007, %v4045
          %v5067 = vadd.f32 %v5011, %v4047
          %v5068 = vadd.f32 %v5015, %v4045
          %v5069 = vadd.f32 %v5019, %v4047
          %v5070 = vadd.f32 %v5023, %v4045
          %v5071 = vadd.f32 %v5027, %v4047
          %v5072 = vadd.f32 %v5031, %v4045
          %v5073 = vadd.f32 %v5035, %v4047
          %v5074 = vadd.f32 %v5039, %v4045
          %v5075 = vadd.f32 %v5043, %v4047
          %v5076 = vmax.f32 %v5060, 0.0
          %v5077 = vmax.f32 %v5061, 0.0
          %v5078 = vmax.f32 %v5062, 0.0
          %v5079 = vmax.f32 %v5063, 0.0
          %v5080 = vmax.f32 %v5064, 0.0
          %v5081 = vmax.f32 %v5065, 0.0
          %v5082 = vmax.f32 %v5066, 0.0
          %v5083 = vmax.f32 %v5067, 0.0
          %v5084 = vmax.f32 %v5068, 0.0
          %v5085 = vmax.f32 %v5069, 0.0
          %v5086 = vmax.f32 %v5070, 0.0
          %v5087 = vmax.f32 %v5071, 0.0
          %v5088 = vmax.f32 %v5072, 0.0
          %v5089 = vmax.f32 %v5073, 0.0
          %v5090 = vmax.f32 %v5074, 0.0
          %v5091 = vmax.f32 %v5075, 0.0
          %v5092 = vpack.c.bf16 %v5078, %v5076
          %v5093 = vpack.c.bf16 %v5079, %v5077
          %v5094 = vpack.c.bf16 %v5082, %v5080
          %v5095 = vpack.c.bf16 %v5083, %v5081
          %v5096 = vpack.c.bf16 %v5086, %v5084
          %v5097 = vpack.c.bf16 %v5087, %v5085
          %v5098 = vpack.c.bf16 %v5090, %v5088
          %v5099 = vpack.c.bf16 %v5091, %v5089
          %5100 = vmatprep.subr.bf16.mxu0 0
          %5101 = vmatpush1.bf16.msra.mxu0 %v4751
          %5102 = vmatprep.subr.bf16.mxu0 0
          %5103 = vmatpush1.bf16.msra.mxu0 %v4750
          %5104 = vmatprep.subr.bf16.mxu0 0
          %5105 = vmatpush1.bf16.msra.mxu0 %v4749
          %5106 = vmatprep.subr.bf16.mxu0 0
          %5107 = vmatpush1.bf16.msra.mxu0 %v4748
          %5108 = vmatprep.subr.bf16.mxu0 0
          %5109 = vmatpush1.bf16.msra.mxu0 %v4747
          %5110 = vmatprep.subr.bf16.mxu0 0
          %5111 = vmatpush1.bf16.msra.mxu0 %v4746
          %5112 = vmatprep.subr.bf16.mxu0 0
          %5113 = vmatpush1.bf16.msra.mxu0 %v4745
          %5114 = vmatprep.subr.bf16.mxu0 0
          %5115 = vmatpush1.bf16.msra.mxu0 %v4744
          %5116 = vmatprep.subr.bf16.mxu0 0
          %5117 = vmatpush2.bf16.msra.mxu0 %v4759
          %5118 = vmatprep.subr.bf16.mxu0 0
          %5119 = vmatpush2.bf16.msra.mxu0 %v4758
          %5120 = vmatprep.subr.bf16.mxu0 0
          %5121 = vmatpush2.bf16.msra.mxu0 %v4757
          %5122 = vmatprep.subr.bf16.mxu0 0
          %5123 = vmatpush2.bf16.msra.mxu0 %v4756
          %5124 = vmatprep.subr.bf16.mxu0 0
          %5125 = vmatpush2.bf16.msra.mxu0 %v4755
          %5126 = vmatprep.subr.bf16.mxu0 0
          %5127 = vmatpush2.bf16.msra.mxu0 %v4754
          %5128 = vmatprep.subr.bf16.mxu0 0
          %5129 = vmatpush2.bf16.msra.mxu0 %v4753
          %5130 = vmatprep.subr.bf16.mxu0 0
          %5131 = vmatpush2.bf16.msra.mxu0 %v4752
          %5132 = vmatprep.mubr.bf16.mxu0 %v5093
          %5133 = vmatmul.mubr.bf16.gmra.mxu0 %v5092
          %v5134 = vpop.f32.mrf.mxu0
          %v5135 = vadd.f32 0.0, %v5134
          %v5136 = vpop.f32.mrf.mxu0
          %v5137 = vpop.f32.mrf.mxu0
          %v5138 = vadd.f32 0.0, %v5137
          %v5139 = vpop.f32.mrf.mxu0
          %5140 = vmatprep.mubr.bf16.mxu0 %v5095
          %5141 = vmatmul.mubr.bf16.gmra.mxu0 %v5094
          %v5142 = vpop.f32.mrf.mxu0
          %v5143 = vadd.f32 0.0, %v5142
          %v5144 = vpop.f32.mrf.mxu0
          %v5145 = vpop.f32.mrf.mxu0
          %v5146 = vadd.f32 0.0, %v5145
          %v5147 = vpop.f32.mrf.mxu0
          %5148 = vmatprep.mubr.bf16.mxu0 %v5097
          %5149 = vmatmul.mubr.bf16.gmra.mxu0 %v5096
          %v5150 = vpop.f32.mrf.mxu0
          %v5151 = vadd.f32 0.0, %v5150
          %v5152 = vpop.f32.mrf.mxu0
          %v5153 = vpop.f32.mrf.mxu0
          %v5154 = vadd.f32 0.0, %v5153
          %v5155 = vpop.f32.mrf.mxu0
          %5156 = vmatprep.mubr.bf16.mxu0 %v5099
          %5157 = vmatmul.mubr.bf16.gmra.mxu0 %v5098
          %v5158 = vpop.f32.mrf.mxu0
          %v5159 = vadd.f32 0.0, %v5158
          %v5160 = vpop.f32.mrf.mxu0
          %v5161 = vpop.f32.mrf.mxu0
          %v5162 = vadd.f32 0.0, %v5161
          %v5163 = vpop.f32.mrf.mxu0
          %5164 = vdwg.mxu0
          %v5165 = vlaneseq
          %v5166 = vshrl.u32 %v5165, 7
          %v5167 = vsub.s32 6, %v5166
          %v5168 = vrot.slane %v3025, %v5167
          %5170 = vrot.lane.b32.xlu0 %v5168, 5
          %v5171 = vpop.permute.xlu0 %5170
          %v5173 = vadd.f32 %v5135, %v5171
          %v5174 = vadd.f32 %v5138, %v5171
          %v5175 = vadd.f32 %v5143, %v5171
          %v5176 = vadd.f32 %v5146, %v5171
          %v5177 = vadd.f32 %v5151, %v5171
          %v5178 = vadd.f32 %v5154, %v5171
          %v5179 = vadd.f32 %v5159, %v5171
          %v5180 = vadd.f32 %v5162, %v5171
          %v5181 = vmax.f32 %v5173, -10.0
          %v5182 = vmax.f32 %v5174, -10.0
          %v5183 = vmax.f32 %v5175, -10.0
          %v5184 = vmax.f32 %v5176, -10.0
          %v5185 = vmax.f32 %v5177, -10.0
          %v5186 = vmax.f32 %v5178, -10.0
          %v5187 = vmax.f32 %v5179, -10.0
          %v5188 = vmax.f32 %v5180, -10.0
          %v5189 = vmin.f32 %v5181, 10.0
          %v5190 = vmin.f32 %v5182, 10.0
          %v5191 = vmin.f32 %v5183, 10.0
          %v5192 = vmin.f32 %v5184, 10.0
          %v5193 = vmin.f32 %v5185, 10.0
          %v5194 = vmin.f32 %v5186, 10.0
          %v5195 = vmin.f32 %v5187, 10.0
          %v5196 = vmin.f32 %v5188, 10.0
          %5198 = vrot.lane.b32.xlu0 %v4832, 4
          %v5199 = vpop.permute.xlu0 %5198
          %5202 = vrot.lane.b32.xlu0 %v4907, 4
          %v5203 = vpop.permute.xlu0 %5202
          %5213 = vset.pattern.permute.xlu0 5
          %5214 = vperm.xlu0 %5213, %v5189
          %v5215 = vpop.permute.xlu0 %5214
          %5216 = vset.pattern.permute.xlu0 5
          %5217 = vperm.xlu0 %5216, %v5190
          %v5218 = vpop.permute.xlu0 %5217
          %5219 = vset.pattern.permute.xlu0 5
          %5220 = vperm.xlu0 %5219, %v5191
          %v5221 = vpop.permute.xlu0 %5220
          %5222 = vset.pattern.permute.xlu0 5
          %5223 = vperm.xlu0 %5222, %v5192
          %v5224 = vpop.permute.xlu0 %5223
          %5225 = vset.pattern.permute.xlu0 5
          %5226 = vperm.xlu0 %5225, %v5193
          %v5227 = vpop.permute.xlu0 %5226
          %5228 = vset.pattern.permute.xlu0 5
          %5229 = vperm.xlu0 %5228, %v5194
          %v5230 = vpop.permute.xlu0 %5229
          %5231 = vset.pattern.permute.xlu0 5
          %5232 = vperm.xlu0 %5231, %v5195
          %v5233 = vpop.permute.xlu0 %5232
          %5234 = vset.pattern.permute.xlu0 5
          %5235 = vperm.xlu0 %5234, %v5196
          %v5236 = vpop.permute.xlu0 %5235
          %v5237 = vlaneseq
          %v5238 = vand.u32 %v5237, 127
          %v5239 = vadd.s32 %v5238, 4294967287
          %v5240 = vlaneseq
          %v5241 = vshrl.u32 %v5240, 7
          %v5242 = vsub.s32 %v5239, %v5241
          %v5243 = vrot.slane %v5215, %v5242
          %v5244 = vlaneseq
          %v5245 = vshrl.u32 %v5244, 7
          %v5246 = vsub.s32 %v5239, %v5245
          %v5247 = vrot.slane %v5218, %v5246
          %v5248 = vlaneseq
          %v5249 = vshrl.u32 %v5248, 7
          %v5250 = vsub.s32 %v5239, %v5249
          %v5251 = vrot.slane %v5221, %v5250
          %v5252 = vlaneseq
          %v5253 = vshrl.u32 %v5252, 7
          %v5254 = vsub.s32 %v5239, %v5253
          %v5255 = vrot.slane %v5224, %v5254
          %v5256 = vlaneseq
          %v5257 = vshrl.u32 %v5256, 7
          %v5258 = vsub.s32 %v5239, %v5257
          %v5259 = vrot.slane %v5227, %v5258
          %v5260 = vlaneseq
          %v5261 = vshrl.u32 %v5260, 7
          %v5262 = vsub.s32 %v5239, %v5261
          %v5263 = vrot.slane %v5230, %v5262
          %v5264 = vlaneseq
          %v5265 = vshrl.u32 %v5264, 7
          %v5266 = vsub.s32 %v5239, %v5265
          %v5267 = vrot.slane %v5233, %v5266
          %v5268 = vlaneseq
          %v5269 = vshrl.u32 %v5268, 7
          %v5270 = vsub.s32 %v5239, %v5269
          %v5271 = vrot.slane %v5236, %v5270
          %vm5272 = vcmask 1041409
          %v5273 = vsel %vm5272, %v5247, %v5243
          %vm5274 = vcmask 1042434
          %v5275 = vsel %vm5274, %v5251, %v5273
          %vm5276 = vcmask 1043459
          %v5277 = vsel %vm5276, %v5255, %v5275
          %vm5278 = vcmask 1044484
          %v5279 = vsel %vm5278, %v5259, %v5277
          %vm5280 = vcmask 1045509
          %v5281 = vsel %vm5280, %v5263, %v5279
          %vm5282 = vcmask 1046534
          %v5283 = vsel %vm5282, %v5267, %v5281
          %vm5284 = vcmask 1047559
          %v5285 = vsel %vm5284, %v5271, %v5283
          %v5287 = vsel %vm4821, %v4820, %v5199
          %v5288 = vsel %vm1067, %v5287, %v5203
          %vm5289 = vcmask 72704
          %v5290 = vsel %vm5289, %v5288, %v5285
          %vm5291 = vcmask 138240
          %v5292 = vsel %vm5291, %v5290, 0.0
          %5293 = vst [vmem:[#allocation24] sm:$0xff] %v5292
        $region124: #{tpu_custom_call.1} parent=67 // pred_fallthru
          _
        // Predicated region
        $region125: #{tpu_custom_call.1} parent=67 // pred_check
          %p5294 = pneg %p342
        $region126: #{tpu_custom_call.1} parent=67 // pred_check_branch
          %5296 = sbr.rel (%p5294) target = $region128
        $region127: #{tpu_custom_call.1} parent=67 // pred_region
          %s5298 = ssub.s32 256, 256
          %5299 = vsyncadd [#allocation7], %s5298
          %s5301 = sshll.u32 [#allocation23], 4
          %s5302 = int_to_ptr.vmem [resolvable:$true] %s5301
          %5304 = dma.vmem_to_hbm [thread:$0]  %s5302, 256, %s13, [#allocation7]
        $region128: #{tpu_custom_call.1} parent=67 // pred_fallthru
          _
        // Predicated region
        $region129: #{tpu_custom_call.1} parent=67 // pred_check
          %p5305 = pneg %p363
        $region130: #{tpu_custom_call.1} parent=67 // pred_check_branch
          %5307 = sbr.rel (%p5305) target = $region132
        $region131: #{tpu_custom_call.1} parent=67 // pred_region
          %s5309 = ssub.s32 128, 128
          %5310 = vsyncadd [#allocation25], %s5309
          %s5312 = sshll.u32 [#allocation24], 4
          %s5313 = int_to_ptr.vmem [resolvable:$true] %s5312
          %5315 = dma.vmem_to_hbm [thread:$0]  %s5313, 128, %s14, [#allocation25]
        $region132: #{tpu_custom_call.1} parent=67 // pred_fallthru
          _
        // Predicated region
        $region133: #{tpu_custom_call.1} parent=67 // pred_check
          %p5316 = pneg %p342
        $region134: #{tpu_custom_call.1} parent=67 // pred_check_branch
          %5318 = sbr.rel (%p5316) target = $region136
        $region135: #{tpu_custom_call.1} parent=67 // pred_region
          %5319 = dma.done [#allocation7], 256
        $region136: #{tpu_custom_call.1} parent=67 // pred_fallthru
          _
        // Predicated region
        $region137: #{tpu_custom_call.1} parent=67 // pred_check
          %p5320 = pneg %p363
        $region138: #{tpu_custom_call.1} parent=67 // pred_check_branch
          %5322 = sbr.rel (%p5320) target = $region140
        $region139: #{tpu_custom_call.1} parent=67 // pred_region
          %5323 = dma.done [#allocation25], 128
        $region140: #{tpu_custom_call.1} parent=67 // pred_fallthru
          _
      $region68: #{tpu_custom_call.1} parent=5 // pred_fallthru
        _
      %p5324 = scmp.le.s32.totalorder 2, %s37
      // Predicated region
      $region141: #{tpu_custom_call.1} parent=5 // pred_check
        %p5325 = pneg %p5324
      $region142: #{tpu_custom_call.1} parent=5 // pred_check_branch
        %5327 = sbr.rel (%p5325) target = $region144
      $region143: #{tpu_custom_call.1} parent=5 // pred_region
        %s5328 = ssub.s32 %s37, 2
      $region144: #{tpu_custom_call.1} parent=5 // pred_fallthru
        _
    $region6: #{tpu_custom_call.1} parent=1 // loop_footer
      %s41 = sadd.s32 1, %s37
    $region7: #{tpu_custom_call.1} parent=1 // loop_footer_branch
      %36 = sbr.rel target = $region3
    $region8: #{tpu_custom_call.1} parent=1 // loop_exit
      _
    %5329 = vsyncpa [#allocation6], 1
    %s5330 = scalar_lea.sflag [#allocation6], 1
    %5331 = vsyncpa %s5330, 1
    %5332 = vsyncpa [#allocation9], 1
    %5333 = vsyncpa [#allocation12], 1
    %s5334 = scalar_lea.sflag [#allocation12], 1
    %5335 = vsyncpa %s5334, 1
    %5336 = vsyncpa [#allocation15], 1
    %s5337 = scalar_lea.sflag [#allocation15], 1
    %5338 = vsyncpa %s5337, 1
    %5339 = vsyncpa [#allocation18], 1
    %s5340 = scalar_lea.sflag [#allocation18], 1
    %5341 = vsyncpa %s5340, 1
    %5342 = vsyncpa [#allocation21], 1
    %s5343 = scalar_lea.sflag [#allocation21], 1
    %5344 = vsyncpa %s5343, 1
    %5345 = vsyncpa [#allocation7], 1
    %s5346 = scalar_lea.sflag [#allocation7], 1
    %5347 = vsyncpa %s5346, 1
    %5348 = vsyncpa [#allocation25], 1
  %5349 = vsyncmov [#allocation4]
  %s5350 = vpop.sfrf %5349
  %p5351 = scmp.eq.s32.totalorder %s5350, 0
  %p5352 = pneg %p5351
  %5354 = shalt.err (%p5352)

</llo_original>
